<compile_context>
chip_gen: v7x
topology: tpu7x:2x2x1
jax: 0.10.0
libtpu: 0.0.40
codegen_flags: <defaults>
</compile_context>

<pallas_src>
import jax
import jax.numpy as jnp
from jax.experimental import pallas as pl
from jax.experimental.pallas import tpu as pltpu


def _round_up(x, m):
    return ((x + m - 1) // m) * m


# ---------------------------------------------------------------------------
# Host-side glue: channels-first im2col columns grouped by 2x2 max-pool quadrant
# ---------------------------------------------------------------------------
def _quadrant_cols_cf(x_nchw, kh, kw, stride, pad):
    """Channels-first im2col grouped by pool quadrant.

    Returns (colsq, ph, pw, k) with colsq[q, n, :, py*pw+px] holding the
    (cin, kh, kw)-ordered receptive field of conv output position
    (2*py+dy, 2*px+dx), q = 2*dy+dx.   Shape: (4, n, k, ph*pw), dtype of x.
    The conv's 2x2 / stride-2 max pool then becomes max_q(W @ colsq[q]).
    """
    if pad:
        x_nchw = jnp.pad(x_nchw, ((0, 0), (0, 0), (pad, pad), (pad, pad)))
    n, cin, hp, wp = x_nchw.shape
    oh = (hp - kh) // stride + 1
    ow = (wp - kw) // stride + 1
    ph, pw = oh // 2, ow // 2            # max_pool2d(2, 2) floor mode drops odd edge
    k = cin * kh * kw
    step = 2 * stride
    quads = []
    for dy in range(2):
        for dx in range(2):
            taps = []
            for i in range(kh):
                for j in range(kw):
                    r0, c0 = stride * dy + i, stride * dx + j
                    taps.append(x_nchw[:, :, r0:r0 + step * (ph - 1) + 1:step,
                                       c0:c0 + step * (pw - 1) + 1:step])
            t = jnp.stack(taps, axis=2)                  # (n, cin, kh*kw, ph, pw)
            quads.append(t.reshape(n, k, ph * pw))
    return jnp.stack(quads, axis=0), ph, pw, k           # (4, n, k, ph*pw)


# ---------------------------------------------------------------------------
# Pallas kernel 1: fused conv + bias + 2x2 max-pool + ReLU (conv1, conv2), lane-dense
# ---------------------------------------------------------------------------
def _qconv_pool_relu_kernel(colsq_ref, w_ref, b_ref, o_ref):
    """One (sample, m-tile): 4 quadrant matmuls -> max (= pool) -> +bias -> ReLU."""
    w = w_ref[...]                                            # (cout, k) bf16
    acc = None
    for q in range(4):
        y = jnp.dot(w, colsq_ref[q, 0], preferred_element_type=jnp.float32)
        acc = y if acc is None else jnp.maximum(acc, y)       # (cout, tm) f32, lane-dense
    o_ref[0] = jnp.maximum(acc + b_ref[...], 0.0).astype(o_ref.dtype)


def conv_pool_relu(x_nchw, w_oihw, b, *, stride, pad, tm=512):
    """F.relu(F.max_pool2d(conv2d(x), 2, 2)); NCHW bf16 in, NCHW bf16 out."""
    cout, cin, kh, kw = w_oihw.shape
    colsq, ph, pw, k = _quadrant_cols_cf(x_nchw.astype(jnp.bfloat16), kh, kw, stride, pad)
    n, m = colsq.shape[1], ph * pw
    if m > tm:                       # M-split: lane tiles of tm (pipelining + dual-TC)
        mp = _round_up(m, tm)
        if mp != m:
            colsq = jnp.pad(colsq, ((0, 0), (0, 0), (0, 0), (0, mp - m)))
    else:
        tm = mp = m
    w_mat = w_oihw.reshape(cout, k).astype(jnp.bfloat16)      # rows=cout, cols=(cin,kh,kw)

    out = pl.pallas_call(
        _qconv_pool_relu_kernel,
        out_shape=jax.ShapeDtypeStruct((n, cout, mp), jnp.bfloat16),
        grid=(n, mp // tm),
        in_specs=[
            pl.BlockSpec((4, 1, k, tm), lambda i, j: (0, i, 0, j)),
            pl.BlockSpec((cout, k), lambda i, j: (0, 0)),
            pl.BlockSpec((cout, 1), lambda i, j: (0, 0)),
        ],
        out_specs=pl.BlockSpec((1, cout, tm), lambda i, j: (i, 0, j)),
        compiler_params=pltpu.CompilerParams(
            dimension_semantics=("parallel", "parallel")),
    )(colsq, w_mat, b.reshape(cout, 1).astype(jnp.float32))
    if mp != m:
        out = out[:, :, :m]
    return out.reshape(n, cout, ph, pw)


# ---------------------------------------------------------------------------
# Pallas kernel 2: fused tail = conv3 + pool + ReLU + conv4 + pool + ReLU + MLP head
# ---------------------------------------------------------------------------
def _tail_kernel(cols3_ref, w3_ref, b3_ref, w4_ref, b4_ref,
                 w11_ref, b11_ref, w22_ref, b22_ref, w33_ref, b33_ref, o_ref):
    # conv3 (+bias) with fused 2x2 max-pool + ReLU.  Each sample is ONE row; the 4
    # (2x2) spatial positions of conv3/conv4 live in lane blocks via block-diagonal
    # weights, so the whole tail is plain 2D matmuls with no in-kernel reshape.
    w3 = w3_ref[...]
    acc = None
    for q in range(4):
        y = jnp.dot(cols3_ref[q], w3, preferred_element_type=jnp.float32)   # (bn, 4*64)
        acc = y if acc is None else jnp.maximum(acc, y)
    a3 = jnp.maximum(acc + b3_ref[...], 0.0)                                 # (bn, 256)
    # conv4 (1x1, stride 1) on each of the 4 spatial positions, + bias.
    a4 = jnp.dot(a3, w4_ref[...], preferred_element_type=jnp.float32) + b4_ref[...]  # (bn, 128)
    # 2x2 max-pool over conv4's 2x2 spatial output (4 lane blocks of 32 ch) + ReLU;
    # the result is exactly torch's .view(n, 32) flatten (conv4 output is 1x1 spatial).
    flat = jnp.maximum(
        jnp.maximum(jnp.maximum(a4[:, 0:32], a4[:, 32:64]),
                    jnp.maximum(a4[:, 64:96], a4[:, 96:128])), 0.0)          # (bn, 32)
    # MLP head, f32, VMEM resident; M == bn (no padding to 128).
    h = jnp.maximum(jnp.dot(flat, w11_ref[...],
                            preferred_element_type=jnp.float32) + b11_ref[...], 0.0)
    h = jnp.maximum(jnp.dot(h, w22_ref[...],
                            preferred_element_type=jnp.float32) + b22_ref[...], 0.0)
    o_ref[...] = (jnp.dot(h, w33_ref[...], preferred_element_type=jnp.float32)
                  + b33_ref[...]).astype(o_ref.dtype)


# ---------------------------------------------------------------------------
# end_layer forward
# ---------------------------------------------------------------------------
def end_layer_forward(params, x_nchw, activate=None):
    n, _, h, w = x_nchw.shape
    if (h, w) != (128, 128):
        # The PyTorch module's flatten_len / .view() only line up when conv4's spatial
        # output is 1x1 (128x128 frames); the fused tail kernel hard-codes that geometry.
        raise ValueError("end_layer_forward expects 128x128 frames")
    x = x_nchw.astype(jnp.bfloat16)                                           # NCHW throughout

    x = conv_pool_relu(x, params["conv1_w"], params["conv1_b"], stride=2, pad=1)  # (n,16,31,31)
    x = conv_pool_relu(x, params["conv2_w"], params["conv2_b"], stride=2, pad=1)  # (n,32,8,8)

    # conv3 im2col for the fused tail: one row per sample, the 4 spatial positions
    # concatenated along lanes (spatial-major), matching block-diagonal weights.
    cols3q, ph3, pw3, k3 = _quadrant_cols_cf(x, 3, 3, stride=2, pad=1)   # (4, n, 288, 4)
    m3 = ph3 * pw3
    assert m3 == 4, m3
    cols3 = jnp.swapaxes(cols3q, 2, 3).reshape(4, n, m3 * k3)            # (4, n, 1152) bf16

    out_dim = params["fc33_w"].shape[1]
    bn = n if n <= 64 else 64                      # samples per tail grid step
    n_p = _round_up(n, bn)
    if n_p != n:
        cols3 = jnp.pad(cols3, ((0, 0), (0, n_p - n), (0, 0)))

    eye4 = jnp.eye(m3, dtype=jnp.float32)
    w3 = jnp.transpose(params["conv3_w"].reshape(64, k3))                # (288, 64), (cin,kh,kw) rows
    w3_bd = jnp.kron(eye4, w3).astype(jnp.bfloat16)                      # (1152, 256)
    b3_bd = jnp.tile(params["conv3_b"], m3).reshape(1, m3 * 64)
    w4 = jnp.transpose(params["conv4_w"].reshape(32, 64))                # (64, 32) f32
    w4_bd = jnp.kron(eye4, w4)                                           # (256, 128) f32
    b4_bd = jnp.tile(params["conv4_b"], m3).reshape(1, m3 * 32)

    out = pl.pallas_call(
        _tail_kernel,
        out_shape=jax.ShapeDtypeStruct((n_p, out_dim), jnp.float32),
        grid=(n_p // bn,),
        in_specs=[
            pl.BlockSpec((4, bn, m3 * k3), lambda i: (0, i, 0)),
            pl.BlockSpec(w3_bd.shape, lambda i: (0, 0)),
            pl.BlockSpec(b3_bd.shape, lambda i: (0, 0)),
            pl.BlockSpec(w4_bd.shape, lambda i: (0, 0)),
            pl.BlockSpec(b4_bd.shape, lambda i: (0, 0)),
            pl.BlockSpec(params["fc11_w"].shape, lambda i: (0, 0)),
            pl.BlockSpec((1, 128), lambda i: (0, 0)),
            pl.BlockSpec(params["fc22_w"].shape, lambda i: (0, 0)),
            pl.BlockSpec((1, 32), lambda i: (0, 0)),
            pl.BlockSpec(params["fc33_w"].shape, lambda i: (0, 0)),
            pl.BlockSpec((1, out_dim), lambda i: (0, 0)),
        ],
        out_specs=pl.BlockSpec((bn, out_dim), lambda i: (i, 0)),
        compiler_params=pltpu.CompilerParams(dimension_semantics=("parallel",)),
    )(cols3,
      w3_bd, b3_bd,
      w4_bd, b4_bd,
      params["fc11_w"], params["fc11_b"].reshape(1, -1),
      params["fc22_w"], params["fc22_b"].reshape(1, -1),
      params["fc33_w"], params["fc33_b"].reshape(1, -1))
    out = out[:n]
    if activate is not None:
        out = activate(out)
    return out


def init_params(key, in_channels, out_dim, frame_width, frame_height):
    # NOTE: fc weights are stored as (din, dout) and used as x @ W; porting real
    # PyTorch nn.Linear weights (stored (out, in)) would require a transpose.
    flatten_len = int(32 * (frame_width / 128) * (frame_height / 128))

    def conv_p(k, cout, cin, kh, kw):
        kw_, kb_ = jax.random.split(k)
        std = (2.0 / (cin * kh * kw)) ** 0.5
        return (std * jax.random.normal(kw_, (cout, cin, kh, kw), jnp.float32),
                0.05 * jax.random.normal(kb_, (cout,), jnp.float32))

    def fc_p(k, din, dout):
        kw_, kb_ = jax.random.split(k)
        std = (2.0 / din) ** 0.5
        return (std * jax.random.normal(kw_, (din, dout), jnp.float32),
                0.05 * jax.random.normal(kb_, (dout,), jnp.float32))

    ks = jax.random.split(key, 7)
    p = {}
    p["conv1_w"], p["conv1_b"] = conv_p(ks[0], 16, in_channels, 5, 5)
    p["conv2_w"], p["conv2_b"] = conv_p(ks[1], 32, 16, 3, 3)
    p["conv3_w"], p["conv3_b"] = conv_p(ks[2], 64, 32, 3, 3)
    p["conv4_w"], p["conv4_b"] = conv_p(ks[3], 32, 64, 1, 1)
    p["fc11_w"], p["fc11_b"] = fc_p(ks[4], flatten_len, 128)
    p["fc22_w"], p["fc22_b"] = fc_p(ks[5], 128, 32)
    p["fc33_w"], p["fc33_b"] = fc_p(ks[6], 32, out_dim)
    return p


def _reference_forward(params, x_nchw):
    """Pure-JAX (lax.conv / reduce_window), f32 reference of the PyTorch forward."""
    x = x_nchw.astype(jnp.float32)

    def conv(x, w, b, stride, pad):
        y = jax.lax.conv_general_dilated(
            x, w, (stride, stride), [(pad, pad), (pad, pad)],
            dimension_numbers=("NCHW", "OIHW", "NCHW"))
        return y + b[None, :, None, None]

    def pool_relu(x):
        y = jax.lax.reduce_window(x, -jnp.inf, jax.lax.max,
                                  (1, 1, 2, 2), (1, 1, 2, 2), "VALID")
        return jnp.maximum(y, 0.0)

    x = pool_relu(conv(x, params["conv1_w"], params["conv1_b"], 2, 1))
    x = pool_relu(conv(x, params["conv2_w"], params["conv2_b"], 2, 1))
    x = pool_relu(conv(x, params["conv3_w"], params["conv3_b"], 2, 1))
    x = pool_relu(conv(x, params["conv4_w"], params["conv4_b"], 1, 0))
    x = x.reshape(x.shape[0], -1)
    x = jnp.maximum(x @ params["fc11_w"] + params["fc11_b"], 0.0)
    x = jnp.maximum(x @ params["fc22_w"] + params["fc22_b"], 0.0)
    return x @ params["fc33_w"] + params["fc33_b"]


if __name__ == "__main__":
    # args.frame_width = args.frame_height = 128  =>  flatten_len = 32 (module geometry)
    batch, in_channels, frame_h, frame_w, out_dim = 2, 3, 128, 128, 10

    key = jax.random.PRNGKey(0)
    kx, kp = jax.random.split(key)
    x = jax.random.normal(kx, (batch, in_channels, frame_h, frame_w), jnp.float32)
    params = init_params(kp, in_channels, out_dim, frame_w, frame_h)

    fwd = jax.jit(end_layer_forward)
    y = jax.block_until_ready(fwd(params, x))
    assert y.shape == (batch, out_dim), y.shape

    # Correctness vs a pure-JAX f32 reference of the PyTorch forward.  Tolerance
    # reflects bf16 activations/weights in the conv stack (accumulation is f32).
    y_ref = jax.block_until_ready(_reference_forward(params, x))
    max_err = float(jnp.max(jnp.abs(y - y_ref)))
    assert bool(jnp.allclose(y, y_ref, rtol=5e-2, atol=5e-2)), max_err

    print("KERNEL_OK")
</pallas_src>

<mosaic_0001>
module attributes {stable_mosaic.version = 11 : i64} {
  func.func @_qconv_pool_relu_kernel(%arg0: i32, %arg1: i32, %arg2: memref<4x1x75x512xbf16, #tpu.memory_space<vmem>>, %arg3: memref<16x75xbf16, #tpu.memory_space<vmem>>, %arg4: memref<16x1xf32, #tpu.memory_space<vmem>>, %arg5: memref<1x16x512xbf16, #tpu.memory_space<vmem>>) attributes {dimension_semantics = [#tpu.dimension_semantics<parallel>, #tpu.dimension_semantics<parallel>], iteration_bounds = array<i64: 2, 2>, scalar_prefetch = 0 : i64, scratch_operands = 0 : i64, tpu.core_type = #tpu.core_type<tc>, window_params = [{transform_indices = @transform_0, window_bounds = array<i64: 4, 1, 75, 512>}, {pipeline_mode = #tpu.pipeline_mode<synchronous>, transform_indices = @transform_1, window_bounds = array<i64: 16, 75>}, {pipeline_mode = #tpu.pipeline_mode<synchronous>, transform_indices = @transform_2, window_bounds = array<i64: 16, 1>}, {transform_indices = @transform_3, window_bounds = array<i64: 1, 16, 512>}]} {
    %c0 = arith.constant 0 : index
    %c0_0 = arith.constant 0 : index
    %0 = vector.load %arg3[%c0, %c0_0] : memref<16x75xbf16, #tpu.memory_space<vmem>>, vector<16x75xbf16>
    %c0_1 = arith.constant 0 : index
    %c0_2 = arith.constant 0 : index
    %c0_3 = arith.constant 0 : index
    %c0_4 = arith.constant 0 : index
    %1 = vector.load %arg2[%c0_1, %c0_2, %c0_3, %c0_4] : memref<4x1x75x512xbf16, #tpu.memory_space<vmem>>, vector<1x1x75x512xbf16>
    %2 = vector.shape_cast %1 : vector<1x1x75x512xbf16> to vector<75x512xbf16>
    %cst = arith.constant dense<0.000000e+00> : vector<16x512xf32>
    %3 = tpu.matmul %0, %2, %cst {dimension_numbers = #tpu.dot_dimension_numbers<[1], [0], [0], [1], [0, 0, 1, 1], [], []>} : vector<16x75xbf16>, vector<75x512xbf16>, vector<16x512xf32> -> vector<16x512xf32>
    %c1 = arith.constant 1 : index
    %c0_5 = arith.constant 0 : index
    %c0_6 = arith.constant 0 : index
    %c0_7 = arith.constant 0 : index
    %4 = vector.load %arg2[%c1, %c0_5, %c0_6, %c0_7] : memref<4x1x75x512xbf16, #tpu.memory_space<vmem>>, vector<1x1x75x512xbf16>
    %5 = vector.shape_cast %4 : vector<1x1x75x512xbf16> to vector<75x512xbf16>
    %cst_8 = arith.constant dense<0.000000e+00> : vector<16x512xf32>
    %6 = tpu.matmul %0, %5, %cst_8 {dimension_numbers = #tpu.dot_dimension_numbers<[1], [0], [0], [1], [0, 0, 1, 1], [], []>} : vector<16x75xbf16>, vector<75x512xbf16>, vector<16x512xf32> -> vector<16x512xf32>
    %7 = arith.maximumf %3, %6 : vector<16x512xf32>
    %c2 = arith.constant 2 : index
    %c0_9 = arith.constant 0 : index
    %c0_10 = arith.constant 0 : index
    %c0_11 = arith.constant 0 : index
    %8 = vector.load %arg2[%c2, %c0_9, %c0_10, %c0_11] : memref<4x1x75x512xbf16, #tpu.memory_space<vmem>>, vector<1x1x75x512xbf16>
    %9 = vector.shape_cast %8 : vector<1x1x75x512xbf16> to vector<75x512xbf16>
    %cst_12 = arith.constant dense<0.000000e+00> : vector<16x512xf32>
    %10 = tpu.matmul %0, %9, %cst_12 {dimension_numbers = #tpu.dot_dimension_numbers<[1], [0], [0], [1], [0, 0, 1, 1], [], []>} : vector<16x75xbf16>, vector<75x512xbf16>, vector<16x512xf32> -> vector<16x512xf32>
    %11 = arith.maximumf %7, %10 : vector<16x512xf32>
    %c3 = arith.constant 3 : index
    %c0_13 = arith.constant 0 : index
    %c0_14 = arith.constant 0 : index
    %c0_15 = arith.constant 0 : index
    %12 = vector.load %arg2[%c3, %c0_13, %c0_14, %c0_15] : memref<4x1x75x512xbf16, #tpu.memory_space<vmem>>, vector<1x1x75x512xbf16>
    %13 = vector.shape_cast %12 : vector<1x1x75x512xbf16> to vector<75x512xbf16>
    %cst_16 = arith.constant dense<0.000000e+00> : vector<16x512xf32>
    %14 = tpu.matmul %0, %13, %cst_16 {dimension_numbers = #tpu.dot_dimension_numbers<[1], [0], [0], [1], [0, 0, 1, 1], [], []>} : vector<16x75xbf16>, vector<75x512xbf16>, vector<16x512xf32> -> vector<16x512xf32>
    %15 = arith.maximumf %11, %14 : vector<16x512xf32>
    %c0_17 = arith.constant 0 : index
    %c0_18 = arith.constant 0 : index
    %16 = vector.load %arg4[%c0_17, %c0_18] : memref<16x1xf32, #tpu.memory_space<vmem>>, vector<16x1xf32>
    %17 = vector.broadcast %16 : vector<16x1xf32> to vector<16x512xf32>
    %18 = arith.addf %15, %17 : vector<16x512xf32>
    %cst_19 = arith.constant 0.000000e+00 : f32
    %19 = vector.broadcast %cst_19 : f32 to vector<16x512xf32>
    %20 = arith.maximumf %18, %19 : vector<16x512xf32>
    %21 = arith.truncf %20 : vector<16x512xf32> to vector<16x512xbf16>
    %c0_20 = arith.constant 0 : index
    %c0_21 = arith.constant 0 : index
    %c0_22 = arith.constant 0 : index
    %22 = vector.load %arg5[%c0_20, %c0_21, %c0_22] : memref<1x16x512xbf16, #tpu.memory_space<vmem>>, vector<1x16x512xbf16>
    %23 = vector.shape_cast %22 : vector<1x16x512xbf16> to vector<16x512xbf16>
    %24 = vector.shape_cast %21 : vector<16x512xbf16> to vector<1x16x512xbf16>
    tpu.vector_store %arg5[%c0_20, %c0_21, %c0_22], %24 {strides = array<i32>} : memref<1x16x512xbf16, #tpu.memory_space<vmem>>, vector<1x16x512xbf16>,
    return
  }
  func.func @transform_0(%arg0: i32, %arg1: i32) -> (i32, i32, i32, i32) {
    %c0_i32 = arith.constant 0 : i32
    %c0_i32_0 = arith.constant 0 : i32
    %c0_i32_1 = arith.constant 0 : i32
    return %c0_i32, %arg0, %c0_i32_0, %arg1 : i32, i32, i32, i32
  }
  func.func @transform_1(%arg0: i32, %arg1: i32) -> (i32, i32) {
    %c0_i32 = arith.constant 0 : i32
    %c0_i32_0 = arith.constant 0 : i32
    %c0_i32_1 = arith.constant 0 : i32
    return %c0_i32, %c0_i32_0 : i32, i32
  }
  func.func @transform_2(%arg0: i32, %arg1: i32) -> (i32, i32) {
    %c0_i32 = arith.constant 0 : i32
    %c0_i32_0 = arith.constant 0 : i32
    %c0_i32_1 = arith.constant 0 : i32
    return %c0_i32, %c0_i32_0 : i32, i32
  }
  func.func @transform_3(%arg0: i32, %arg1: i32) -> (i32, i32, i32) {
    %c0_i32 = arith.constant 0 : i32
    %c0_i32_0 = arith.constant 0 : i32
    return %arg0, %c0_i32, %arg1 : i32, i32, i32
  }
}

module attributes {stable_mosaic.version = 11 : i64} {
  func.func @_qconv_pool_relu_kernel(%arg0: i32, %arg1: i32, %arg2: memref<4x1x144x64xbf16, #tpu.memory_space<vmem>>, %arg3: memref<32x144xbf16, #tpu.memory_space<vmem>>, %arg4: memref<32x1xf32, #tpu.memory_space<vmem>>, %arg5: memref<1x32x64xbf16, #tpu.memory_space<vmem>>) attributes {dimension_semantics = [#tpu.dimension_semantics<parallel>, #tpu.dimension_semantics<parallel>], iteration_bounds = array<i64: 2, 1>, scalar_prefetch = 0 : i64, scratch_operands = 0 : i64, tpu.core_type = #tpu.core_type<tc>, window_params = [{transform_indices = @transform_0, window_bounds = array<i64: 4, 1, 144, 64>}, {pipeline_mode = #tpu.pipeline_mode<synchronous>, transform_indices = @transform_1, window_bounds = array<i64: 32, 144>}, {pipeline_mode = #tpu.pipeline_mode<synchronous>, transform_indices = @transform_2, window_bounds = array<i64: 32, 1>}, {transform_indices = @transform_3, window_bounds = array<i64: 1, 32, 64>}]} {
    %c0 = arith.constant 0 : index
    %c0_0 = arith.constant 0 : index
    %0 = vector.load %arg3[%c0, %c0_0] : memref<32x144xbf16, #tpu.memory_space<vmem>>, vector<32x144xbf16>
    %c0_1 = arith.constant 0 : index
    %c0_2 = arith.constant 0 : index
    %c0_3 = arith.constant 0 : index
    %c0_4 = arith.constant 0 : index
    %1 = vector.load %arg2[%c0_1, %c0_2, %c0_3, %c0_4] : memref<4x1x144x64xbf16, #tpu.memory_space<vmem>>, vector<1x1x144x64xbf16>
    %2 = vector.shape_cast %1 : vector<1x1x144x64xbf16> to vector<144x64xbf16>
    %cst = arith.constant dense<0.000000e+00> : vector<32x64xf32>
    %3 = tpu.matmul %0, %2, %cst {dimension_numbers = #tpu.dot_dimension_numbers<[1], [0], [0], [1], [0, 0, 1, 1], [], []>} : vector<32x144xbf16>, vector<144x64xbf16>, vector<32x64xf32> -> vector<32x64xf32>
    %c1 = arith.constant 1 : index
    %c0_5 = arith.constant 0 : index
    %c0_6 = arith.constant 0 : index
    %c0_7 = arith.constant 0 : index
    %4 = vector.load %arg2[%c1, %c0_5, %c0_6, %c0_7] : memref<4x1x144x64xbf16, #tpu.memory_space<vmem>>, vector<1x1x144x64xbf16>
    %5 = vector.shape_cast %4 : vector<1x1x144x64xbf16> to vector<144x64xbf16>
    %cst_8 = arith.constant dense<0.000000e+00> : vector<32x64xf32>
    %6 = tpu.matmul %0, %5, %cst_8 {dimension_numbers = #tpu.dot_dimension_numbers<[1], [0], [0], [1], [0, 0, 1, 1], [], []>} : vector<32x144xbf16>, vector<144x64xbf16>, vector<32x64xf32> -> vector<32x64xf32>
    %7 = arith.maximumf %3, %6 : vector<32x64xf32>
    %c2 = arith.constant 2 : index
    %c0_9 = arith.constant 0 : index
    %c0_10 = arith.constant 0 : index
    %c0_11 = arith.constant 0 : index
    %8 = vector.load %arg2[%c2, %c0_9, %c0_10, %c0_11] : memref<4x1x144x64xbf16, #tpu.memory_space<vmem>>, vector<1x1x144x64xbf16>
    %9 = vector.shape_cast %8 : vector<1x1x144x64xbf16> to vector<144x64xbf16>
    %cst_12 = arith.constant dense<0.000000e+00> : vector<32x64xf32>
    %10 = tpu.matmul %0, %9, %cst_12 {dimension_numbers = #tpu.dot_dimension_numbers<[1], [0], [0], [1], [0, 0, 1, 1], [], []>} : vector<32x144xbf16>, vector<144x64xbf16>, vector<32x64xf32> -> vector<32x64xf32>
    %11 = arith.maximumf %7, %10 : vector<32x64xf32>
    %c3 = arith.constant 3 : index
    %c0_13 = arith.constant 0 : index
    %c0_14 = arith.constant 0 : index
    %c0_15 = arith.constant 0 : index
    %12 = vector.load %arg2[%c3, %c0_13, %c0_14, %c0_15] : memref<4x1x144x64xbf16, #tpu.memory_space<vmem>>, vector<1x1x144x64xbf16>
    %13 = vector.shape_cast %12 : vector<1x1x144x64xbf16> to vector<144x64xbf16>
    %cst_16 = arith.constant dense<0.000000e+00> : vector<32x64xf32>
    %14 = tpu.matmul %0, %13, %cst_16 {dimension_numbers = #tpu.dot_dimension_numbers<[1], [0], [0], [1], [0, 0, 1, 1], [], []>} : vector<32x144xbf16>, vector<144x64xbf16>, vector<32x64xf32> -> vector<32x64xf32>
    %15 = arith.maximumf %11, %14 : vector<32x64xf32>
    %c0_17 = arith.constant 0 : index
    %c0_18 = arith.constant 0 : index
    %16 = vector.load %arg4[%c0_17, %c0_18] : memref<32x1xf32, #tpu.memory_space<vmem>>, vector<32x1xf32>
    %17 = vector.broadcast %16 : vector<32x1xf32> to vector<32x64xf32>
    %18 = arith.addf %15, %17 : vector<32x64xf32>
    %cst_19 = arith.constant 0.000000e+00 : f32
    %19 = vector.broadcast %cst_19 : f32 to vector<32x64xf32>
    %20 = arith.maximumf %18, %19 : vector<32x64xf32>
    %21 = arith.truncf %20 : vector<32x64xf32> to vector<32x64xbf16>
    %c0_20 = arith.constant 0 : index
    %c0_21 = arith.constant 0 : index
    %c0_22 = arith.constant 0 : index
    %22 = vector.load %arg5[%c0_20, %c0_21, %c0_22] : memref<1x32x64xbf16, #tpu.memory_space<vmem>>, vector<1x32x64xbf16>
    %23 = vector.shape_cast %22 : vector<1x32x64xbf16> to vector<32x64xbf16>
    %24 = vector.shape_cast %21 : vector<32x64xbf16> to vector<1x32x64xbf16>
    tpu.vector_store %arg5[%c0_20, %c0_21, %c0_22], %24 {strides = array<i32>} : memref<1x32x64xbf16, #tpu.memory_space<vmem>>, vector<1x32x64xbf16>,
    return
  }
  func.func @transform_0(%arg0: i32, %arg1: i32) -> (i32, i32, i32, i32) {
    %c0_i32 = arith.constant 0 : i32
    %c0_i32_0 = arith.constant 0 : i32
    %c0_i32_1 = arith.constant 0 : i32
    return %c0_i32, %arg0, %c0_i32_0, %arg1 : i32, i32, i32, i32
  }
  func.func @transform_1(%arg0: i32, %arg1: i32) -> (i32, i32) {
    %c0_i32 = arith.constant 0 : i32
    %c0_i32_0 = arith.constant 0 : i32
    %c0_i32_1 = arith.constant 0 : i32
    return %c0_i32, %c0_i32_0 : i32, i32
  }
  func.func @transform_2(%arg0: i32, %arg1: i32) -> (i32, i32) {
    %c0_i32 = arith.constant 0 : i32
    %c0_i32_0 = arith.constant 0 : i32
    %c0_i32_1 = arith.constant 0 : i32
    return %c0_i32, %c0_i32_0 : i32, i32
  }
  func.func @transform_3(%arg0: i32, %arg1: i32) -> (i32, i32, i32) {
    %c0_i32 = arith.constant 0 : i32
    %c0_i32_0 = arith.constant 0 : i32
    return %arg0, %c0_i32, %arg1 : i32, i32, i32
  }
}

module attributes {stable_mosaic.version = 11 : i64} {
  func.func @_tail_kernel(%arg0: i32, %arg1: memref<4x2x1152xbf16, #tpu.memory_space<vmem>>, %arg2: memref<1152x256xbf16, #tpu.memory_space<vmem>>, %arg3: memref<1x256xf32, #tpu.memory_space<vmem>>, %arg4: memref<256x128xf32, #tpu.memory_space<vmem>>, %arg5: memref<1x128xf32, #tpu.memory_space<vmem>>, %arg6: memref<32x128xf32, #tpu.memory_space<vmem>>, %arg7: memref<1x128xf32, #tpu.memory_space<vmem>>, %arg8: memref<128x32xf32, #tpu.memory_space<vmem>>, %arg9: memref<1x32xf32, #tpu.memory_space<vmem>>, %arg10: memref<32x10xf32, #tpu.memory_space<vmem>>, %arg11: memref<1x10xf32, #tpu.memory_space<vmem>>, %arg12: memref<2x10xf32, #tpu.memory_space<vmem>>) attributes {dimension_semantics = [#tpu.dimension_semantics<parallel>], iteration_bounds = array<i64: 1>, scalar_prefetch = 0 : i64, scratch_operands = 0 : i64, tpu.core_type = #tpu.core_type<tc>, window_params = [{transform_indices = @transform_0, window_bounds = array<i64: 4, 2, 1152>}, {pipeline_mode = #tpu.pipeline_mode<synchronous>, transform_indices = @transform_1, window_bounds = array<i64: 1152, 256>}, {pipeline_mode = #tpu.pipeline_mode<synchronous>, transform_indices = @transform_2, window_bounds = array<i64: 1, 256>}, {pipeline_mode = #tpu.pipeline_mode<synchronous>, transform_indices = @transform_3, window_bounds = array<i64: 256, 128>}, {pipeline_mode = #tpu.pipeline_mode<synchronous>, transform_indices = @transform_4, window_bounds = array<i64: 1, 128>}, {pipeline_mode = #tpu.pipeline_mode<synchronous>, transform_indices = @transform_5, window_bounds = array<i64: 32, 128>}, {pipeline_mode = #tpu.pipeline_mode<synchronous>, transform_indices = @transform_6, window_bounds = array<i64: 1, 128>}, {pipeline_mode = #tpu.pipeline_mode<synchronous>, transform_indices = @transform_7, window_bounds = array<i64: 128, 32>}, {pipeline_mode = #tpu.pipeline_mode<synchronous>, transform_indices = @transform_8, window_bounds = array<i64: 1, 32>}, {pipeline_mode = #tpu.pipeline_mode<synchronous>, transform_indices = @transform_9, window_bounds = array<i64: 32, 10>}, {pipeline_mode = #tpu.pipeline_mode<synchronous>, transform_indices = @transform_10, window_bounds = array<i64: 1, 10>}, {transform_indices = @transform_11, window_bounds = array<i64: 2, 10>}]} {
    %c0 = arith.constant 0 : index
    %c0_0 = arith.constant 0 : index
    %0 = vector.load %arg2[%c0, %c0_0] : memref<1152x256xbf16, #tpu.memory_space<vmem>>, vector<1152x256xbf16>
    %c0_1 = arith.constant 0 : index
    %c0_2 = arith.constant 0 : index
    %c0_3 = arith.constant 0 : index
    %1 = vector.load %arg1[%c0_1, %c0_2, %c0_3] : memref<4x2x1152xbf16, #tpu.memory_space<vmem>>, vector<1x2x1152xbf16>
    %2 = vector.shape_cast %1 : vector<1x2x1152xbf16> to vector<2x1152xbf16>
    %cst = arith.constant dense<0.000000e+00> : vector<2x256xf32>
    %3 = tpu.matmul %2, %0, %cst {dimension_numbers = #tpu.dot_dimension_numbers<[1], [0], [0], [1], [0, 0, 1, 1], [], []>} : vector<2x1152xbf16>, vector<1152x256xbf16>, vector<2x256xf32> -> vector<2x256xf32>
    %c1 = arith.constant 1 : index
    %c0_4 = arith.constant 0 : index
    %c0_5 = arith.constant 0 : index
    %4 = vector.load %arg1[%c1, %c0_4, %c0_5] : memref<4x2x1152xbf16, #tpu.memory_space<vmem>>, vector<1x2x1152xbf16>
    %5 = vector.shape_cast %4 : vector<1x2x1152xbf16> to vector<2x1152xbf16>
    %cst_6 = arith.constant dense<0.000000e+00> : vector<2x256xf32>
    %6 = tpu.matmul %5, %0, %cst_6 {dimension_numbers = #tpu.dot_dimension_numbers<[1], [0], [0], [1], [0, 0, 1, 1], [], []>} : vector<2x1152xbf16>, vector<1152x256xbf16>, vector<2x256xf32> -> vector<2x256xf32>
    %7 = arith.maximumf %3, %6 : vector<2x256xf32>
    %c2 = arith.constant 2 : index
    %c0_7 = arith.constant 0 : index
    %c0_8 = arith.constant 0 : index
    %8 = vector.load %arg1[%c2, %c0_7, %c0_8] : memref<4x2x1152xbf16, #tpu.memory_space<vmem>>, vector<1x2x1152xbf16>
    %9 = vector.shape_cast %8 : vector<1x2x1152xbf16> to vector<2x1152xbf16>
    %cst_9 = arith.constant dense<0.000000e+00> : vector<2x256xf32>
    %10 = tpu.matmul %9, %0, %cst_9 {dimension_numbers = #tpu.dot_dimension_numbers<[1], [0], [0], [1], [0, 0, 1, 1], [], []>} : vector<2x1152xbf16>, vector<1152x256xbf16>, vector<2x256xf32> -> vector<2x256xf32>
    %11 = arith.maximumf %7, %10 : vector<2x256xf32>
    %c3 = arith.constant 3 : index
    %c0_10 = arith.constant 0 : index
    %c0_11 = arith.constant 0 : index
    %12 = vector.load %arg1[%c3, %c0_10, %c0_11] : memref<4x2x1152xbf16, #tpu.memory_space<vmem>>, vector<1x2x1152xbf16>
    %13 = vector.shape_cast %12 : vector<1x2x1152xbf16> to vector<2x1152xbf16>
    %cst_12 = arith.constant dense<0.000000e+00> : vector<2x256xf32>
    %14 = tpu.matmul %13, %0, %cst_12 {dimension_numbers = #tpu.dot_dimension_numbers<[1], [0], [0], [1], [0, 0, 1, 1], [], []>} : vector<2x1152xbf16>, vector<1152x256xbf16>, vector<2x256xf32> -> vector<2x256xf32>
    %15 = arith.maximumf %11, %14 : vector<2x256xf32>
    %c0_13 = arith.constant 0 : index
    %c0_14 = arith.constant 0 : index
    %16 = vector.load %arg3[%c0_13, %c0_14] : memref<1x256xf32, #tpu.memory_space<vmem>>, vector<1x256xf32>
    %17 = vector.broadcast %16 : vector<1x256xf32> to vector<2x256xf32>
    %18 = arith.addf %15, %17 : vector<2x256xf32>
    %cst_15 = arith.constant 0.000000e+00 : f32
    %19 = vector.broadcast %cst_15 : f32 to vector<2x256xf32>
    %20 = arith.maximumf %18, %19 : vector<2x256xf32>
    %c0_16 = arith.constant 0 : index
    %c0_17 = arith.constant 0 : index
    %21 = vector.load %arg4[%c0_16, %c0_17] : memref<256x128xf32, #tpu.memory_space<vmem>>, vector<256x128xf32>
    %cst_18 = arith.constant dense<0.000000e+00> : vector<2x128xf32>
    %22 = tpu.matmul %20, %21, %cst_18 {dimension_numbers = #tpu.dot_dimension_numbers<[1], [0], [0], [1], [0, 0, 1, 1], [], []>} : vector<2x256xf32>, vector<256x128xf32>, vector<2x128xf32> -> vector<2x128xf32>
    %c0_19 = arith.constant 0 : index
    %c0_20 = arith.constant 0 : index
    %23 = vector.load %arg5[%c0_19, %c0_20] : memref<1x128xf32, #tpu.memory_space<vmem>>, vector<1x128xf32>
    %24 = vector.broadcast %23 : vector<1x128xf32> to vector<2x128xf32>
    %25 = arith.addf %22, %24 : vector<2x128xf32>
    %26 = vector.extract_strided_slice %25 {offsets = [0, 0], sizes = [2, 32], strides = [1, 1]} : vector<2x128xf32> to vector<2x32xf32>
    %27 = vector.extract_strided_slice %25 {offsets = [0, 32], sizes = [2, 32], strides = [1, 1]} : vector<2x128xf32> to vector<2x32xf32>
    %28 = arith.maximumf %26, %27 : vector<2x32xf32>
    %29 = vector.extract_strided_slice %25 {offsets = [0, 64], sizes = [2, 32], strides = [1, 1]} : vector<2x128xf32> to vector<2x32xf32>
    %30 = vector.extract_strided_slice %25 {offsets = [0, 96], sizes = [2, 32], strides = [1, 1]} : vector<2x128xf32> to vector<2x32xf32>
    %31 = arith.maximumf %29, %30 : vector<2x32xf32>
    %32 = arith.maximumf %28, %31 : vector<2x32xf32>
    %cst_21 = arith.constant 0.000000e+00 : f32
    %33 = vector.broadcast %cst_21 : f32 to vector<2x32xf32>
    %34 = arith.maximumf %32, %33 : vector<2x32xf32>
    %c0_22 = arith.constant 0 : index
    %c0_23 = arith.constant 0 : index
    %35 = vector.load %arg6[%c0_22, %c0_23] : memref<32x128xf32, #tpu.memory_space<vmem>>, vector<32x128xf32>
    %cst_24 = arith.constant dense<0.000000e+00> : vector<2x128xf32>
    %36 = tpu.matmul %34, %35, %cst_24 {dimension_numbers = #tpu.dot_dimension_numbers<[1], [0], [0], [1], [0, 0, 1, 1], [], []>} : vector<2x32xf32>, vector<32x128xf32>, vector<2x128xf32> -> vector<2x128xf32>
    %c0_25 = arith.constant 0 : index
    %c0_26 = arith.constant 0 : index
    %37 = vector.load %arg7[%c0_25, %c0_26] : memref<1x128xf32, #tpu.memory_space<vmem>>, vector<1x128xf32>
    %38 = vector.broadcast %37 : vector<1x128xf32> to vector<2x128xf32>
    %39 = arith.addf %36, %38 : vector<2x128xf32>
    %cst_27 = arith.constant 0.000000e+00 : f32
    %40 = vector.broadcast %cst_27 : f32 to vector<2x128xf32>
    %41 = arith.maximumf %39, %40 : vector<2x128xf32>
    %c0_28 = arith.constant 0 : index
    %c0_29 = arith.constant 0 : index
    %42 = vector.load %arg8[%c0_28, %c0_29] : memref<128x32xf32, #tpu.memory_space<vmem>>, vector<128x32xf32>
    %cst_30 = arith.constant dense<0.000000e+00> : vector<2x32xf32>
    %43 = tpu.matmul %41, %42, %cst_30 {dimension_numbers = #tpu.dot_dimension_numbers<[1], [0], [0], [1], [0, 0, 1, 1], [], []>} : vector<2x128xf32>, vector<128x32xf32>, vector<2x32xf32> -> vector<2x32xf32>
    %c0_31 = arith.constant 0 : index
    %c0_32 = arith.constant 0 : index
    %44 = vector.load %arg9[%c0_31, %c0_32] : memref<1x32xf32, #tpu.memory_space<vmem>>, vector<1x32xf32>
    %45 = vector.broadcast %44 : vector<1x32xf32> to vector<2x32xf32>
    %46 = arith.addf %43, %45 : vector<2x32xf32>
    %cst_33 = arith.constant 0.000000e+00 : f32
    %47 = vector.broadcast %cst_33 : f32 to vector<2x32xf32>
    %48 = arith.maximumf %46, %47 : vector<2x32xf32>
    %c0_34 = arith.constant 0 : index
    %c0_35 = arith.constant 0 : index
    %49 = vector.load %arg10[%c0_34, %c0_35] : memref<32x10xf32, #tpu.memory_space<vmem>>, vector<32x10xf32>
    %cst_36 = arith.constant dense<0.000000e+00> : vector<2x10xf32>
    %50 = tpu.matmul %48, %49, %cst_36 {dimension_numbers = #tpu.dot_dimension_numbers<[1], [0], [0], [1], [0, 0, 1, 1], [], []>} : vector<2x32xf32>, vector<32x10xf32>, vector<2x10xf32> -> vector<2x10xf32>
    %c0_37 = arith.constant 0 : index
    %c0_38 = arith.constant 0 : index
    %51 = vector.load %arg11[%c0_37, %c0_38] : memref<1x10xf32, #tpu.memory_space<vmem>>, vector<1x10xf32>
    %52 = vector.broadcast %51 : vector<1x10xf32> to vector<2x10xf32>
    %53 = arith.addf %50, %52 : vector<2x10xf32>
    %c0_39 = arith.constant 0 : index
    %c0_40 = arith.constant 0 : index
    %54 = vector.load %arg12[%c0_39, %c0_40] : memref<2x10xf32, #tpu.memory_space<vmem>>, vector<2x10xf32>
    tpu.vector_store %arg12[%c0_39, %c0_40], %53 {strides = array<i32>} : memref<2x10xf32, #tpu.memory_space<vmem>>, vector<2x10xf32>,
    return
  }
  func.func @transform_0(%arg0: i32) -> (i32, i32, i32) {
    %c0_i32 = arith.constant 0 : i32
    %c0_i32_0 = arith.constant 0 : i32
    %c0_i32_1 = arith.constant 0 : i32
    return %c0_i32, %arg0, %c0_i32_0 : i32, i32, i32
  }
  func.func @transform_1(%arg0: i32) -> (i32, i32) {
    %c0_i32 = arith.constant 0 : i32
    %c0_i32_0 = arith.constant 0 : i32
    %c0_i32_1 = arith.constant 0 : i32
    return %c0_i32, %c0_i32_0 : i32, i32
  }
  func.func @transform_2(%arg0: i32) -> (i32, i32) {
    %c0_i32 = arith.constant 0 : i32
    %c0_i32_0 = arith.constant 0 : i32
    %c0_i32_1 = arith.constant 0 : i32
    return %c0_i32, %c0_i32_0 : i32, i32
  }
  func.func @transform_3(%arg0: i32) -> (i32, i32) {
    %c0_i32 = arith.constant 0 : i32
    %c0_i32_0 = arith.constant 0 : i32
    %c0_i32_1 = arith.constant 0 : i32
    return %c0_i32, %c0_i32_0 : i32, i32
  }
  func.func @transform_4(%arg0: i32) -> (i32, i32) {
    %c0_i32 = arith.constant 0 : i32
    %c0_i32_0 = arith.constant 0 : i32
    %c0_i32_1 = arith.constant 0 : i32
    return %c0_i32, %c0_i32_0 : i32, i32
  }
  func.func @transform_5(%arg0: i32) -> (i32, i32) {
    %c0_i32 = arith.constant 0 : i32
    %c0_i32_0 = arith.constant 0 : i32
    %c0_i32_1 = arith.constant 0 : i32
    return %c0_i32, %c0_i32_0 : i32, i32
  }
  func.func @transform_6(%arg0: i32) -> (i32, i32) {
    %c0_i32 = arith.constant 0 : i32
    %c0_i32_0 = arith.constant 0 : i32
    %c0_i32_1 = arith.constant 0 : i32
    return %c0_i32, %c0_i32_0 : i32, i32
  }
  func.func @transform_7(%arg0: i32) -> (i32, i32) {
    %c0_i32 = arith.constant 0 : i32
    %c0_i32_0 = arith.constant 0 : i32
    %c0_i32_1 = arith.constant 0 : i32
    return %c0_i32, %c0_i32_0 : i32, i32
  }
  func.func @transform_8(%arg0: i32) -> (i32, i32) {
    %c0_i32 = arith.constant 0 : i32
    %c0_i32_0 = arith.constant 0 : i32
    %c0_i32_1 = arith.constant 0 : i32
    return %c0_i32, %c0_i32_0 : i32, i32
  }
  func.func @transform_9(%arg0: i32) -> (i32, i32) {
    %c0_i32 = arith.constant 0 : i32
    %c0_i32_0 = arith.constant 0 : i32
    %c0_i32_1 = arith.constant 0 : i32
    return %c0_i32, %c0_i32_0 : i32, i32
  }
  func.func @transform_10(%arg0: i32) -> (i32, i32) {
    %c0_i32 = arith.constant 0 : i32
    %c0_i32_0 = arith.constant 0 : i32
    %c0_i32_1 = arith.constant 0 : i32
    return %c0_i32, %c0_i32_0 : i32, i32
  }
  func.func @transform_11(%arg0: i32) -> (i32, i32) {
    %c0_i32 = arith.constant 0 : i32
    %c0_i32_0 = arith.constant 0 : i32
    return %arg0, %c0_i32 : i32, i32
  }
}

</mosaic_0001>

<llo_original>
// kernel: end_layer_forward.3
$region0: #{end_layer_forward.3}
  #allocation0 [shape = 'u32[]', space=smem, size = 0x4, offset = 0x4, fixed_abs, tag = 'smem constant byte address 0x4 - core index']
  #allocation1 [shape = 'u32[144,128]{1,0:T(1,128)}', space=vmem, size = 0x12000, scoped, tag = 'internal scratch']
  %s0 = inlined_call_operand.vmem [shape: bf16[4,2,75,1024], index: 0, kind: input, shape index: {}]
  %s1 = inlined_call_operand.vmem [shape: bf16[16,75], index: 1, kind: input, shape index: {}]
  %s2 = inlined_call_operand.vmem [shape: f32[16,1], index: 2, kind: input, shape index: {}]
  %s3 = inlined_call_operand.vmem [shape: bf16[2,16,1024], index: 3, kind: output, shape index: {}]
  %s4 = sld [smem:[#allocation0]]
  $region87: #{end_layer_forward.3} parent=0
    _
  %s6 = ssub.s32 1, %s4
  %s7 = scalar_select 0, %s6, %s4
  $region1: #{end_layer_forward.3} parent=0
    #allocation2 [shape = 'u8[655360]{0}', space=vmem, size = 0xa0000, scoped, tag = 'input window, operand 0']
    #allocation3 [shape = 'u8[32768]{0}', space=vmem, size = 0x8000, scoped, tag = 'output window, operand 0']
    loop: start=0, step=1, limit=6
    $region2: #{end_layer_forward.3} parent=1 // loop_pre_header
      _
    $region3: #{end_layer_forward.3} parent=1 // loop_header
      %s9 = sphi 0, %s13
      %p10 = scmp.ge.s32.totalorder %s9, 6
      %s16 = sphi 0, %s28
      %s17 = sphi 0, %s24
      %s18 = sphi 0, %s16
      %s19 = sphi 0, %s17
      %s20 = sphi 0, %s18
      %s21 = sphi 0, %s19
      %s33 = sphi 0, %s35
      %s36 = sphi 0, %s33
      %s37 = sphi 0, %s36
      %s53 = sphi 0, %s37
      %s57 = sphi 0, %s57
      %s59 = sphi 0, %s57
      %s60 = sphi 0, %s59
      %s74 = sphi 0, %s60
      %s78 = sphi 0, %s78
      %s80 = sphi 0, %s78
      %s81 = sphi 0, %s80
      %s95 = sphi 0, %s81
      %s103 = sphi 0, %s105
      %s106 = sphi 0, %s103
      %s107 = sphi 0, %s106
      %s123 = sphi 0, %s107
    $region4: #{end_layer_forward.3} parent=1 // loop_header_branch
      %12 = sbr.rel (%p10) target = $region8
    $region5: #{end_layer_forward.3} parent=1 // loop_body
      %s14 = ssub.s32 %s9, 1
      %s15 = ssub.s32 %s9, 2
      %s22 = sadd.s32 1, %s17
      %p23 = scmp.ge.s32.totalorder %s22, 2
      %s24 = scalar_select %p23, 0, %s22
      %s25 = sadd.s32 1, %s16
      %s26 = scalar_select %p23, %s25, %s16
      %p27 = scmp.ge.s32.totalorder %s26, 2
      %s28 = scalar_select %p27, 0, %s26
      %s29 = ssub.s32 %s16, %s28
      %s30 = ssub.s32 %s17, %s24
      %s31 = sor.u32 %s29, %s30
      %p32 = scmp.eq.s32.totalorder %s31, 0
      %s34 = sadd.s32 %s33, 1
      %s35 = scalar_select %p32, %s33, %s34
      %p38 = pneg %p32
      %p39 = scmp.eq.s32.totalorder %s9, 3
      %p40 = por %p38, %p39
      %p41 = scmp.ne.s32.totalorder %s33, %s36
      %p42 = scmp.eq.s32.totalorder %s9, 0
      %p43 = por %p41, %p42
      %p44 = scmp.ne.s32.totalorder %s33, %s36
      %p45 = scmp.eq.s32.totalorder %s14, 3
      %p46 = por %p44, %p45
      %p47 = scmp.ne.s32.totalorder %s36, %s37
      %p48 = scmp.eq.s32.totalorder %s14, 0
      %p49 = por %p47, %p48
      %p50 = scmp.ne.s32.totalorder %s36, %s37
      %p51 = scmp.eq.s32.totalorder %s15, 3
      %p52 = por %p50, %p51
      %p54 = scmp.ne.s32.totalorder %s37, %s53
      %p55 = scmp.eq.s32.totalorder %s15, 0
      %p56 = por %p54, %p55
      %s58 = sadd.s32 %s57, 1
      %p61 = scmp.eq.s32.totalorder %s9, 3
      %p62 = scmp.ne.s32.totalorder %s57, %s59
      %p63 = scmp.eq.s32.totalorder %s9, 0
      %p64 = por %p62, %p63
      %p65 = scmp.ne.s32.totalorder %s57, %s59
      %p66 = scmp.eq.s32.totalorder %s14, 3
      %p67 = por %p65, %p66
      %p68 = scmp.ne.s32.totalorder %s59, %s60
      %p69 = scmp.eq.s32.totalorder %s14, 0
      %p70 = por %p68, %p69
      %p71 = scmp.ne.s32.totalorder %s59, %s60
      %p72 = scmp.eq.s32.totalorder %s15, 3
      %p73 = por %p71, %p72
      %p75 = scmp.ne.s32.totalorder %s60, %s74
      %p76 = scmp.eq.s32.totalorder %s15, 0
      %p77 = por %p75, %p76
      %s79 = sadd.s32 %s78, 1
      %p82 = scmp.eq.s32.totalorder %s9, 3
      %p83 = scmp.ne.s32.totalorder %s78, %s80
      %p84 = scmp.eq.s32.totalorder %s9, 0
      %p85 = por %p83, %p84
      %p86 = scmp.ne.s32.totalorder %s78, %s80
      %p87 = scmp.eq.s32.totalorder %s14, 3
      %p88 = por %p86, %p87
      %p89 = scmp.ne.s32.totalorder %s80, %s81
      %p90 = scmp.eq.s32.totalorder %s14, 0
      %p91 = por %p89, %p90
      %p92 = scmp.ne.s32.totalorder %s80, %s81
      %p93 = scmp.eq.s32.totalorder %s15, 3
      %p94 = por %p92, %p93
      %p96 = scmp.ne.s32.totalorder %s81, %s95
      %p97 = scmp.eq.s32.totalorder %s15, 0
      %p98 = por %p96, %p97
      %s99 = ssub.s32 %s16, %s28
      %s100 = ssub.s32 %s17, %s24
      %s101 = sor.u32 %s99, %s100
      %p102 = scmp.eq.s32.totalorder %s101, 0
      %s104 = sadd.s32 %s103, 1
      %s105 = scalar_select %p102, %s103, %s104
      %p108 = pneg %p102
      %p109 = scmp.eq.s32.totalorder %s9, 3
      %p110 = por %p108, %p109
      %p111 = scmp.ne.s32.totalorder %s103, %s106
      %p112 = scmp.eq.s32.totalorder %s9, 0
      %p113 = por %p111, %p112
      %p114 = scmp.ne.s32.totalorder %s103, %s106
      %p115 = scmp.eq.s32.totalorder %s14, 3
      %p116 = por %p114, %p115
      %p117 = scmp.ne.s32.totalorder %s106, %s107
      %p118 = scmp.eq.s32.totalorder %s14, 0
      %p119 = por %p117, %p118
      %p120 = scmp.ne.s32.totalorder %s106, %s107
      %p121 = scmp.eq.s32.totalorder %s15, 3
      %p122 = por %p120, %p121
      %p124 = scmp.ne.s32.totalorder %s107, %s123
      %p125 = scmp.eq.s32.totalorder %s15, 0
      %p126 = por %p124, %p125
      %p127 = scmp.le.s32.totalorder 1, %s9
      %p128 = scmp.lt.s32.totalorder %s9, 5
      %p129 = pnand %p127, %p128
      %p130 = pneg %p129
      // Predicated region
      $region9: #{end_layer_forward.3} parent=5 // pred_check
        _
      $region10: #{end_layer_forward.3} parent=5 // pred_check_branch
        %132 = sbr.rel (%p129) target = $region12
      $region11: #{end_layer_forward.3} parent=5 // pred_region
        %s133 = ssub.s32 %s9, 1
        // Predicated region
        $region13: #{end_layer_forward.3} parent=11 // pred_check
          %p134 = pneg %p70
        $region14: #{end_layer_forward.3} parent=11 // pred_check_branch
          %136 = sbr.rel (%p134) target = $region16
        $region15: #{end_layer_forward.3} parent=11 // pred_region
          _
        $region16: #{end_layer_forward.3} parent=11 // pred_fallthru
          _
        // Predicated region
        $region17: #{end_layer_forward.3} parent=11 // pred_check
          %p137 = pneg %p91
        $region18: #{end_layer_forward.3} parent=11 // pred_check_branch
          %139 = sbr.rel (%p137) target = $region20
        $region19: #{end_layer_forward.3} parent=11 // pred_region
          _
        $region20: #{end_layer_forward.3} parent=11 // pred_fallthru
          _
      $region12: #{end_layer_forward.3} parent=5 // pred_fallthru
        _
      %p140 = scmp.lt.s32.totalorder %s9, 4
      // Predicated region
      $region21: #{end_layer_forward.3} parent=5 // pred_check
        %p141 = pneg %p140
      $region22: #{end_layer_forward.3} parent=5 // pred_check_branch
        %143 = sbr.rel (%p141) target = $region24
      $region23: #{end_layer_forward.3} parent=5 // pred_region
        // Predicated region
        $region25: #{end_layer_forward.3} parent=23 // pred_check
          %p144 = pneg %p43
        $region26: #{end_layer_forward.3} parent=23 // pred_check_branch
          %146 = sbr.rel (%p144) target = $region28
        $region27: #{end_layer_forward.3} parent=23 // pred_region
          %s147 = sand.u32 %s33, 1
          %s148 = sand.u32 %s33, 1
          %s149 = smul.addr %s148, 640
          %s150 = scalar_lea.vmem [#allocation2], %s149
          %s151 = smul.u32 4, %s17
          %s152 = smul.addr %s16, 80
          %s153 = sadd.s32 %s151, %s152
          %s154 = smul.addr %s153, 4
          %s155 = scalar_lea.vmem %s0, %s154
          // Predicated region
          $region29: #{end_layer_forward.3} parent=27 // pred_check
            _
          $region30: #{end_layer_forward.3} parent=27 // pred_check_branch
            %157 = sbr.rel (0) target = $region32
          $region31: #{end_layer_forward.3} parent=27 // pred_region
            // Predicated region
            $region33: #{end_layer_forward.3} parent=31 // pred_check
              _
            $region34: #{end_layer_forward.3} parent=31 // pred_check_branch
              %159 = sbr.rel (0) target = $region36
            $region35: #{end_layer_forward.3} parent=31 // pred_region
              loop: start=0, step=1, limit=1
              $region37: #{end_layer_forward.3} parent=35 // loop_pre_header
                _
              $region38: #{end_layer_forward.3} parent=35 // loop_header
                %s161 = sphi 0, %s165
                %p162 = scmp.ge.s32.totalorder %s161, 1
                %s166 = sphi %s155, %s155
                %s167 = sphi %s150, %s150
              $region39: #{end_layer_forward.3} parent=35 // loop_header_branch
                %164 = sbr.rel (%p162) target = $region43
              $region40: #{end_layer_forward.3} parent=35 // loop_body
                %v168 = vld [vmem:[%s166] sm:$0xff]
                %169 = vst [vmem:[%s167] sm:$0xff] %v168
                %v170 = vld [vmem:[%s166 + $0x8] sm:$0xff]
                %171 = vst [vmem:[%s167 + $0x8] sm:$0xff] %v170
                %v172 = vld [vmem:[%s166 + $0x20] sm:$0xff]
                %173 = vst [vmem:[%s167 + $0x10] sm:$0xff] %v172
                %v174 = vld [vmem:[%s166 + $0x28] sm:$0xff]
                %175 = vst [vmem:[%s167 + $0x18] sm:$0xff] %v174
                %v176 = vld [vmem:[%s166 + $0x40] sm:$0xff]
                %177 = vst [vmem:[%s167 + $0x20] sm:$0xff] %v176
                %v178 = vld [vmem:[%s166 + $0x48] sm:$0xff]
                %179 = vst [vmem:[%s167 + $0x28] sm:$0xff] %v178
                %v180 = vld [vmem:[%s166 + $0x60] sm:$0xff]
                %181 = vst [vmem:[%s167 + $0x30] sm:$0xff] %v180
                %v182 = vld [vmem:[%s166 + $0x68] sm:$0xff]
                %183 = vst [vmem:[%s167 + $0x38] sm:$0xff] %v182
                %v184 = vld [vmem:[%s166 + $0x80] sm:$0xff]
                %185 = vst [vmem:[%s167 + $0x40] sm:$0xff] %v184
                %v186 = vld [vmem:[%s166 + $0x88] sm:$0xff]
                %187 = vst [vmem:[%s167 + $0x48] sm:$0xff] %v186
                %v188 = vld [vmem:[%s166 + $0xa0] sm:$0xff]
                %189 = vst [vmem:[%s167 + $0x50] sm:$0xff] %v188
                %v190 = vld [vmem:[%s166 + $0xa8] sm:$0xff]
                %191 = vst [vmem:[%s167 + $0x58] sm:$0xff] %v190
                %v192 = vld [vmem:[%s166 + $0xc0] sm:$0xff]
                %193 = vst [vmem:[%s167 + $0x60] sm:$0xff] %v192
                %v194 = vld [vmem:[%s166 + $0xc8] sm:$0xff]
                %195 = vst [vmem:[%s167 + $0x68] sm:$0xff] %v194
                %v196 = vld [vmem:[%s166 + $0xe0] sm:$0xff]
                %197 = vst [vmem:[%s167 + $0x70] sm:$0xff] %v196
                %v198 = vld [vmem:[%s166 + $0xe8] sm:$0xff]
                %199 = vst [vmem:[%s167 + $0x78] sm:$0xff] %v198
                %v200 = vld [vmem:[%s166 + $0x100] sm:$0xff]
                %201 = vst [vmem:[%s167 + $0x80] sm:$0xff] %v200
                %v202 = vld [vmem:[%s166 + $0x108] sm:$0xff]
                %203 = vst [vmem:[%s167 + $0x88] sm:$0xff] %v202
                %v204 = vld [vmem:[%s166 + $0x120] sm:$0xff]
                %205 = vst [vmem:[%s167 + $0x90] sm:$0xff] %v204
                %v206 = vld [vmem:[%s166 + $0x128] sm:$0xff]
                %207 = vst [vmem:[%s167 + $0x98] sm:$0xff] %v206
                %v208 = vld [vmem:[%s166 + $0x280] sm:$0xff]
                %209 = vst [vmem:[%s167 + $0xa0] sm:$0xff] %v208
                %v210 = vld [vmem:[%s166 + $0x288] sm:$0xff]
                %211 = vst [vmem:[%s167 + $0xa8] sm:$0xff] %v210
                %v212 = vld [vmem:[%s166 + $0x2a0] sm:$0xff]
                %213 = vst [vmem:[%s167 + $0xb0] sm:$0xff] %v212
                %v214 = vld [vmem:[%s166 + $0x2a8] sm:$0xff]
                %215 = vst [vmem:[%s167 + $0xb8] sm:$0xff] %v214
                %v216 = vld [vmem:[%s166 + $0x2c0] sm:$0xff]
                %217 = vst [vmem:[%s167 + $0xc0] sm:$0xff] %v216
                %v218 = vld [vmem:[%s166 + $0x2c8] sm:$0xff]
                %219 = vst [vmem:[%s167 + $0xc8] sm:$0xff] %v218
                %v220 = vld [vmem:[%s166 + $0x2e0] sm:$0xff]
                %221 = vst [vmem:[%s167 + $0xd0] sm:$0xff] %v220
                %v222 = vld [vmem:[%s166 + $0x2e8] sm:$0xff]
                %223 = vst [vmem:[%s167 + $0xd8] sm:$0xff] %v222
                %v224 = vld [vmem:[%s166 + $0x300] sm:$0xff]
                %225 = vst [vmem:[%s167 + $0xe0] sm:$0xff] %v224
                %v226 = vld [vmem:[%s166 + $0x308] sm:$0xff]
                %227 = vst [vmem:[%s167 + $0xe8] sm:$0xff] %v226
                %v228 = vld [vmem:[%s166 + $0x320] sm:$0xff]
                %229 = vst [vmem:[%s167 + $0xf0] sm:$0xff] %v228
                %v230 = vld [vmem:[%s166 + $0x328] sm:$0xff]
                %231 = vst [vmem:[%s167 + $0xf8] sm:$0xff] %v230
                %v232 = vld [vmem:[%s166 + $0x340] sm:$0xff]
                %233 = vst [vmem:[%s167 + $0x100] sm:$0xff] %v232
                %v234 = vld [vmem:[%s166 + $0x348] sm:$0xff]
                %235 = vst [vmem:[%s167 + $0x108] sm:$0xff] %v234
                %v236 = vld [vmem:[%s166 + $0x360] sm:$0xff]
                %237 = vst [vmem:[%s167 + $0x110] sm:$0xff] %v236
                %v238 = vld [vmem:[%s166 + $0x368] sm:$0xff]
                %239 = vst [vmem:[%s167 + $0x118] sm:$0xff] %v238
                %v240 = vld [vmem:[%s166 + $0x380] sm:$0xff]
                %241 = vst [vmem:[%s167 + $0x120] sm:$0xff] %v240
                %v242 = vld [vmem:[%s166 + $0x388] sm:$0xff]
                %243 = vst [vmem:[%s167 + $0x128] sm:$0xff] %v242
                %v244 = vld [vmem:[%s166 + $0x3a0] sm:$0xff]
                %245 = vst [vmem:[%s167 + $0x130] sm:$0xff] %v244
                %v246 = vld [vmem:[%s166 + $0x3a8] sm:$0xff]
                %247 = vst [vmem:[%s167 + $0x138] sm:$0xff] %v246
                %v248 = vld [vmem:[%s166 + $0x500] sm:$0xff]
                %249 = vst [vmem:[%s167 + $0x140] sm:$0xff] %v248
                %v250 = vld [vmem:[%s166 + $0x508] sm:$0xff]
                %251 = vst [vmem:[%s167 + $0x148] sm:$0xff] %v250
                %v252 = vld [vmem:[%s166 + $0x520] sm:$0xff]
                %253 = vst [vmem:[%s167 + $0x150] sm:$0xff] %v252
                %v254 = vld [vmem:[%s166 + $0x528] sm:$0xff]
                %255 = vst [vmem:[%s167 + $0x158] sm:$0xff] %v254
                %v256 = vld [vmem:[%s166 + $0x540] sm:$0xff]
                %257 = vst [vmem:[%s167 + $0x160] sm:$0xff] %v256
                %v258 = vld [vmem:[%s166 + $0x548] sm:$0xff]
                %259 = vst [vmem:[%s167 + $0x168] sm:$0xff] %v258
                %v260 = vld [vmem:[%s166 + $0x560] sm:$0xff]
                %261 = vst [vmem:[%s167 + $0x170] sm:$0xff] %v260
                %v262 = vld [vmem:[%s166 + $0x568] sm:$0xff]
                %263 = vst [vmem:[%s167 + $0x178] sm:$0xff] %v262
                %v264 = vld [vmem:[%s166 + $0x580] sm:$0xff]
                %265 = vst [vmem:[%s167 + $0x180] sm:$0xff] %v264
                %v266 = vld [vmem:[%s166 + $0x588] sm:$0xff]
                %267 = vst [vmem:[%s167 + $0x188] sm:$0xff] %v266
                %v268 = vld [vmem:[%s166 + $0x5a0] sm:$0xff]
                %269 = vst [vmem:[%s167 + $0x190] sm:$0xff] %v268
                %v270 = vld [vmem:[%s166 + $0x5a8] sm:$0xff]
                %271 = vst [vmem:[%s167 + $0x198] sm:$0xff] %v270
                %v272 = vld [vmem:[%s166 + $0x5c0] sm:$0xff]
                %273 = vst [vmem:[%s167 + $0x1a0] sm:$0xff] %v272
                %v274 = vld [vmem:[%s166 + $0x5c8] sm:$0xff]
                %275 = vst [vmem:[%s167 + $0x1a8] sm:$0xff] %v274
                %v276 = vld [vmem:[%s166 + $0x5e0] sm:$0xff]
                %277 = vst [vmem:[%s167 + $0x1b0] sm:$0xff] %v276
                %v278 = vld [vmem:[%s166 + $0x5e8] sm:$0xff]
                %279 = vst [vmem:[%s167 + $0x1b8] sm:$0xff] %v278
                %v280 = vld [vmem:[%s166 + $0x600] sm:$0xff]
                %281 = vst [vmem:[%s167 + $0x1c0] sm:$0xff] %v280
                %v282 = vld [vmem:[%s166 + $0x608] sm:$0xff]
                %283 = vst [vmem:[%s167 + $0x1c8] sm:$0xff] %v282
                %v284 = vld [vmem:[%s166 + $0x620] sm:$0xff]
                %285 = vst [vmem:[%s167 + $0x1d0] sm:$0xff] %v284
                %v286 = vld [vmem:[%s166 + $0x628] sm:$0xff]
                %287 = vst [vmem:[%s167 + $0x1d8] sm:$0xff] %v286
                %v288 = vld [vmem:[%s166 + $0x780] sm:$0xff]
                %289 = vst [vmem:[%s167 + $0x1e0] sm:$0xff] %v288
                %v290 = vld [vmem:[%s166 + $0x788] sm:$0xff]
                %291 = vst [vmem:[%s167 + $0x1e8] sm:$0xff] %v290
                %v292 = vld [vmem:[%s166 + $0x7a0] sm:$0xff]
                %293 = vst [vmem:[%s167 + $0x1f0] sm:$0xff] %v292
                %v294 = vld [vmem:[%s166 + $0x7a8] sm:$0xff]
                %295 = vst [vmem:[%s167 + $0x1f8] sm:$0xff] %v294
                %v296 = vld [vmem:[%s166 + $0x7c0] sm:$0xff]
                %297 = vst [vmem:[%s167 + $0x200] sm:$0xff] %v296
                %v298 = vld [vmem:[%s166 + $0x7c8] sm:$0xff]
                %299 = vst [vmem:[%s167 + $0x208] sm:$0xff] %v298
                %v300 = vld [vmem:[%s166 + $0x7e0] sm:$0xff]
                %301 = vst [vmem:[%s167 + $0x210] sm:$0xff] %v300
                %v302 = vld [vmem:[%s166 + $0x7e8] sm:$0xff]
                %303 = vst [vmem:[%s167 + $0x218] sm:$0xff] %v302
                %v304 = vld [vmem:[%s166 + $0x800] sm:$0xff]
                %305 = vst [vmem:[%s167 + $0x220] sm:$0xff] %v304
                %v306 = vld [vmem:[%s166 + $0x808] sm:$0xff]
                %307 = vst [vmem:[%s167 + $0x228] sm:$0xff] %v306
                %v308 = vld [vmem:[%s166 + $0x820] sm:$0xff]
                %309 = vst [vmem:[%s167 + $0x230] sm:$0xff] %v308
                %v310 = vld [vmem:[%s166 + $0x828] sm:$0xff]
                %311 = vst [vmem:[%s167 + $0x238] sm:$0xff] %v310
                %v312 = vld [vmem:[%s166 + $0x840] sm:$0xff]
                %313 = vst [vmem:[%s167 + $0x240] sm:$0xff] %v312
                %v314 = vld [vmem:[%s166 + $0x848] sm:$0xff]
                %315 = vst [vmem:[%s167 + $0x248] sm:$0xff] %v314
                %v316 = vld [vmem:[%s166 + $0x860] sm:$0xff]
                %317 = vst [vmem:[%s167 + $0x250] sm:$0xff] %v316
                %v318 = vld [vmem:[%s166 + $0x868] sm:$0xff]
                %319 = vst [vmem:[%s167 + $0x258] sm:$0xff] %v318
                %v320 = vld [vmem:[%s166 + $0x880] sm:$0xff]
                %321 = vst [vmem:[%s167 + $0x260] sm:$0xff] %v320
                %v322 = vld [vmem:[%s166 + $0x888] sm:$0xff]
                %323 = vst [vmem:[%s167 + $0x268] sm:$0xff] %v322
                %v324 = vld [vmem:[%s166 + $0x8a0] sm:$0xff]
                %325 = vst [vmem:[%s167 + $0x270] sm:$0xff] %v324
                %v326 = vld [vmem:[%s166 + $0x8a8] sm:$0xff]
                %327 = vst [vmem:[%s167 + $0x278] sm:$0xff] %v326
              $region41: #{end_layer_forward.3} parent=35 // loop_footer
                %s165 = sadd.s32 1, %s161
              $region42: #{end_layer_forward.3} parent=35 // loop_footer_branch
                %160 = sbr.rel target = $region38
              $region43: #{end_layer_forward.3} parent=35 // loop_exit
                _
            $region36: #{end_layer_forward.3} parent=31 // pred_fallthru
              _
            // Predicated region
            $region44: #{end_layer_forward.3} parent=31 // pred_check
              _
            $region45: #{end_layer_forward.3} parent=31 // pred_check_branch
              %329 = sbr.rel target = $region47
            $region46: #{end_layer_forward.3} parent=31 // pred_region
              _
            $region47: #{end_layer_forward.3} parent=31 // pred_fallthru
              _
          $region32: #{end_layer_forward.3} parent=27 // pred_fallthru
            _
          %330 = vnop
        $region28: #{end_layer_forward.3} parent=23 // pred_fallthru
          _
      $region24: #{end_layer_forward.3} parent=5 // pred_fallthru
        _
      %p331 = scmp.le.s32.totalorder 1, %s9
      %p332 = scmp.lt.s32.totalorder %s9, 5
      %p333 = pnand %p331, %p332
      %p334 = pneg %p333
      // Predicated region
      $region48: #{end_layer_forward.3} parent=5 // pred_check
        _
      $region49: #{end_layer_forward.3} parent=5 // pred_check_branch
        %336 = sbr.rel (%p333) target = $region51
      $region50: #{end_layer_forward.3} parent=5 // pred_region
        %s337 = ssub.s32 %s9, 1
        %s338 = sand.u32 %s36, 1
        %s339 = sand.u32 %s36, 1
        %s340 = smul.addr %s339, 640
        %s341 = scalar_lea.vmem [#allocation2], %s340
        // Predicated region
        $region52: #{end_layer_forward.3} parent=50 // pred_check
          %p342 = pneg %p49
        $region53: #{end_layer_forward.3} parent=50 // pred_check_branch
          %344 = sbr.rel (%p342) target = $region55
        $region54: #{end_layer_forward.3} parent=50 // pred_region
          _
        $region55: #{end_layer_forward.3} parent=50 // pred_fallthru
          _
        %s345 = sand.u32 %s36, 1
        %s346 = sand.u32 %s36, 1
        %s347 = smul.addr %s346, 640
        %s348 = scalar_lea.vmem [#allocation2], %s347
        %p349 = pneg %p49
        %p350 = pneg %p46
        %p351 = pneg %p70
        %p352 = pneg %p67
        %p353 = pneg %p91
        %p354 = pneg %p88
        %p355 = pneg %p119
        %p356 = pneg %p116
        %s357 = sand.u32 %s106, 1
        %s358 = sand.u32 %s106, 1
        %s359 = smul.addr %s358, 32
        %s360 = scalar_lea.vmem [#allocation3], %s359
        %s361 = smul.u32 4, %s19
        %s362 = smul.u32 4, %s19
        %v364 = vld [vmem:[%s1] sm:$0xf]
        %v365 = vld [vmem:[%s1 + $0x4] sm:$0xf]
        %v366 = vld [vmem:[%s341] sm:$0xff]
        %v367 = vld [vmem:[%s341 + $0x8] sm:$0xff]
        %v368 = vld [vmem:[%s341 + $0x10] sm:$0xff]
        %v369 = vld [vmem:[%s341 + $0x18] sm:$0xff]
        %v370 = vld [vmem:[%s341 + $0x20] sm:$0xff]
        %v371 = vld [vmem:[%s341 + $0x28] sm:$0xff]
        %v372 = vld [vmem:[%s341 + $0x30] sm:$0xff]
        %v373 = vld [vmem:[%s341 + $0x38] sm:$0xff]
        %v374 = vld [vmem:[%s341 + $0x40] sm:$0xff]
        %v375 = vld [vmem:[%s341 + $0x48] sm:$0xff]
        %v376 = vld [vmem:[%s341 + $0x50] sm:$0xff]
        %v377 = vld [vmem:[%s341 + $0x58] sm:$0xff]
        %v378 = vld [vmem:[%s341 + $0x60] sm:$0xff]
        %v379 = vld [vmem:[%s341 + $0x68] sm:$0xff]
        %v380 = vld [vmem:[%s341 + $0x70] sm:$0xff]
        %v381 = vld [vmem:[%s341 + $0x78] sm:$0xff]
        %v382 = vld [vmem:[%s341 + $0x80] sm:$0xff]
        %v383 = vld [vmem:[%s341 + $0x88] sm:$0xff]
        %v384 = vld [vmem:[%s341 + $0x90] sm:$0x33]
        %v385 = vld [vmem:[%s341 + $0x98] sm:$0x33]
        %v388 = vunpack.c.l.b16 %v364
        %v389 = vunpack.c.l.b16 %v365
        %v390 = vpack.c.b16 %v389, %v388
        %v411 = vunpack.c.l.b16 %v366
        %v412 = vunpack.c.h.b16 %v366
        %v413 = vunpack.c.l.b16 %v367
        %v414 = vunpack.c.h.b16 %v367
        %v415 = vunpack.c.l.b16 %v368
        %v416 = vunpack.c.h.b16 %v368
        %v417 = vunpack.c.l.b16 %v369
        %v418 = vunpack.c.h.b16 %v369
        %v419 = vunpack.c.l.b16 %v370
        %v420 = vunpack.c.h.b16 %v370
        %v421 = vunpack.c.l.b16 %v371
        %v422 = vunpack.c.h.b16 %v371
        %v423 = vunpack.c.l.b16 %v372
        %v424 = vunpack.c.h.b16 %v372
        %v425 = vunpack.c.l.b16 %v373
        %v426 = vunpack.c.h.b16 %v373
        %v427 = vunpack.c.l.b16 %v374
        %v428 = vunpack.c.h.b16 %v374
        %v429 = vunpack.c.l.b16 %v375
        %v430 = vunpack.c.h.b16 %v375
        %v431 = vunpack.c.l.b16 %v376
        %v432 = vunpack.c.h.b16 %v376
        %v433 = vunpack.c.l.b16 %v377
        %v434 = vunpack.c.h.b16 %v377
        %v435 = vunpack.c.l.b16 %v378
        %v436 = vunpack.c.h.b16 %v378
        %v437 = vunpack.c.l.b16 %v379
        %v438 = vunpack.c.h.b16 %v379
        %v439 = vunpack.c.l.b16 %v380
        %v440 = vunpack.c.h.b16 %v380
        %v441 = vunpack.c.l.b16 %v381
        %v442 = vunpack.c.h.b16 %v381
        %v443 = vunpack.c.l.b16 %v382
        %v444 = vunpack.c.h.b16 %v382
        %v445 = vunpack.c.l.b16 %v383
        %v446 = vunpack.c.h.b16 %v383
        %v447 = vunpack.c.l.b16 %v384
        %v448 = vunpack.c.h.b16 %v384
        %v449 = vunpack.c.l.b16 %v385
        %v450 = vunpack.c.h.b16 %v385
        %v451 = vpack.c.b16 %v415, %v411
        %v452 = vpack.c.b16 %v416, %v412
        %v453 = vpack.c.b16 %v417, %v413
        %v454 = vpack.c.b16 %v418, %v414
        %v455 = vpack.c.b16 %v423, %v419
        %v456 = vpack.c.b16 %v424, %v420
        %v457 = vpack.c.b16 %v425, %v421
        %v458 = vpack.c.b16 %v426, %v422
        %v459 = vpack.c.b16 %v431, %v427
        %v460 = vpack.c.b16 %v432, %v428
        %v461 = vpack.c.b16 %v433, %v429
        %v462 = vpack.c.b16 %v434, %v430
        %v463 = vpack.c.b16 %v439, %v435
        %v464 = vpack.c.b16 %v440, %v436
        %v465 = vpack.c.b16 %v441, %v437
        %v466 = vpack.c.b16 %v442, %v438
        %v467 = vpack.c.b16 %v447, %v443
        %v468 = vpack.c.b16 %v448, %v444
        %v469 = vpack.c.b16 %v449, %v445
        %v470 = vpack.c.b16 %v450, %v446
        %vm487 = vcmask 613376
        %v489 = vsel %vm487, %v390, 0
        %vm491 = vcmask 1044480
        %vm492 = vcmask 1045504
        %v493 = vsel %vm491, 4294967295, 65535
        %v494 = vsel %vm492, %v493, 0
        %v496 = vand.u32 %v467, %v494
        %v499 = vand.u32 %v468, %v494
        %v502 = vand.u32 %v469, %v494
        %v505 = vand.u32 %v470, %v494
        %507 = vmatprep.subr.bf16.mxu0 %v452
        %508 = vmatpush1.bf16.msra.mxu0 %v451
        %509 = vmatprep.subr.bf16.mxu0 %v456
        %510 = vmatpush1.bf16.msra.mxu0 %v455
        %511 = vmatprep.subr.bf16.mxu0 %v460
        %512 = vmatpush1.bf16.msra.mxu0 %v459
        %513 = vmatprep.subr.bf16.mxu0 %v464
        %514 = vmatpush1.bf16.msra.mxu0 %v463
        %515 = vmatprep.subr.bf16.mxu0 %v499
        %516 = vmatpush1.bf16.msra.mxu0 %v496
        %517 = vmatprep.subr.bf16.mxu0 0
        %518 = vmatpush1.bf16.msra.mxu0 0
        %519 = vmatprep.subr.bf16.mxu0 0
        %520 = vmatpush1.bf16.msra.mxu0 0
        %521 = vmatprep.subr.bf16.mxu0 0
        %522 = vmatpush1.bf16.msra.mxu0 0
        %523 = vmatprep.subr.bf16.mxu0 0
        %524 = vmatpush1.bf16.msra.mxu0 0
        %525 = vmatprep.subr.bf16.mxu0 0
        %526 = vmatpush1.bf16.msra.mxu0 0
        %527 = vmatprep.subr.bf16.mxu0 0
        %528 = vmatpush1.bf16.msra.mxu0 0
        %529 = vmatprep.subr.bf16.mxu0 0
        %530 = vmatpush1.bf16.msra.mxu0 0
        %531 = vmatprep.subr.bf16.mxu0 0
        %532 = vmatpush1.bf16.msra.mxu0 0
        %533 = vmatprep.subr.bf16.mxu0 0
        %534 = vmatpush1.bf16.msra.mxu0 0
        %535 = vmatprep.subr.bf16.mxu0 0
        %536 = vmatpush1.bf16.msra.mxu0 0
        %537 = vmatprep.subr.bf16.mxu0 0
        %538 = vmatpush1.bf16.msra.mxu0 0
        %539 = vmatprep.mubr.bf16.mxu0 0
        %540 = vmatmul.mubr.bf16.gmra.mrb[0].mxu0 %v489
        %v541 = vpop.f32.mrb[0].mxu0
        %v542 = vadd.f32 0.0, %v541
        %v543 = vpop.f32.mrb[0].mxu0
        %v544 = vadd.f32 0.0, %v543
        %v545 = vpop.f32.mrb[0].mxu0
        %v546 = vadd.f32 0.0, %v545
        %v547 = vpop.f32.mrb[0].mxu0
        %v548 = vadd.f32 0.0, %v547
        %549 = vdwg.mxu0
        %550 = vmatprep.subr.bf16.mxu0 %v454
        %551 = vmatpush1.bf16.msra.mxu0 %v453
        %552 = vmatprep.subr.bf16.mxu0 %v458
        %553 = vmatpush1.bf16.msra.mxu0 %v457
        %554 = vmatprep.subr.bf16.mxu0 %v462
        %555 = vmatpush1.bf16.msra.mxu0 %v461
        %556 = vmatprep.subr.bf16.mxu0 %v466
        %557 = vmatpush1.bf16.msra.mxu0 %v465
        %558 = vmatprep.subr.bf16.mxu0 %v505
        %559 = vmatpush1.bf16.msra.mxu0 %v502
        %560 = vmatprep.subr.bf16.mxu0 0
        %561 = vmatpush1.bf16.msra.mxu0 0
        %562 = vmatprep.subr.bf16.mxu0 0
        %563 = vmatpush1.bf16.msra.mxu0 0
        %564 = vmatprep.subr.bf16.mxu0 0
        %565 = vmatpush1.bf16.msra.mxu0 0
        %566 = vmatprep.subr.bf16.mxu0 0
        %567 = vmatpush1.bf16.msra.mxu0 0
        %568 = vmatprep.subr.bf16.mxu0 0
        %569 = vmatpush1.bf16.msra.mxu0 0
        %570 = vmatprep.subr.bf16.mxu0 0
        %571 = vmatpush1.bf16.msra.mxu0 0
        %572 = vmatprep.subr.bf16.mxu0 0
        %573 = vmatpush1.bf16.msra.mxu0 0
        %574 = vmatprep.subr.bf16.mxu0 0
        %575 = vmatpush1.bf16.msra.mxu0 0
        %576 = vmatprep.subr.bf16.mxu0 0
        %577 = vmatpush1.bf16.msra.mxu0 0
        %578 = vmatprep.subr.bf16.mxu0 0
        %579 = vmatpush1.bf16.msra.mxu0 0
        %580 = vmatprep.subr.bf16.mxu0 0
        %581 = vmatpush1.bf16.msra.mxu0 0
        %582 = vmatprep.mubr.bf16.mxu0 0
        %583 = vmatmul.mubr.bf16.gmra.mrb[0].mxu0 %v489
        %v584 = vpop.f32.mrb[0].mxu0
        %v585 = vadd.f32 0.0, %v584
        %v586 = vpop.f32.mrb[0].mxu0
        %v587 = vadd.f32 0.0, %v586
        %v588 = vpop.f32.mrb[0].mxu0
        %v589 = vadd.f32 0.0, %v588
        %v590 = vpop.f32.mrb[0].mxu0
        %v591 = vadd.f32 0.0, %v590
        %592 = vdwg.mxu0
        %s593 = scalar_lea.vmem %s341, 160 [#allocation2]
        %v594 = vld [vmem:[%s593] sm:$0xff]
        %v595 = vld [vmem:[%s593 + $0x8] sm:$0xff]
        %v596 = vld [vmem:[%s593 + $0x10] sm:$0xff]
        %v597 = vld [vmem:[%s593 + $0x18] sm:$0xff]
        %v598 = vld [vmem:[%s593 + $0x20] sm:$0xff]
        %v599 = vld [vmem:[%s593 + $0x28] sm:$0xff]
        %v600 = vld [vmem:[%s593 + $0x30] sm:$0xff]
        %v601 = vld [vmem:[%s593 + $0x38] sm:$0xff]
        %v602 = vld [vmem:[%s593 + $0x40] sm:$0xff]
        %v603 = vld [vmem:[%s593 + $0x48] sm:$0xff]
        %v604 = vld [vmem:[%s593 + $0x50] sm:$0xff]
        %v605 = vld [vmem:[%s593 + $0x58] sm:$0xff]
        %v606 = vld [vmem:[%s593 + $0x60] sm:$0xff]
        %v607 = vld [vmem:[%s593 + $0x68] sm:$0xff]
        %v608 = vld [vmem:[%s593 + $0x70] sm:$0xff]
        %v609 = vld [vmem:[%s593 + $0x78] sm:$0xff]
        %v610 = vld [vmem:[%s593 + $0x80] sm:$0xff]
        %v611 = vld [vmem:[%s593 + $0x88] sm:$0xff]
        %v612 = vld [vmem:[%s593 + $0x90] sm:$0x33]
        %v613 = vld [vmem:[%s593 + $0x98] sm:$0x33]
        %v634 = vunpack.c.l.b16 %v594
        %v635 = vunpack.c.h.b16 %v594
        %v636 = vunpack.c.l.b16 %v595
        %v637 = vunpack.c.h.b16 %v595
        %v638 = vunpack.c.l.b16 %v596
        %v639 = vunpack.c.h.b16 %v596
        %v640 = vunpack.c.l.b16 %v597
        %v641 = vunpack.c.h.b16 %v597
        %v642 = vunpack.c.l.b16 %v598
        %v643 = vunpack.c.h.b16 %v598
        %v644 = vunpack.c.l.b16 %v599
        %v645 = vunpack.c.h.b16 %v599
        %v646 = vunpack.c.l.b16 %v600
        %v647 = vunpack.c.h.b16 %v600
        %v648 = vunpack.c.l.b16 %v601
        %v649 = vunpack.c.h.b16 %v601
        %v650 = vunpack.c.l.b16 %v602
        %v651 = vunpack.c.h.b16 %v602
        %v652 = vunpack.c.l.b16 %v603
        %v653 = vunpack.c.h.b16 %v603
        %v654 = vunpack.c.l.b16 %v604
        %v655 = vunpack.c.h.b16 %v604
        %v656 = vunpack.c.l.b16 %v605
        %v657 = vunpack.c.h.b16 %v605
        %v658 = vunpack.c.l.b16 %v606
        %v659 = vunpack.c.h.b16 %v606
        %v660 = vunpack.c.l.b16 %v607
        %v661 = vunpack.c.h.b16 %v607
        %v662 = vunpack.c.l.b16 %v608
        %v663 = vunpack.c.h.b16 %v608
        %v664 = vunpack.c.l.b16 %v609
        %v665 = vunpack.c.h.b16 %v609
        %v666 = vunpack.c.l.b16 %v610
        %v667 = vunpack.c.h.b16 %v610
        %v668 = vunpack.c.l.b16 %v611
        %v669 = vunpack.c.h.b16 %v611
        %v670 = vunpack.c.l.b16 %v612
        %v671 = vunpack.c.h.b16 %v612
        %v672 = vunpack.c.l.b16 %v613
        %v673 = vunpack.c.h.b16 %v613
        %v674 = vpack.c.b16 %v638, %v634
        %v675 = vpack.c.b16 %v639, %v635
        %v676 = vpack.c.b16 %v640, %v636
        %v677 = vpack.c.b16 %v641, %v637
        %v678 = vpack.c.b16 %v646, %v642
        %v679 = vpack.c.b16 %v647, %v643
        %v680 = vpack.c.b16 %v648, %v644
        %v681 = vpack.c.b16 %v649, %v645
        %v682 = vpack.c.b16 %v654, %v650
        %v683 = vpack.c.b16 %v655, %v651
        %v684 = vpack.c.b16 %v656, %v652
        %v685 = vpack.c.b16 %v657, %v653
        %v686 = vpack.c.b16 %v662, %v658
        %v687 = vpack.c.b16 %v663, %v659
        %v688 = vpack.c.b16 %v664, %v660
        %v689 = vpack.c.b16 %v665, %v661
        %v690 = vpack.c.b16 %v670, %v666
        %v691 = vpack.c.b16 %v671, %v667
        %v692 = vpack.c.b16 %v672, %v668
        %v693 = vpack.c.b16 %v673, %v669
        %v711 = vand.u32 %v690, %v494
        %v714 = vand.u32 %v691, %v494
        %v717 = vand.u32 %v692, %v494
        %v720 = vand.u32 %v693, %v494
        %722 = vmatprep.subr.bf16.mxu0 %v675
        %723 = vmatpush1.bf16.msra.mxu0 %v674
        %724 = vmatprep.subr.bf16.mxu0 %v679
        %725 = vmatpush1.bf16.msra.mxu0 %v678
        %726 = vmatprep.subr.bf16.mxu0 %v683
        %727 = vmatpush1.bf16.msra.mxu0 %v682
        %728 = vmatprep.subr.bf16.mxu0 %v687
        %729 = vmatpush1.bf16.msra.mxu0 %v686
        %730 = vmatprep.subr.bf16.mxu0 %v714
        %731 = vmatpush1.bf16.msra.mxu0 %v711
        %732 = vmatprep.subr.bf16.mxu0 0
        %733 = vmatpush1.bf16.msra.mxu0 0
        %734 = vmatprep.subr.bf16.mxu0 0
        %735 = vmatpush1.bf16.msra.mxu0 0
        %736 = vmatprep.subr.bf16.mxu0 0
        %737 = vmatpush1.bf16.msra.mxu0 0
        %738 = vmatprep.subr.bf16.mxu0 0
        %739 = vmatpush1.bf16.msra.mxu0 0
        %740 = vmatprep.subr.bf16.mxu0 0
        %741 = vmatpush1.bf16.msra.mxu0 0
        %742 = vmatprep.subr.bf16.mxu0 0
        %743 = vmatpush1.bf16.msra.mxu0 0
        %744 = vmatprep.subr.bf16.mxu0 0
        %745 = vmatpush1.bf16.msra.mxu0 0
        %746 = vmatprep.subr.bf16.mxu0 0
        %747 = vmatpush1.bf16.msra.mxu0 0
        %748 = vmatprep.subr.bf16.mxu0 0
        %749 = vmatpush1.bf16.msra.mxu0 0
        %750 = vmatprep.subr.bf16.mxu0 0
        %751 = vmatpush1.bf16.msra.mxu0 0
        %752 = vmatprep.subr.bf16.mxu0 0
        %753 = vmatpush1.bf16.msra.mxu0 0
        %754 = vmatprep.mubr.bf16.mxu0 0
        %755 = vmatmul.mubr.bf16.gmra.mrb[0].mxu0 %v489
        %v756 = vpop.f32.mrb[0].mxu0
        %v757 = vadd.f32 0.0, %v756
        %v758 = vpop.f32.mrb[0].mxu0
        %v759 = vadd.f32 0.0, %v758
        %v760 = vpop.f32.mrb[0].mxu0
        %v761 = vadd.f32 0.0, %v760
        %v762 = vpop.f32.mrb[0].mxu0
        %v763 = vadd.f32 0.0, %v762
        %764 = vdwg.mxu0
        %765 = vmatprep.subr.bf16.mxu0 %v677
        %766 = vmatpush1.bf16.msra.mxu0 %v676
        %767 = vmatprep.subr.bf16.mxu0 %v681
        %768 = vmatpush1.bf16.msra.mxu0 %v680
        %769 = vmatprep.subr.bf16.mxu0 %v685
        %770 = vmatpush1.bf16.msra.mxu0 %v684
        %771 = vmatprep.subr.bf16.mxu0 %v689
        %772 = vmatpush1.bf16.msra.mxu0 %v688
        %773 = vmatprep.subr.bf16.mxu0 %v720
        %774 = vmatpush1.bf16.msra.mxu0 %v717
        %775 = vmatprep.subr.bf16.mxu0 0
        %776 = vmatpush1.bf16.msra.mxu0 0
        %777 = vmatprep.subr.bf16.mxu0 0
        %778 = vmatpush1.bf16.msra.mxu0 0
        %779 = vmatprep.subr.bf16.mxu0 0
        %780 = vmatpush1.bf16.msra.mxu0 0
        %781 = vmatprep.subr.bf16.mxu0 0
        %782 = vmatpush1.bf16.msra.mxu0 0
        %783 = vmatprep.subr.bf16.mxu0 0
        %784 = vmatpush1.bf16.msra.mxu0 0
        %785 = vmatprep.subr.bf16.mxu0 0
        %786 = vmatpush1.bf16.msra.mxu0 0
        %787 = vmatprep.subr.bf16.mxu0 0
        %788 = vmatpush1.bf16.msra.mxu0 0
        %789 = vmatprep.subr.bf16.mxu0 0
        %790 = vmatpush1.bf16.msra.mxu0 0
        %791 = vmatprep.subr.bf16.mxu0 0
        %792 = vmatpush1.bf16.msra.mxu0 0
        %793 = vmatprep.subr.bf16.mxu0 0
        %794 = vmatpush1.bf16.msra.mxu0 0
        %795 = vmatprep.subr.bf16.mxu0 0
        %796 = vmatpush1.bf16.msra.mxu0 0
        %797 = vmatprep.mubr.bf16.mxu0 0
        %798 = vmatmul.mubr.bf16.gmra.mrb[0].mxu0 %v489
        %v799 = vpop.f32.mrb[0].mxu0
        %v800 = vadd.f32 0.0, %v799
        %v801 = vpop.f32.mrb[0].mxu0
        %v802 = vadd.f32 0.0, %v801
        %v803 = vpop.f32.mrb[0].mxu0
        %v804 = vadd.f32 0.0, %v803
        %v805 = vpop.f32.mrb[0].mxu0
        %v806 = vadd.f32 0.0, %v805
        %807 = vdwg.mxu0
        %v808 = vmax.f32 %v542, %v757
        %v809 = vmax.f32 %v544, %v759
        %v810 = vmax.f32 %v585, %v800
        %v811 = vmax.f32 %v587, %v802
        %v812 = vmax.f32 %v546, %v761
        %v813 = vmax.f32 %v548, %v763
        %v814 = vmax.f32 %v589, %v804
        %v815 = vmax.f32 %v591, %v806
        %s816 = scalar_lea.vmem %s341, 320 [#allocation2]
        %v817 = vld [vmem:[%s816] sm:$0xff]
        %v818 = vld [vmem:[%s816 + $0x8] sm:$0xff]
        %v819 = vld [vmem:[%s816 + $0x10] sm:$0xff]
        %v820 = vld [vmem:[%s816 + $0x18] sm:$0xff]
        %v821 = vld [vmem:[%s816 + $0x20] sm:$0xff]
        %v822 = vld [vmem:[%s816 + $0x28] sm:$0xff]
        %v823 = vld [vmem:[%s816 + $0x30] sm:$0xff]
        %v824 = vld [vmem:[%s816 + $0x38] sm:$0xff]
        %v825 = vld [vmem:[%s816 + $0x40] sm:$0xff]
        %v826 = vld [vmem:[%s816 + $0x48] sm:$0xff]
        %v827 = vld [vmem:[%s816 + $0x50] sm:$0xff]
        %v828 = vld [vmem:[%s816 + $0x58] sm:$0xff]
        %v829 = vld [vmem:[%s816 + $0x60] sm:$0xff]
        %v830 = vld [vmem:[%s816 + $0x68] sm:$0xff]
        %v831 = vld [vmem:[%s816 + $0x70] sm:$0xff]
        %v832 = vld [vmem:[%s816 + $0x78] sm:$0xff]
        %v833 = vld [vmem:[%s816 + $0x80] sm:$0xff]
        %v834 = vld [vmem:[%s816 + $0x88] sm:$0xff]
        %v835 = vld [vmem:[%s816 + $0x90] sm:$0x33]
        %v836 = vld [vmem:[%s816 + $0x98] sm:$0x33]
        %v857 = vunpack.c.l.b16 %v817
        %v858 = vunpack.c.h.b16 %v817
        %v859 = vunpack.c.l.b16 %v818
        %v860 = vunpack.c.h.b16 %v818
        %v861 = vunpack.c.l.b16 %v819
        %v862 = vunpack.c.h.b16 %v819
        %v863 = vunpack.c.l.b16 %v820
        %v864 = vunpack.c.h.b16 %v820
        %v865 = vunpack.c.l.b16 %v821
        %v866 = vunpack.c.h.b16 %v821
        %v867 = vunpack.c.l.b16 %v822
        %v868 = vunpack.c.h.b16 %v822
        %v869 = vunpack.c.l.b16 %v823
        %v870 = vunpack.c.h.b16 %v823
        %v871 = vunpack.c.l.b16 %v824
        %v872 = vunpack.c.h.b16 %v824
        %v873 = vunpack.c.l.b16 %v825
        %v874 = vunpack.c.h.b16 %v825
        %v875 = vunpack.c.l.b16 %v826
        %v876 = vunpack.c.h.b16 %v826
        %v877 = vunpack.c.l.b16 %v827
        %v878 = vunpack.c.h.b16 %v827
        %v879 = vunpack.c.l.b16 %v828
        %v880 = vunpack.c.h.b16 %v828
        %v881 = vunpack.c.l.b16 %v829
        %v882 = vunpack.c.h.b16 %v829
        %v883 = vunpack.c.l.b16 %v830
        %v884 = vunpack.c.h.b16 %v830
        %v885 = vunpack.c.l.b16 %v831
        %v886 = vunpack.c.h.b16 %v831
        %v887 = vunpack.c.l.b16 %v832
        %v888 = vunpack.c.h.b16 %v832
        %v889 = vunpack.c.l.b16 %v833
        %v890 = vunpack.c.h.b16 %v833
        %v891 = vunpack.c.l.b16 %v834
        %v892 = vunpack.c.h.b16 %v834
        %v893 = vunpack.c.l.b16 %v835
        %v894 = vunpack.c.h.b16 %v835
        %v895 = vunpack.c.l.b16 %v836
        %v896 = vunpack.c.h.b16 %v836
        %v897 = vpack.c.b16 %v861, %v857
        %v898 = vpack.c.b16 %v862, %v858
        %v899 = vpack.c.b16 %v863, %v859
        %v900 = vpack.c.b16 %v864, %v860
        %v901 = vpack.c.b16 %v869, %v865
        %v902 = vpack.c.b16 %v870, %v866
        %v903 = vpack.c.b16 %v871, %v867
        %v904 = vpack.c.b16 %v872, %v868
        %v905 = vpack.c.b16 %v877, %v873
        %v906 = vpack.c.b16 %v878, %v874
        %v907 = vpack.c.b16 %v879, %v875
        %v908 = vpack.c.b16 %v880, %v876
        %v909 = vpack.c.b16 %v885, %v881
        %v910 = vpack.c.b16 %v886, %v882
        %v911 = vpack.c.b16 %v887, %v883
        %v912 = vpack.c.b16 %v888, %v884
        %v913 = vpack.c.b16 %v893, %v889
        %v914 = vpack.c.b16 %v894, %v890
        %v915 = vpack.c.b16 %v895, %v891
        %v916 = vpack.c.b16 %v896, %v892
        %v934 = vand.u32 %v913, %v494
        %v937 = vand.u32 %v914, %v494
        %v940 = vand.u32 %v915, %v494
        %v943 = vand.u32 %v916, %v494
        %945 = vmatprep.subr.bf16.mxu0 %v898
        %946 = vmatpush1.bf16.msra.mxu0 %v897
        %947 = vmatprep.subr.bf16.mxu0 %v902
        %948 = vmatpush1.bf16.msra.mxu0 %v901
        %949 = vmatprep.subr.bf16.mxu0 %v906
        %950 = vmatpush1.bf16.msra.mxu0 %v905
        %951 = vmatprep.subr.bf16.mxu0 %v910
        %952 = vmatpush1.bf16.msra.mxu0 %v909
        %953 = vmatprep.subr.bf16.mxu0 %v937
        %954 = vmatpush1.bf16.msra.mxu0 %v934
        %955 = vmatprep.subr.bf16.mxu0 0
        %956 = vmatpush1.bf16.msra.mxu0 0
        %957 = vmatprep.subr.bf16.mxu0 0
        %958 = vmatpush1.bf16.msra.mxu0 0
        %959 = vmatprep.subr.bf16.mxu0 0
        %960 = vmatpush1.bf16.msra.mxu0 0
        %961 = vmatprep.subr.bf16.mxu0 0
        %962 = vmatpush1.bf16.msra.mxu0 0
        %963 = vmatprep.subr.bf16.mxu0 0
        %964 = vmatpush1.bf16.msra.mxu0 0
        %965 = vmatprep.subr.bf16.mxu0 0
        %966 = vmatpush1.bf16.msra.mxu0 0
        %967 = vmatprep.subr.bf16.mxu0 0
        %968 = vmatpush1.bf16.msra.mxu0 0
        %969 = vmatprep.subr.bf16.mxu0 0
        %970 = vmatpush1.bf16.msra.mxu0 0
        %971 = vmatprep.subr.bf16.mxu0 0
        %972 = vmatpush1.bf16.msra.mxu0 0
        %973 = vmatprep.subr.bf16.mxu0 0
        %974 = vmatpush1.bf16.msra.mxu0 0
        %975 = vmatprep.subr.bf16.mxu0 0
        %976 = vmatpush1.bf16.msra.mxu0 0
        %977 = vmatprep.mubr.bf16.mxu0 0
        %978 = vmatmul.mubr.bf16.gmra.mrb[0].mxu0 %v489
        %v979 = vpop.f32.mrb[0].mxu0
        %v980 = vadd.f32 0.0, %v979
        %v981 = vpop.f32.mrb[0].mxu0
        %v982 = vadd.f32 0.0, %v981
        %v983 = vpop.f32.mrb[0].mxu0
        %v984 = vadd.f32 0.0, %v983
        %v985 = vpop.f32.mrb[0].mxu0
        %v986 = vadd.f32 0.0, %v985
        %987 = vdwg.mxu0
        %988 = vmatprep.subr.bf16.mxu0 %v900
        %989 = vmatpush1.bf16.msra.mxu0 %v899
        %990 = vmatprep.subr.bf16.mxu0 %v904
        %991 = vmatpush1.bf16.msra.mxu0 %v903
        %992 = vmatprep.subr.bf16.mxu0 %v908
        %993 = vmatpush1.bf16.msra.mxu0 %v907
        %994 = vmatprep.subr.bf16.mxu0 %v912
        %995 = vmatpush1.bf16.msra.mxu0 %v911
        %996 = vmatprep.subr.bf16.mxu0 %v943
        %997 = vmatpush1.bf16.msra.mxu0 %v940
        %998 = vmatprep.subr.bf16.mxu0 0
        %999 = vmatpush1.bf16.msra.mxu0 0
        %1000 = vmatprep.subr.bf16.mxu0 0
        %1001 = vmatpush1.bf16.msra.mxu0 0
        %1002 = vmatprep.subr.bf16.mxu0 0
        %1003 = vmatpush1.bf16.msra.mxu0 0
        %1004 = vmatprep.subr.bf16.mxu0 0
        %1005 = vmatpush1.bf16.msra.mxu0 0
        %1006 = vmatprep.subr.bf16.mxu0 0
        %1007 = vmatpush1.bf16.msra.mxu0 0
        %1008 = vmatprep.subr.bf16.mxu0 0
        %1009 = vmatpush1.bf16.msra.mxu0 0
        %1010 = vmatprep.subr.bf16.mxu0 0
        %1011 = vmatpush1.bf16.msra.mxu0 0
        %1012 = vmatprep.subr.bf16.mxu0 0
        %1013 = vmatpush1.bf16.msra.mxu0 0
        %1014 = vmatprep.subr.bf16.mxu0 0
        %1015 = vmatpush1.bf16.msra.mxu0 0
        %1016 = vmatprep.subr.bf16.mxu0 0
        %1017 = vmatpush1.bf16.msra.mxu0 0
        %1018 = vmatprep.subr.bf16.mxu0 0
        %1019 = vmatpush1.bf16.msra.mxu0 0
        %1020 = vmatprep.mubr.bf16.mxu0 0
        %1021 = vmatmul.mubr.bf16.gmra.mrb[0].mxu0 %v489
        %v1022 = vpop.f32.mrb[0].mxu0
        %v1023 = vadd.f32 0.0, %v1022
        %v1024 = vpop.f32.mrb[0].mxu0
        %v1025 = vadd.f32 0.0, %v1024
        %v1026 = vpop.f32.mrb[0].mxu0
        %v1027 = vadd.f32 0.0, %v1026
        %v1028 = vpop.f32.mrb[0].mxu0
        %v1029 = vadd.f32 0.0, %v1028
        %1030 = vdwg.mxu0
        %v1031 = vmax.f32 %v808, %v980
        %v1032 = vmax.f32 %v809, %v982
        %v1033 = vmax.f32 %v810, %v1023
        %v1034 = vmax.f32 %v811, %v1025
        %v1035 = vmax.f32 %v812, %v984
        %v1036 = vmax.f32 %v813, %v986
        %v1037 = vmax.f32 %v814, %v1027
        %v1038 = vmax.f32 %v815, %v1029
        %s1039 = scalar_lea.vmem %s341, 480 [#allocation2]
        %v1040 = vld [vmem:[%s1039] sm:$0xff]
        %v1041 = vld [vmem:[%s1039 + $0x8] sm:$0xff]
        %v1042 = vld [vmem:[%s1039 + $0x10] sm:$0xff]
        %v1043 = vld [vmem:[%s1039 + $0x18] sm:$0xff]
        %v1044 = vld [vmem:[%s1039 + $0x20] sm:$0xff]
        %v1045 = vld [vmem:[%s1039 + $0x28] sm:$0xff]
        %v1046 = vld [vmem:[%s1039 + $0x30] sm:$0xff]
        %v1047 = vld [vmem:[%s1039 + $0x38] sm:$0xff]
        %v1048 = vld [vmem:[%s1039 + $0x40] sm:$0xff]
        %v1049 = vld [vmem:[%s1039 + $0x48] sm:$0xff]
        %v1050 = vld [vmem:[%s1039 + $0x50] sm:$0xff]
        %v1051 = vld [vmem:[%s1039 + $0x58] sm:$0xff]
        %v1052 = vld [vmem:[%s1039 + $0x60] sm:$0xff]
        %v1053 = vld [vmem:[%s1039 + $0x68] sm:$0xff]
        %v1054 = vld [vmem:[%s1039 + $0x70] sm:$0xff]
        %v1055 = vld [vmem:[%s1039 + $0x78] sm:$0xff]
        %v1056 = vld [vmem:[%s1039 + $0x80] sm:$0xff]
        %v1057 = vld [vmem:[%s1039 + $0x88] sm:$0xff]
        %v1058 = vld [vmem:[%s1039 + $0x90] sm:$0x33]
        %v1059 = vld [vmem:[%s1039 + $0x98] sm:$0x33]
        %v1080 = vunpack.c.l.b16 %v1040
        %v1081 = vunpack.c.h.b16 %v1040
        %v1082 = vunpack.c.l.b16 %v1041
        %v1083 = vunpack.c.h.b16 %v1041
        %v1084 = vunpack.c.l.b16 %v1042
        %v1085 = vunpack.c.h.b16 %v1042
        %v1086 = vunpack.c.l.b16 %v1043
        %v1087 = vunpack.c.h.b16 %v1043
        %v1088 = vunpack.c.l.b16 %v1044
        %v1089 = vunpack.c.h.b16 %v1044
        %v1090 = vunpack.c.l.b16 %v1045
        %v1091 = vunpack.c.h.b16 %v1045
        %v1092 = vunpack.c.l.b16 %v1046
        %v1093 = vunpack.c.h.b16 %v1046
        %v1094 = vunpack.c.l.b16 %v1047
        %v1095 = vunpack.c.h.b16 %v1047
        %v1096 = vunpack.c.l.b16 %v1048
        %v1097 = vunpack.c.h.b16 %v1048
        %v1098 = vunpack.c.l.b16 %v1049
        %v1099 = vunpack.c.h.b16 %v1049
        %v1100 = vunpack.c.l.b16 %v1050
        %v1101 = vunpack.c.h.b16 %v1050
        %v1102 = vunpack.c.l.b16 %v1051
        %v1103 = vunpack.c.h.b16 %v1051
        %v1104 = vunpack.c.l.b16 %v1052
        %v1105 = vunpack.c.h.b16 %v1052
        %v1106 = vunpack.c.l.b16 %v1053
        %v1107 = vunpack.c.h.b16 %v1053
        %v1108 = vunpack.c.l.b16 %v1054
        %v1109 = vunpack.c.h.b16 %v1054
        %v1110 = vunpack.c.l.b16 %v1055
        %v1111 = vunpack.c.h.b16 %v1055
        %v1112 = vunpack.c.l.b16 %v1056
        %v1113 = vunpack.c.h.b16 %v1056
        %v1114 = vunpack.c.l.b16 %v1057
        %v1115 = vunpack.c.h.b16 %v1057
        %v1116 = vunpack.c.l.b16 %v1058
        %v1117 = vunpack.c.h.b16 %v1058
        %v1118 = vunpack.c.l.b16 %v1059
        %v1119 = vunpack.c.h.b16 %v1059
        %v1120 = vpack.c.b16 %v1084, %v1080
        %v1121 = vpack.c.b16 %v1085, %v1081
        %v1122 = vpack.c.b16 %v1086, %v1082
        %v1123 = vpack.c.b16 %v1087, %v1083
        %v1124 = vpack.c.b16 %v1092, %v1088
        %v1125 = vpack.c.b16 %v1093, %v1089
        %v1126 = vpack.c.b16 %v1094, %v1090
        %v1127 = vpack.c.b16 %v1095, %v1091
        %v1128 = vpack.c.b16 %v1100, %v1096
        %v1129 = vpack.c.b16 %v1101, %v1097
        %v1130 = vpack.c.b16 %v1102, %v1098
        %v1131 = vpack.c.b16 %v1103, %v1099
        %v1132 = vpack.c.b16 %v1108, %v1104
        %v1133 = vpack.c.b16 %v1109, %v1105
        %v1134 = vpack.c.b16 %v1110, %v1106
        %v1135 = vpack.c.b16 %v1111, %v1107
        %v1136 = vpack.c.b16 %v1116, %v1112
        %v1137 = vpack.c.b16 %v1117, %v1113
        %v1138 = vpack.c.b16 %v1118, %v1114
        %v1139 = vpack.c.b16 %v1119, %v1115
        %v1157 = vand.u32 %v1136, %v494
        %v1160 = vand.u32 %v1137, %v494
        %v1163 = vand.u32 %v1138, %v494
        %v1166 = vand.u32 %v1139, %v494
        %1168 = vmatprep.subr.bf16.mxu0 %v1121
        %1169 = vmatpush1.bf16.msra.mxu0 %v1120
        %1170 = vmatprep.subr.bf16.mxu0 %v1125
        %1171 = vmatpush1.bf16.msra.mxu0 %v1124
        %1172 = vmatprep.subr.bf16.mxu0 %v1129
        %1173 = vmatpush1.bf16.msra.mxu0 %v1128
        %1174 = vmatprep.subr.bf16.mxu0 %v1133
        %1175 = vmatpush1.bf16.msra.mxu0 %v1132
        %1176 = vmatprep.subr.bf16.mxu0 %v1160
        %1177 = vmatpush1.bf16.msra.mxu0 %v1157
        %1178 = vmatprep.subr.bf16.mxu0 0
        %1179 = vmatpush1.bf16.msra.mxu0 0
        %1180 = vmatprep.subr.bf16.mxu0 0
        %1181 = vmatpush1.bf16.msra.mxu0 0
        %1182 = vmatprep.subr.bf16.mxu0 0
        %1183 = vmatpush1.bf16.msra.mxu0 0
        %1184 = vmatprep.subr.bf16.mxu0 0
        %1185 = vmatpush1.bf16.msra.mxu0 0
        %1186 = vmatprep.subr.bf16.mxu0 0
        %1187 = vmatpush1.bf16.msra.mxu0 0
        %1188 = vmatprep.subr.bf16.mxu0 0
        %1189 = vmatpush1.bf16.msra.mxu0 0
        %1190 = vmatprep.subr.bf16.mxu0 0
        %1191 = vmatpush1.bf16.msra.mxu0 0
        %1192 = vmatprep.subr.bf16.mxu0 0
        %1193 = vmatpush1.bf16.msra.mxu0 0
        %1194 = vmatprep.subr.bf16.mxu0 0
        %1195 = vmatpush1.bf16.msra.mxu0 0
        %1196 = vmatprep.subr.bf16.mxu0 0
        %1197 = vmatpush1.bf16.msra.mxu0 0
        %1198 = vmatprep.subr.bf16.mxu0 0
        %1199 = vmatpush1.bf16.msra.mxu0 0
        %1200 = vmatprep.mubr.bf16.mxu0 0
        %1201 = vmatmul.mubr.bf16.gmra.mrb[0].mxu0 %v489
        %v1202 = vpop.f32.mrb[0].mxu0
        %v1203 = vadd.f32 0.0, %v1202
        %v1204 = vpop.f32.mrb[0].mxu0
        %v1205 = vadd.f32 0.0, %v1204
        %v1206 = vpop.f32.mrb[0].mxu0
        %v1207 = vadd.f32 0.0, %v1206
        %v1208 = vpop.f32.mrb[0].mxu0
        %v1209 = vadd.f32 0.0, %v1208
        %1210 = vdwg.mxu0
        %1211 = vmatprep.subr.bf16.mxu0 %v1123
        %1212 = vmatpush1.bf16.msra.mxu0 %v1122
        %1213 = vmatprep.subr.bf16.mxu0 %v1127
        %1214 = vmatpush1.bf16.msra.mxu0 %v1126
        %1215 = vmatprep.subr.bf16.mxu0 %v1131
        %1216 = vmatpush1.bf16.msra.mxu0 %v1130
        %1217 = vmatprep.subr.bf16.mxu0 %v1135
        %1218 = vmatpush1.bf16.msra.mxu0 %v1134
        %1219 = vmatprep.subr.bf16.mxu0 %v1166
        %1220 = vmatpush1.bf16.msra.mxu0 %v1163
        %1221 = vmatprep.subr.bf16.mxu0 0
        %1222 = vmatpush1.bf16.msra.mxu0 0
        %1223 = vmatprep.subr.bf16.mxu0 0
        %1224 = vmatpush1.bf16.msra.mxu0 0
        %1225 = vmatprep.subr.bf16.mxu0 0
        %1226 = vmatpush1.bf16.msra.mxu0 0
        %1227 = vmatprep.subr.bf16.mxu0 0
        %1228 = vmatpush1.bf16.msra.mxu0 0
        %1229 = vmatprep.subr.bf16.mxu0 0
        %1230 = vmatpush1.bf16.msra.mxu0 0
        %1231 = vmatprep.subr.bf16.mxu0 0
        %1232 = vmatpush1.bf16.msra.mxu0 0
        %1233 = vmatprep.subr.bf16.mxu0 0
        %1234 = vmatpush1.bf16.msra.mxu0 0
        %1235 = vmatprep.subr.bf16.mxu0 0
        %1236 = vmatpush1.bf16.msra.mxu0 0
        %1237 = vmatprep.subr.bf16.mxu0 0
        %1238 = vmatpush1.bf16.msra.mxu0 0
        %1239 = vmatprep.subr.bf16.mxu0 0
        %1240 = vmatpush1.bf16.msra.mxu0 0
        %1241 = vmatprep.subr.bf16.mxu0 0
        %1242 = vmatpush1.bf16.msra.mxu0 0
        %1243 = vmatprep.mubr.bf16.mxu0 0
        %1244 = vmatmul.mubr.bf16.gmra.mrb[0].mxu0 %v489
        %v1245 = vpop.f32.mrb[0].mxu0
        %v1246 = vadd.f32 0.0, %v1245
        %v1247 = vpop.f32.mrb[0].mxu0
        %v1248 = vadd.f32 0.0, %v1247
        %v1249 = vpop.f32.mrb[0].mxu0
        %v1250 = vadd.f32 0.0, %v1249
        %v1251 = vpop.f32.mrb[0].mxu0
        %v1252 = vadd.f32 0.0, %v1251
        %1253 = vdwg.mxu0
        %v1254 = vmax.f32 %v1031, %v1203
        %v1255 = vmax.f32 %v1032, %v1205
        %v1256 = vmax.f32 %v1033, %v1246
        %v1257 = vmax.f32 %v1034, %v1248
        %v1258 = vmax.f32 %v1035, %v1207
        %v1259 = vmax.f32 %v1036, %v1209
        %v1260 = vmax.f32 %v1037, %v1250
        %v1261 = vmax.f32 %v1038, %v1252
        %v1262 = vld [vmem:[%s2] sm:$0xff]
        %v1263 = vld [vmem:[%s2 + $0x8] sm:$0xff]
        %1265 = vset.pattern.permute.xlu0 0
        %1266 = vperm.xlu0 %1265, %v1262
        %v1267 = vpop.permute.xlu0 %1266
        %1270 = vset.pattern.permute.xlu0 0
        %1271 = vperm.xlu0 %1270, %v1263
        %v1272 = vpop.permute.xlu0 %1271
        %v1274 = vadd.f32 %v1254, %v1267
        %v1275 = vadd.f32 %v1255, %v1267
        %v1276 = vadd.f32 %v1256, %v1267
        %v1277 = vadd.f32 %v1257, %v1267
        %v1278 = vadd.f32 %v1258, %v1272
        %v1279 = vadd.f32 %v1259, %v1272
        %v1280 = vadd.f32 %v1260, %v1272
        %v1281 = vadd.f32 %v1261, %v1272
        %v1282 = vmax.f32 %v1274, 0.0
        %v1283 = vmax.f32 %v1275, 0.0
        %v1284 = vmax.f32 %v1276, 0.0
        %v1285 = vmax.f32 %v1277, 0.0
        %v1286 = vmax.f32 %v1278, 0.0
        %v1287 = vmax.f32 %v1279, 0.0
        %v1288 = vmax.f32 %v1280, 0.0
        %v1289 = vmax.f32 %v1281, 0.0
        %v1290 = vpack.c.bf16 %v1286, %v1282
        %v1291 = vpack.c.bf16 %v1287, %v1283
        %v1292 = vpack.c.bf16 %v1288, %v1284
        %v1293 = vpack.c.bf16 %v1289, %v1285
        %v1298 = vunpack.c.l.b16 %v1290
        %v1299 = vunpack.c.l.b16 %v1291
        %v1300 = vunpack.c.l.b16 %v1292
        %v1301 = vunpack.c.l.b16 %v1293
        %v1302 = vunpack.c.h.b16 %v1290
        %v1303 = vunpack.c.h.b16 %v1291
        %v1304 = vunpack.c.h.b16 %v1292
        %v1305 = vunpack.c.h.b16 %v1293
        %v1306 = vpack.c.b16 %v1299, %v1298
        %v1307 = vpack.c.b16 %v1301, %v1300
        %v1308 = vpack.c.b16 %v1303, %v1302
        %v1309 = vpack.c.b16 %v1305, %v1304
        %1314 = vst [vmem:[%s360] sm:$0xff] %v1306
        %1315 = vst [vmem:[%s360 + $0x8] sm:$0xff] %v1307
        %1316 = vst [vmem:[%s360 + $0x10] sm:$0xff] %v1308
        %1317 = vst [vmem:[%s360 + $0x18] sm:$0xff] %v1309
        %s1318 = sand.u32 %s106, 1
        %s1319 = sand.u32 %s106, 1
        %s1320 = smul.addr %s1319, 32
        %s1321 = scalar_lea.vmem [#allocation3], %s1320
        // Predicated region
        $region56: #{end_layer_forward.3} parent=50 // pred_check
          %p1322 = pneg %p116
        $region57: #{end_layer_forward.3} parent=50 // pred_check_branch
          %1324 = sbr.rel (%p1322) target = $region59
        $region58: #{end_layer_forward.3} parent=50 // pred_region
          %s1325 = smul.u32 4, %s19
          %s1326 = smul.addr %s18, 16
          %s1327 = sadd.s32 %s1325, %s1326
          %s1328 = smul.addr %s1327, 4
          %s1329 = scalar_lea.vmem %s3, %s1328
          // Predicated region
          $region60: #{end_layer_forward.3} parent=58 // pred_check
            _
          $region61: #{end_layer_forward.3} parent=58 // pred_check_branch
            %1331 = sbr.rel (0) target = $region63
          $region62: #{end_layer_forward.3} parent=58 // pred_region
            // Predicated region
            $region64: #{end_layer_forward.3} parent=62 // pred_check
              _
            $region65: #{end_layer_forward.3} parent=62 // pred_check_branch
              %1333 = sbr.rel (0) target = $region67
            $region66: #{end_layer_forward.3} parent=62 // pred_region
              loop: start=0, step=1, limit=1
              $region68: #{end_layer_forward.3} parent=66 // loop_pre_header
                _
              $region69: #{end_layer_forward.3} parent=66 // loop_header
                %s1335 = sphi 0, %s1339
                %p1336 = scmp.ge.s32.totalorder %s1335, 1
                %s1340 = sphi %s1321, %s1321
                %s1341 = sphi %s1329, %s1329
              $region70: #{end_layer_forward.3} parent=66 // loop_header_branch
                %1338 = sbr.rel (%p1336) target = $region74
              $region71: #{end_layer_forward.3} parent=66 // loop_body
                %v1342 = vld [vmem:[%s1340] sm:$0xff]
                %1343 = vst [vmem:[%s1341] sm:$0xff] %v1342
                %v1344 = vld [vmem:[%s1340 + $0x8] sm:$0xff]
                %1345 = vst [vmem:[%s1341 + $0x8] sm:$0xff] %v1344
                %v1346 = vld [vmem:[%s1340 + $0x10] sm:$0xff]
                %1347 = vst [vmem:[%s1341 + $0x20] sm:$0xff] %v1346
                %v1348 = vld [vmem:[%s1340 + $0x18] sm:$0xff]
                %1349 = vst [vmem:[%s1341 + $0x28] sm:$0xff] %v1348
              $region72: #{end_layer_forward.3} parent=66 // loop_footer
                %s1339 = sadd.s32 1, %s1335
              $region73: #{end_layer_forward.3} parent=66 // loop_footer_branch
                %1334 = sbr.rel target = $region69
              $region74: #{end_layer_forward.3} parent=66 // loop_exit
                _
            $region67: #{end_layer_forward.3} parent=62 // pred_fallthru
              _
            // Predicated region
            $region75: #{end_layer_forward.3} parent=62 // pred_check
              _
            $region76: #{end_layer_forward.3} parent=62 // pred_check_branch
              %1351 = sbr.rel target = $region78
            $region77: #{end_layer_forward.3} parent=62 // pred_region
              _
            $region78: #{end_layer_forward.3} parent=62 // pred_fallthru
              _
          $region63: #{end_layer_forward.3} parent=58 // pred_fallthru
            _
          %1352 = vnop
        $region59: #{end_layer_forward.3} parent=50 // pred_fallthru
          _
      $region51: #{end_layer_forward.3} parent=5 // pred_fallthru
        _
      %p1353 = scmp.le.s32.totalorder 2, %s9
      // Predicated region
      $region79: #{end_layer_forward.3} parent=5 // pred_check
        %p1354 = pneg %p1353
      $region80: #{end_layer_forward.3} parent=5 // pred_check_branch
        %1356 = sbr.rel (%p1354) target = $region82
      $region81: #{end_layer_forward.3} parent=5 // pred_region
        %s1357 = ssub.s32 %s9, 2
        // Predicated region
        $region83: #{end_layer_forward.3} parent=81 // pred_check
          %p1358 = pneg %p122
        $region84: #{end_layer_forward.3} parent=81 // pred_check_branch
          %1360 = sbr.rel (%p1358) target = $region86
        $region85: #{end_layer_forward.3} parent=81 // pred_region
          %s1361 = sand.u32 %s107, 1
          %s1362 = sand.u32 %s107, 1
          %s1363 = smul.addr %s1362, 32
          %s1364 = scalar_lea.vmem [#allocation3], %s1363
        $region86: #{end_layer_forward.3} parent=81 // pred_fallthru
          _
      $region82: #{end_layer_forward.3} parent=5 // pred_fallthru
        _
    $region6: #{end_layer_forward.3} parent=1 // loop_footer
      %s13 = sadd.s32 1, %s9
    $region7: #{end_layer_forward.3} parent=1 // loop_footer_branch
      %8 = sbr.rel target = $region3
    $region8: #{end_layer_forward.3} parent=1 // loop_exit
      _

// kernel: end_layer_forward.4
$region0: #{end_layer_forward.4}
  #allocation0 [shape = 'u32[]', space=smem, size = 0x4, offset = 0x4, fixed_abs, tag = 'smem constant byte address 0x4 - core index']
  #allocation1 [shape = 'u32[144,128]{1,0:T(1,128)}', space=vmem, size = 0x12000, scoped, tag = 'internal scratch']
  %s0 = inlined_call_operand.vmem [shape: bf16[4,2,144,64], index: 0, kind: input, shape index: {}]
  %s1 = inlined_call_operand.vmem [shape: bf16[32,144], index: 1, kind: input, shape index: {}]
  %s2 = inlined_call_operand.vmem [shape: f32[32,1], index: 2, kind: input, shape index: {}]
  %s3 = inlined_call_operand.vmem [shape: bf16[2,32,64], index: 3, kind: output, shape index: {}]
  %s4 = sld [smem:[#allocation0]]
  $region86: #{end_layer_forward.4} parent=0
    _
  %s6 = ssub.s32 1, %s4
  %s7 = scalar_select 0, %s6, %s4
  $region1: #{end_layer_forward.4} parent=0
    #allocation2 [shape = 'u8[294912]{0}', space=vmem, size = 0x48000, scoped, tag = 'input window, operand 0']
    loop: start=0, step=1, limit=4
    $region2: #{end_layer_forward.4} parent=1 // loop_pre_header
      _
    $region3: #{end_layer_forward.4} parent=1 // loop_header
      %s9 = sphi 0, %s13
      %p10 = scmp.ge.s32.totalorder %s9, 4
      %s16 = sphi 0, %s28
      %s17 = sphi 0, %s24
      %s18 = sphi 0, %s16
      %s19 = sphi 0, %s17
      %s20 = sphi 0, %s18
      %s21 = sphi 0, %s19
      %s33 = sphi 0, %s35
      %s36 = sphi 0, %s33
      %s37 = sphi 0, %s36
      %s53 = sphi 0, %s37
      %s57 = sphi 0, %s57
      %s59 = sphi 0, %s57
      %s60 = sphi 0, %s59
      %s74 = sphi 0, %s60
      %s78 = sphi 0, %s78
      %s80 = sphi 0, %s78
      %s81 = sphi 0, %s80
      %s95 = sphi 0, %s81
      %s103 = sphi 0, %s105
      %s106 = sphi 0, %s103
      %s107 = sphi 0, %s106
      %s123 = sphi 0, %s107
    $region4: #{end_layer_forward.4} parent=1 // loop_header_branch
      %12 = sbr.rel (%p10) target = $region8
    $region5: #{end_layer_forward.4} parent=1 // loop_body
      %s14 = ssub.s32 %s9, 1
      %s15 = ssub.s32 %s9, 2
      %s22 = sadd.s32 1, %s17
      %p23 = scmp.ge.s32.totalorder %s22, 1
      %s24 = scalar_select %p23, 0, %s22
      %s25 = sadd.s32 1, %s16
      %s26 = scalar_select %p23, %s25, %s16
      %p27 = scmp.ge.s32.totalorder %s26, 2
      %s28 = scalar_select %p27, 0, %s26
      %s29 = ssub.s32 %s16, %s28
      %s30 = ssub.s32 %s17, %s24
      %s31 = sor.u32 %s29, %s30
      %p32 = scmp.eq.s32.totalorder %s31, 0
      %s34 = sadd.s32 %s33, 1
      %s35 = scalar_select %p32, %s33, %s34
      %p38 = pneg %p32
      %p39 = scmp.eq.s32.totalorder %s9, 1
      %p40 = por %p38, %p39
      %p41 = scmp.ne.s32.totalorder %s33, %s36
      %p42 = scmp.eq.s32.totalorder %s9, 0
      %p43 = por %p41, %p42
      %p44 = scmp.ne.s32.totalorder %s33, %s36
      %p45 = scmp.eq.s32.totalorder %s14, 1
      %p46 = por %p44, %p45
      %p47 = scmp.ne.s32.totalorder %s36, %s37
      %p48 = scmp.eq.s32.totalorder %s14, 0
      %p49 = por %p47, %p48
      %p50 = scmp.ne.s32.totalorder %s36, %s37
      %p51 = scmp.eq.s32.totalorder %s15, 1
      %p52 = por %p50, %p51
      %p54 = scmp.ne.s32.totalorder %s37, %s53
      %p55 = scmp.eq.s32.totalorder %s15, 0
      %p56 = por %p54, %p55
      %s58 = sadd.s32 %s57, 1
      %p61 = scmp.eq.s32.totalorder %s9, 1
      %p62 = scmp.ne.s32.totalorder %s57, %s59
      %p63 = scmp.eq.s32.totalorder %s9, 0
      %p64 = por %p62, %p63
      %p65 = scmp.ne.s32.totalorder %s57, %s59
      %p66 = scmp.eq.s32.totalorder %s14, 1
      %p67 = por %p65, %p66
      %p68 = scmp.ne.s32.totalorder %s59, %s60
      %p69 = scmp.eq.s32.totalorder %s14, 0
      %p70 = por %p68, %p69
      %p71 = scmp.ne.s32.totalorder %s59, %s60
      %p72 = scmp.eq.s32.totalorder %s15, 1
      %p73 = por %p71, %p72
      %p75 = scmp.ne.s32.totalorder %s60, %s74
      %p76 = scmp.eq.s32.totalorder %s15, 0
      %p77 = por %p75, %p76
      %s79 = sadd.s32 %s78, 1
      %p82 = scmp.eq.s32.totalorder %s9, 1
      %p83 = scmp.ne.s32.totalorder %s78, %s80
      %p84 = scmp.eq.s32.totalorder %s9, 0
      %p85 = por %p83, %p84
      %p86 = scmp.ne.s32.totalorder %s78, %s80
      %p87 = scmp.eq.s32.totalorder %s14, 1
      %p88 = por %p86, %p87
      %p89 = scmp.ne.s32.totalorder %s80, %s81
      %p90 = scmp.eq.s32.totalorder %s14, 0
      %p91 = por %p89, %p90
      %p92 = scmp.ne.s32.totalorder %s80, %s81
      %p93 = scmp.eq.s32.totalorder %s15, 1
      %p94 = por %p92, %p93
      %p96 = scmp.ne.s32.totalorder %s81, %s95
      %p97 = scmp.eq.s32.totalorder %s15, 0
      %p98 = por %p96, %p97
      %s99 = ssub.s32 %s16, %s28
      %s100 = ssub.s32 %s17, %s24
      %s101 = sor.u32 %s99, %s100
      %p102 = scmp.eq.s32.totalorder %s101, 0
      %s104 = sadd.s32 %s103, 1
      %s105 = scalar_select %p102, %s103, %s104
      %p108 = pneg %p102
      %p109 = scmp.eq.s32.totalorder %s9, 1
      %p110 = por %p108, %p109
      %p111 = scmp.ne.s32.totalorder %s103, %s106
      %p112 = scmp.eq.s32.totalorder %s9, 0
      %p113 = por %p111, %p112
      %p114 = scmp.ne.s32.totalorder %s103, %s106
      %p115 = scmp.eq.s32.totalorder %s14, 1
      %p116 = por %p114, %p115
      %p117 = scmp.ne.s32.totalorder %s106, %s107
      %p118 = scmp.eq.s32.totalorder %s14, 0
      %p119 = por %p117, %p118
      %p120 = scmp.ne.s32.totalorder %s106, %s107
      %p121 = scmp.eq.s32.totalorder %s15, 1
      %p122 = por %p120, %p121
      %p124 = scmp.ne.s32.totalorder %s107, %s123
      %p125 = scmp.eq.s32.totalorder %s15, 0
      %p126 = por %p124, %p125
      %p127 = scmp.le.s32.totalorder 1, %s9
      %p128 = scmp.lt.s32.totalorder %s9, 3
      %p129 = pnand %p127, %p128
      %p130 = pneg %p129
      // Predicated region
      $region9: #{end_layer_forward.4} parent=5 // pred_check
        _
      $region10: #{end_layer_forward.4} parent=5 // pred_check_branch
        %132 = sbr.rel (%p129) target = $region12
      $region11: #{end_layer_forward.4} parent=5 // pred_region
        %s133 = ssub.s32 %s9, 1
        // Predicated region
        $region13: #{end_layer_forward.4} parent=11 // pred_check
          %p134 = pneg %p70
        $region14: #{end_layer_forward.4} parent=11 // pred_check_branch
          %136 = sbr.rel (%p134) target = $region16
        $region15: #{end_layer_forward.4} parent=11 // pred_region
          _
        $region16: #{end_layer_forward.4} parent=11 // pred_fallthru
          _
        // Predicated region
        $region17: #{end_layer_forward.4} parent=11 // pred_check
          %p137 = pneg %p91
        $region18: #{end_layer_forward.4} parent=11 // pred_check_branch
          %139 = sbr.rel (%p137) target = $region20
        $region19: #{end_layer_forward.4} parent=11 // pred_region
          _
        $region20: #{end_layer_forward.4} parent=11 // pred_fallthru
          _
      $region12: #{end_layer_forward.4} parent=5 // pred_fallthru
        _
      %p140 = scmp.lt.s32.totalorder %s9, 2
      // Predicated region
      $region21: #{end_layer_forward.4} parent=5 // pred_check
        %p141 = pneg %p140
      $region22: #{end_layer_forward.4} parent=5 // pred_check_branch
        %143 = sbr.rel (%p141) target = $region24
      $region23: #{end_layer_forward.4} parent=5 // pred_region
        // Predicated region
        $region25: #{end_layer_forward.4} parent=23 // pred_check
          %p144 = pneg %p43
        $region26: #{end_layer_forward.4} parent=23 // pred_check_branch
          %146 = sbr.rel (%p144) target = $region28
        $region27: #{end_layer_forward.4} parent=23 // pred_region
          %s147 = sand.u32 %s33, 1
          %s148 = sand.u32 %s33, 1
          %s149 = smul.addr %s148, 288
          %s150 = scalar_lea.vmem [#allocation2], %s149
          %s151 = smul.addr %s16, 18
          %s152 = sadd.s32 %s17, %s151
          %s153 = smul.addr %s152, 4
          %s154 = scalar_lea.vmem %s0, %s153
          // Predicated region
          $region29: #{end_layer_forward.4} parent=27 // pred_check
            _
          $region30: #{end_layer_forward.4} parent=27 // pred_check_branch
            %156 = sbr.rel (0) target = $region32
          $region31: #{end_layer_forward.4} parent=27 // pred_region
            // Predicated region
            $region33: #{end_layer_forward.4} parent=31 // pred_check
              _
            $region34: #{end_layer_forward.4} parent=31 // pred_check_branch
              %158 = sbr.rel target = $region36
            $region35: #{end_layer_forward.4} parent=31 // pred_region
              // Predicated region
              $region48: #{end_layer_forward.4} parent=35 // pred_check
                _
              $region49: #{end_layer_forward.4} parent=35 // pred_check_branch
                %315 = sbr.rel (0) target = $region51
              $region50: #{end_layer_forward.4} parent=35 // pred_region
                loop: start=0, step=1, limit=1
                $region52: #{end_layer_forward.4} parent=50 // loop_pre_header
                  _
                $region53: #{end_layer_forward.4} parent=50 // loop_header
                  %s317 = sphi 0, %s321
                  %p318 = scmp.ge.s32.totalorder %s317, 1
                  %s322 = sphi %s154, %s154
                  %s323 = sphi %s150, %s150
                $region54: #{end_layer_forward.4} parent=50 // loop_header_branch
                  %320 = sbr.rel (%p318) target = $region58
                $region55: #{end_layer_forward.4} parent=50 // loop_body
                  _
                $region56: #{end_layer_forward.4} parent=50 // loop_footer
                  %s321 = sadd.s32 1, %s317
                $region57: #{end_layer_forward.4} parent=50 // loop_footer_branch
                  %316 = sbr.rel target = $region53
                $region58: #{end_layer_forward.4} parent=50 // loop_exit
                  _
                loop: start=0, step=1, limit=1
                $region59: #{end_layer_forward.4} parent=50 // loop_pre_header
                  _
                $region60: #{end_layer_forward.4} parent=50 // loop_header
                  %s326 = sphi 0, %s330
                  %p327 = scmp.ge.s32.totalorder %s326, 1
                  %s331 = sphi %s154, %s154
                  %s332 = sphi %s150, %s150
                $region61: #{end_layer_forward.4} parent=50 // loop_header_branch
                  %329 = sbr.rel (%p327) target = $region65
                $region62: #{end_layer_forward.4} parent=50 // loop_body
                  %v333 = vld [vmem:[%s331] sm:$0xf]
                  %334 = vst [vmem:[%s332] sm:$0xf] %v333
                  %v335 = vld [vmem:[%s331 + $0x4] sm:$0xf]
                  %336 = vst [vmem:[%s332 + $0x4] sm:$0xf] %v335
                  %v337 = vld [vmem:[%s331 + $0x8] sm:$0xf]
                  %338 = vst [vmem:[%s332 + $0x8] sm:$0xf] %v337
                  %v339 = vld [vmem:[%s331 + $0xc] sm:$0xf]
                  %340 = vst [vmem:[%s332 + $0xc] sm:$0xf] %v339
                  %v341 = vld [vmem:[%s331 + $0x10] sm:$0xf]
                  %342 = vst [vmem:[%s332 + $0x10] sm:$0xf] %v341
                  %v343 = vld [vmem:[%s331 + $0x14] sm:$0xf]
                  %344 = vst [vmem:[%s332 + $0x14] sm:$0xf] %v343
                  %v345 = vld [vmem:[%s331 + $0x18] sm:$0xf]
                  %346 = vst [vmem:[%s332 + $0x18] sm:$0xf] %v345
                  %v347 = vld [vmem:[%s331 + $0x1c] sm:$0xf]
                  %348 = vst [vmem:[%s332 + $0x1c] sm:$0xf] %v347
                  %v349 = vld [vmem:[%s331 + $0x20] sm:$0xf]
                  %350 = vst [vmem:[%s332 + $0x20] sm:$0xf] %v349
                  %v351 = vld [vmem:[%s331 + $0x24] sm:$0xf]
                  %352 = vst [vmem:[%s332 + $0x24] sm:$0xf] %v351
                  %v353 = vld [vmem:[%s331 + $0x28] sm:$0xf]
                  %354 = vst [vmem:[%s332 + $0x28] sm:$0xf] %v353
                  %v355 = vld [vmem:[%s331 + $0x2c] sm:$0xf]
                  %356 = vst [vmem:[%s332 + $0x2c] sm:$0xf] %v355
                  %v357 = vld [vmem:[%s331 + $0x30] sm:$0xf]
                  %358 = vst [vmem:[%s332 + $0x30] sm:$0xf] %v357
                  %v359 = vld [vmem:[%s331 + $0x34] sm:$0xf]
                  %360 = vst [vmem:[%s332 + $0x34] sm:$0xf] %v359
                  %v361 = vld [vmem:[%s331 + $0x38] sm:$0xf]
                  %362 = vst [vmem:[%s332 + $0x38] sm:$0xf] %v361
                  %v363 = vld [vmem:[%s331 + $0x3c] sm:$0xf]
                  %364 = vst [vmem:[%s332 + $0x3c] sm:$0xf] %v363
                  %v365 = vld [vmem:[%s331 + $0x40] sm:$0xf]
                  %366 = vst [vmem:[%s332 + $0x40] sm:$0xf] %v365
                  %v367 = vld [vmem:[%s331 + $0x44] sm:$0xf]
                  %368 = vst [vmem:[%s332 + $0x44] sm:$0xf] %v367
                  %v369 = vld [vmem:[%s331 + $0x90] sm:$0xf]
                  %370 = vst [vmem:[%s332 + $0x48] sm:$0xf] %v369
                  %v371 = vld [vmem:[%s331 + $0x94] sm:$0xf]
                  %372 = vst [vmem:[%s332 + $0x4c] sm:$0xf] %v371
                  %v373 = vld [vmem:[%s331 + $0x98] sm:$0xf]
                  %374 = vst [vmem:[%s332 + $0x50] sm:$0xf] %v373
                  %v375 = vld [vmem:[%s331 + $0x9c] sm:$0xf]
                  %376 = vst [vmem:[%s332 + $0x54] sm:$0xf] %v375
                  %v377 = vld [vmem:[%s331 + $0xa0] sm:$0xf]
                  %378 = vst [vmem:[%s332 + $0x58] sm:$0xf] %v377
                  %v379 = vld [vmem:[%s331 + $0xa4] sm:$0xf]
                  %380 = vst [vmem:[%s332 + $0x5c] sm:$0xf] %v379
                  %v381 = vld [vmem:[%s331 + $0xa8] sm:$0xf]
                  %382 = vst [vmem:[%s332 + $0x60] sm:$0xf] %v381
                  %v383 = vld [vmem:[%s331 + $0xac] sm:$0xf]
                  %384 = vst [vmem:[%s332 + $0x64] sm:$0xf] %v383
                  %v385 = vld [vmem:[%s331 + $0xb0] sm:$0xf]
                  %386 = vst [vmem:[%s332 + $0x68] sm:$0xf] %v385
                  %v387 = vld [vmem:[%s331 + $0xb4] sm:$0xf]
                  %388 = vst [vmem:[%s332 + $0x6c] sm:$0xf] %v387
                  %v389 = vld [vmem:[%s331 + $0xb8] sm:$0xf]
                  %390 = vst [vmem:[%s332 + $0x70] sm:$0xf] %v389
                  %v391 = vld [vmem:[%s331 + $0xbc] sm:$0xf]
                  %392 = vst [vmem:[%s332 + $0x74] sm:$0xf] %v391
                  %v393 = vld [vmem:[%s331 + $0xc0] sm:$0xf]
                  %394 = vst [vmem:[%s332 + $0x78] sm:$0xf] %v393
                  %v395 = vld [vmem:[%s331 + $0xc4] sm:$0xf]
                  %396 = vst [vmem:[%s332 + $0x7c] sm:$0xf] %v395
                  %v397 = vld [vmem:[%s331 + $0xc8] sm:$0xf]
                  %398 = vst [vmem:[%s332 + $0x80] sm:$0xf] %v397
                  %v399 = vld [vmem:[%s331 + $0xcc] sm:$0xf]
                  %400 = vst [vmem:[%s332 + $0x84] sm:$0xf] %v399
                  %v401 = vld [vmem:[%s331 + $0xd0] sm:$0xf]
                  %402 = vst [vmem:[%s332 + $0x88] sm:$0xf] %v401
                  %v403 = vld [vmem:[%s331 + $0xd4] sm:$0xf]
                  %404 = vst [vmem:[%s332 + $0x8c] sm:$0xf] %v403
                  %v405 = vld [vmem:[%s331 + $0x120] sm:$0xf]
                  %406 = vst [vmem:[%s332 + $0x90] sm:$0xf] %v405
                  %v407 = vld [vmem:[%s331 + $0x124] sm:$0xf]
                  %408 = vst [vmem:[%s332 + $0x94] sm:$0xf] %v407
                  %v409 = vld [vmem:[%s331 + $0x128] sm:$0xf]
                  %410 = vst [vmem:[%s332 + $0x98] sm:$0xf] %v409
                  %v411 = vld [vmem:[%s331 + $0x12c] sm:$0xf]
                  %412 = vst [vmem:[%s332 + $0x9c] sm:$0xf] %v411
                  %v413 = vld [vmem:[%s331 + $0x130] sm:$0xf]
                  %414 = vst [vmem:[%s332 + $0xa0] sm:$0xf] %v413
                  %v415 = vld [vmem:[%s331 + $0x134] sm:$0xf]
                  %416 = vst [vmem:[%s332 + $0xa4] sm:$0xf] %v415
                  %v417 = vld [vmem:[%s331 + $0x138] sm:$0xf]
                  %418 = vst [vmem:[%s332 + $0xa8] sm:$0xf] %v417
                  %v419 = vld [vmem:[%s331 + $0x13c] sm:$0xf]
                  %420 = vst [vmem:[%s332 + $0xac] sm:$0xf] %v419
                  %v421 = vld [vmem:[%s331 + $0x140] sm:$0xf]
                  %422 = vst [vmem:[%s332 + $0xb0] sm:$0xf] %v421
                  %v423 = vld [vmem:[%s331 + $0x144] sm:$0xf]
                  %424 = vst [vmem:[%s332 + $0xb4] sm:$0xf] %v423
                  %v425 = vld [vmem:[%s331 + $0x148] sm:$0xf]
                  %426 = vst [vmem:[%s332 + $0xb8] sm:$0xf] %v425
                  %v427 = vld [vmem:[%s331 + $0x14c] sm:$0xf]
                  %428 = vst [vmem:[%s332 + $0xbc] sm:$0xf] %v427
                  %v429 = vld [vmem:[%s331 + $0x150] sm:$0xf]
                  %430 = vst [vmem:[%s332 + $0xc0] sm:$0xf] %v429
                  %v431 = vld [vmem:[%s331 + $0x154] sm:$0xf]
                  %432 = vst [vmem:[%s332 + $0xc4] sm:$0xf] %v431
                  %v433 = vld [vmem:[%s331 + $0x158] sm:$0xf]
                  %434 = vst [vmem:[%s332 + $0xc8] sm:$0xf] %v433
                  %v435 = vld [vmem:[%s331 + $0x15c] sm:$0xf]
                  %436 = vst [vmem:[%s332 + $0xcc] sm:$0xf] %v435
                  %v437 = vld [vmem:[%s331 + $0x160] sm:$0xf]
                  %438 = vst [vmem:[%s332 + $0xd0] sm:$0xf] %v437
                  %v439 = vld [vmem:[%s331 + $0x164] sm:$0xf]
                  %440 = vst [vmem:[%s332 + $0xd4] sm:$0xf] %v439
                  %v441 = vld [vmem:[%s331 + $0x1b0] sm:$0xf]
                  %442 = vst [vmem:[%s332 + $0xd8] sm:$0xf] %v441
                  %v443 = vld [vmem:[%s331 + $0x1b4] sm:$0xf]
                  %444 = vst [vmem:[%s332 + $0xdc] sm:$0xf] %v443
                  %v445 = vld [vmem:[%s331 + $0x1b8] sm:$0xf]
                  %446 = vst [vmem:[%s332 + $0xe0] sm:$0xf] %v445
                  %v447 = vld [vmem:[%s331 + $0x1bc] sm:$0xf]
                  %448 = vst [vmem:[%s332 + $0xe4] sm:$0xf] %v447
                  %v449 = vld [vmem:[%s331 + $0x1c0] sm:$0xf]
                  %450 = vst [vmem:[%s332 + $0xe8] sm:$0xf] %v449
                  %v451 = vld [vmem:[%s331 + $0x1c4] sm:$0xf]
                  %452 = vst [vmem:[%s332 + $0xec] sm:$0xf] %v451
                  %v453 = vld [vmem:[%s331 + $0x1c8] sm:$0xf]
                  %454 = vst [vmem:[%s332 + $0xf0] sm:$0xf] %v453
                  %v455 = vld [vmem:[%s331 + $0x1cc] sm:$0xf]
                  %456 = vst [vmem:[%s332 + $0xf4] sm:$0xf] %v455
                  %v457 = vld [vmem:[%s331 + $0x1d0] sm:$0xf]
                  %458 = vst [vmem:[%s332 + $0xf8] sm:$0xf] %v457
                  %v459 = vld [vmem:[%s331 + $0x1d4] sm:$0xf]
                  %460 = vst [vmem:[%s332 + $0xfc] sm:$0xf] %v459
                  %v461 = vld [vmem:[%s331 + $0x1d8] sm:$0xf]
                  %462 = vst [vmem:[%s332 + $0x100] sm:$0xf] %v461
                  %v463 = vld [vmem:[%s331 + $0x1dc] sm:$0xf]
                  %464 = vst [vmem:[%s332 + $0x104] sm:$0xf] %v463
                  %v465 = vld [vmem:[%s331 + $0x1e0] sm:$0xf]
                  %466 = vst [vmem:[%s332 + $0x108] sm:$0xf] %v465
                  %v467 = vld [vmem:[%s331 + $0x1e4] sm:$0xf]
                  %468 = vst [vmem:[%s332 + $0x10c] sm:$0xf] %v467
                  %v469 = vld [vmem:[%s331 + $0x1e8] sm:$0xf]
                  %470 = vst [vmem:[%s332 + $0x110] sm:$0xf] %v469
                  %v471 = vld [vmem:[%s331 + $0x1ec] sm:$0xf]
                  %472 = vst [vmem:[%s332 + $0x114] sm:$0xf] %v471
                  %v473 = vld [vmem:[%s331 + $0x1f0] sm:$0xf]
                  %474 = vst [vmem:[%s332 + $0x118] sm:$0xf] %v473
                  %v475 = vld [vmem:[%s331 + $0x1f4] sm:$0xf]
                  %476 = vst [vmem:[%s332 + $0x11c] sm:$0xf] %v475
                $region63: #{end_layer_forward.4} parent=50 // loop_footer
                  %s330 = sadd.s32 1, %s326
                $region64: #{end_layer_forward.4} parent=50 // loop_footer_branch
                  %325 = sbr.rel target = $region60
                $region65: #{end_layer_forward.4} parent=50 // loop_exit
                  _
              $region51: #{end_layer_forward.4} parent=35 // pred_fallthru
                _
            $region36: #{end_layer_forward.4} parent=31 // pred_fallthru
              _
            // Predicated region
            $region37: #{end_layer_forward.4} parent=31 // pred_check
              _
            $region38: #{end_layer_forward.4} parent=31 // pred_check_branch
              %160 = sbr.rel (0) target = $region40
            $region39: #{end_layer_forward.4} parent=31 // pred_region
              loop: start=0, step=1, limit=1
              $region41: #{end_layer_forward.4} parent=39 // loop_pre_header
                _
              $region42: #{end_layer_forward.4} parent=39 // loop_header
                %s163 = sphi 0, %s167
                %p164 = scmp.ge.s32.totalorder %s163, 1
                %s168 = sphi %s154, %s154
                %s169 = sphi %s150, %s150
              $region43: #{end_layer_forward.4} parent=39 // loop_header_branch
                %166 = sbr.rel (%p164) target = $region47
              $region44: #{end_layer_forward.4} parent=39 // loop_body
                %v170 = vld [vmem:[%s168] sm:$0xf]
                %171 = vst [vmem:[%s169] sm:$0xf] %v170
                %v172 = vld [vmem:[%s168 + $0x4] sm:$0xf]
                %173 = vst [vmem:[%s169 + $0x4] sm:$0xf] %v172
                %v174 = vld [vmem:[%s168 + $0x8] sm:$0xf]
                %175 = vst [vmem:[%s169 + $0x8] sm:$0xf] %v174
                %v176 = vld [vmem:[%s168 + $0xc] sm:$0xf]
                %177 = vst [vmem:[%s169 + $0xc] sm:$0xf] %v176
                %v178 = vld [vmem:[%s168 + $0x10] sm:$0xf]
                %179 = vst [vmem:[%s169 + $0x10] sm:$0xf] %v178
                %v180 = vld [vmem:[%s168 + $0x14] sm:$0xf]
                %181 = vst [vmem:[%s169 + $0x14] sm:$0xf] %v180
                %v182 = vld [vmem:[%s168 + $0x18] sm:$0xf]
                %183 = vst [vmem:[%s169 + $0x18] sm:$0xf] %v182
                %v184 = vld [vmem:[%s168 + $0x1c] sm:$0xf]
                %185 = vst [vmem:[%s169 + $0x1c] sm:$0xf] %v184
                %v186 = vld [vmem:[%s168 + $0x20] sm:$0xf]
                %187 = vst [vmem:[%s169 + $0x20] sm:$0xf] %v186
                %v188 = vld [vmem:[%s168 + $0x24] sm:$0xf]
                %189 = vst [vmem:[%s169 + $0x24] sm:$0xf] %v188
                %v190 = vld [vmem:[%s168 + $0x28] sm:$0xf]
                %191 = vst [vmem:[%s169 + $0x28] sm:$0xf] %v190
                %v192 = vld [vmem:[%s168 + $0x2c] sm:$0xf]
                %193 = vst [vmem:[%s169 + $0x2c] sm:$0xf] %v192
                %v194 = vld [vmem:[%s168 + $0x30] sm:$0xf]
                %195 = vst [vmem:[%s169 + $0x30] sm:$0xf] %v194
                %v196 = vld [vmem:[%s168 + $0x34] sm:$0xf]
                %197 = vst [vmem:[%s169 + $0x34] sm:$0xf] %v196
                %v198 = vld [vmem:[%s168 + $0x38] sm:$0xf]
                %199 = vst [vmem:[%s169 + $0x38] sm:$0xf] %v198
                %v200 = vld [vmem:[%s168 + $0x3c] sm:$0xf]
                %201 = vst [vmem:[%s169 + $0x3c] sm:$0xf] %v200
                %v202 = vld [vmem:[%s168 + $0x40] sm:$0xf]
                %203 = vst [vmem:[%s169 + $0x40] sm:$0xf] %v202
                %v204 = vld [vmem:[%s168 + $0x44] sm:$0xf]
                %205 = vst [vmem:[%s169 + $0x44] sm:$0xf] %v204
                %v206 = vld [vmem:[%s168 + $0x90] sm:$0xf]
                %207 = vst [vmem:[%s169 + $0x48] sm:$0xf] %v206
                %v208 = vld [vmem:[%s168 + $0x94] sm:$0xf]
                %209 = vst [vmem:[%s169 + $0x4c] sm:$0xf] %v208
                %v210 = vld [vmem:[%s168 + $0x98] sm:$0xf]
                %211 = vst [vmem:[%s169 + $0x50] sm:$0xf] %v210
                %v212 = vld [vmem:[%s168 + $0x9c] sm:$0xf]
                %213 = vst [vmem:[%s169 + $0x54] sm:$0xf] %v212
                %v214 = vld [vmem:[%s168 + $0xa0] sm:$0xf]
                %215 = vst [vmem:[%s169 + $0x58] sm:$0xf] %v214
                %v216 = vld [vmem:[%s168 + $0xa4] sm:$0xf]
                %217 = vst [vmem:[%s169 + $0x5c] sm:$0xf] %v216
                %v218 = vld [vmem:[%s168 + $0xa8] sm:$0xf]
                %219 = vst [vmem:[%s169 + $0x60] sm:$0xf] %v218
                %v220 = vld [vmem:[%s168 + $0xac] sm:$0xf]
                %221 = vst [vmem:[%s169 + $0x64] sm:$0xf] %v220
                %v222 = vld [vmem:[%s168 + $0xb0] sm:$0xf]
                %223 = vst [vmem:[%s169 + $0x68] sm:$0xf] %v222
                %v224 = vld [vmem:[%s168 + $0xb4] sm:$0xf]
                %225 = vst [vmem:[%s169 + $0x6c] sm:$0xf] %v224
                %v226 = vld [vmem:[%s168 + $0xb8] sm:$0xf]
                %227 = vst [vmem:[%s169 + $0x70] sm:$0xf] %v226
                %v228 = vld [vmem:[%s168 + $0xbc] sm:$0xf]
                %229 = vst [vmem:[%s169 + $0x74] sm:$0xf] %v228
                %v230 = vld [vmem:[%s168 + $0xc0] sm:$0xf]
                %231 = vst [vmem:[%s169 + $0x78] sm:$0xf] %v230
                %v232 = vld [vmem:[%s168 + $0xc4] sm:$0xf]
                %233 = vst [vmem:[%s169 + $0x7c] sm:$0xf] %v232
                %v234 = vld [vmem:[%s168 + $0xc8] sm:$0xf]
                %235 = vst [vmem:[%s169 + $0x80] sm:$0xf] %v234
                %v236 = vld [vmem:[%s168 + $0xcc] sm:$0xf]
                %237 = vst [vmem:[%s169 + $0x84] sm:$0xf] %v236
                %v238 = vld [vmem:[%s168 + $0xd0] sm:$0xf]
                %239 = vst [vmem:[%s169 + $0x88] sm:$0xf] %v238
                %v240 = vld [vmem:[%s168 + $0xd4] sm:$0xf]
                %241 = vst [vmem:[%s169 + $0x8c] sm:$0xf] %v240
                %v242 = vld [vmem:[%s168 + $0x120] sm:$0xf]
                %243 = vst [vmem:[%s169 + $0x90] sm:$0xf] %v242
                %v244 = vld [vmem:[%s168 + $0x124] sm:$0xf]
                %245 = vst [vmem:[%s169 + $0x94] sm:$0xf] %v244
                %v246 = vld [vmem:[%s168 + $0x128] sm:$0xf]
                %247 = vst [vmem:[%s169 + $0x98] sm:$0xf] %v246
                %v248 = vld [vmem:[%s168 + $0x12c] sm:$0xf]
                %249 = vst [vmem:[%s169 + $0x9c] sm:$0xf] %v248
                %v250 = vld [vmem:[%s168 + $0x130] sm:$0xf]
                %251 = vst [vmem:[%s169 + $0xa0] sm:$0xf] %v250
                %v252 = vld [vmem:[%s168 + $0x134] sm:$0xf]
                %253 = vst [vmem:[%s169 + $0xa4] sm:$0xf] %v252
                %v254 = vld [vmem:[%s168 + $0x138] sm:$0xf]
                %255 = vst [vmem:[%s169 + $0xa8] sm:$0xf] %v254
                %v256 = vld [vmem:[%s168 + $0x13c] sm:$0xf]
                %257 = vst [vmem:[%s169 + $0xac] sm:$0xf] %v256
                %v258 = vld [vmem:[%s168 + $0x140] sm:$0xf]
                %259 = vst [vmem:[%s169 + $0xb0] sm:$0xf] %v258
                %v260 = vld [vmem:[%s168 + $0x144] sm:$0xf]
                %261 = vst [vmem:[%s169 + $0xb4] sm:$0xf] %v260
                %v262 = vld [vmem:[%s168 + $0x148] sm:$0xf]
                %263 = vst [vmem:[%s169 + $0xb8] sm:$0xf] %v262
                %v264 = vld [vmem:[%s168 + $0x14c] sm:$0xf]
                %265 = vst [vmem:[%s169 + $0xbc] sm:$0xf] %v264
                %v266 = vld [vmem:[%s168 + $0x150] sm:$0xf]
                %267 = vst [vmem:[%s169 + $0xc0] sm:$0xf] %v266
                %v268 = vld [vmem:[%s168 + $0x154] sm:$0xf]
                %269 = vst [vmem:[%s169 + $0xc4] sm:$0xf] %v268
                %v270 = vld [vmem:[%s168 + $0x158] sm:$0xf]
                %271 = vst [vmem:[%s169 + $0xc8] sm:$0xf] %v270
                %v272 = vld [vmem:[%s168 + $0x15c] sm:$0xf]
                %273 = vst [vmem:[%s169 + $0xcc] sm:$0xf] %v272
                %v274 = vld [vmem:[%s168 + $0x160] sm:$0xf]
                %275 = vst [vmem:[%s169 + $0xd0] sm:$0xf] %v274
                %v276 = vld [vmem:[%s168 + $0x164] sm:$0xf]
                %277 = vst [vmem:[%s169 + $0xd4] sm:$0xf] %v276
                %v278 = vld [vmem:[%s168 + $0x1b0] sm:$0xf]
                %279 = vst [vmem:[%s169 + $0xd8] sm:$0xf] %v278
                %v280 = vld [vmem:[%s168 + $0x1b4] sm:$0xf]
                %281 = vst [vmem:[%s169 + $0xdc] sm:$0xf] %v280
                %v282 = vld [vmem:[%s168 + $0x1b8] sm:$0xf]
                %283 = vst [vmem:[%s169 + $0xe0] sm:$0xf] %v282
                %v284 = vld [vmem:[%s168 + $0x1bc] sm:$0xf]
                %285 = vst [vmem:[%s169 + $0xe4] sm:$0xf] %v284
                %v286 = vld [vmem:[%s168 + $0x1c0] sm:$0xf]
                %287 = vst [vmem:[%s169 + $0xe8] sm:$0xf] %v286
                %v288 = vld [vmem:[%s168 + $0x1c4] sm:$0xf]
                %289 = vst [vmem:[%s169 + $0xec] sm:$0xf] %v288
                %v290 = vld [vmem:[%s168 + $0x1c8] sm:$0xf]
                %291 = vst [vmem:[%s169 + $0xf0] sm:$0xf] %v290
                %v292 = vld [vmem:[%s168 + $0x1cc] sm:$0xf]
                %293 = vst [vmem:[%s169 + $0xf4] sm:$0xf] %v292
                %v294 = vld [vmem:[%s168 + $0x1d0] sm:$0xf]
                %295 = vst [vmem:[%s169 + $0xf8] sm:$0xf] %v294
                %v296 = vld [vmem:[%s168 + $0x1d4] sm:$0xf]
                %297 = vst [vmem:[%s169 + $0xfc] sm:$0xf] %v296
                %v298 = vld [vmem:[%s168 + $0x1d8] sm:$0xf]
                %299 = vst [vmem:[%s169 + $0x100] sm:$0xf] %v298
                %v300 = vld [vmem:[%s168 + $0x1dc] sm:$0xf]
                %301 = vst [vmem:[%s169 + $0x104] sm:$0xf] %v300
                %v302 = vld [vmem:[%s168 + $0x1e0] sm:$0xf]
                %303 = vst [vmem:[%s169 + $0x108] sm:$0xf] %v302
                %v304 = vld [vmem:[%s168 + $0x1e4] sm:$0xf]
                %305 = vst [vmem:[%s169 + $0x10c] sm:$0xf] %v304
                %v306 = vld [vmem:[%s168 + $0x1e8] sm:$0xf]
                %307 = vst [vmem:[%s169 + $0x110] sm:$0xf] %v306
                %v308 = vld [vmem:[%s168 + $0x1ec] sm:$0xf]
                %309 = vst [vmem:[%s169 + $0x114] sm:$0xf] %v308
                %v310 = vld [vmem:[%s168 + $0x1f0] sm:$0xf]
                %311 = vst [vmem:[%s169 + $0x118] sm:$0xf] %v310
                %v312 = vld [vmem:[%s168 + $0x1f4] sm:$0xf]
                %313 = vst [vmem:[%s169 + $0x11c] sm:$0xf] %v312
              $region45: #{end_layer_forward.4} parent=39 // loop_footer
                %s167 = sadd.s32 1, %s163
              $region46: #{end_layer_forward.4} parent=39 // loop_footer_branch
                %162 = sbr.rel target = $region42
              $region47: #{end_layer_forward.4} parent=39 // loop_exit
                _
            $region40: #{end_layer_forward.4} parent=31 // pred_fallthru
              _
          $region32: #{end_layer_forward.4} parent=27 // pred_fallthru
            _
          %477 = vnop
        $region28: #{end_layer_forward.4} parent=23 // pred_fallthru
          _
      $region24: #{end_layer_forward.4} parent=5 // pred_fallthru
        _
      %p478 = scmp.le.s32.totalorder 1, %s9
      %p479 = scmp.lt.s32.totalorder %s9, 3
      %p480 = pnand %p478, %p479
      %p481 = pneg %p480
      // Predicated region
      $region66: #{end_layer_forward.4} parent=5 // pred_check
        _
      $region67: #{end_layer_forward.4} parent=5 // pred_check_branch
        %483 = sbr.rel (%p480) target = $region69
      $region68: #{end_layer_forward.4} parent=5 // pred_region
        %s484 = ssub.s32 %s9, 1
        %s485 = sand.u32 %s36, 1
        %s486 = sand.u32 %s36, 1
        %s487 = smul.addr %s486, 288
        %s488 = scalar_lea.vmem [#allocation2], %s487
        // Predicated region
        $region70: #{end_layer_forward.4} parent=68 // pred_check
          %p489 = pneg %p49
        $region71: #{end_layer_forward.4} parent=68 // pred_check_branch
          %491 = sbr.rel (%p489) target = $region73
        $region72: #{end_layer_forward.4} parent=68 // pred_region
          _
        $region73: #{end_layer_forward.4} parent=68 // pred_fallthru
          _
        %s492 = sand.u32 %s36, 1
        %s493 = sand.u32 %s36, 1
        %s494 = smul.addr %s493, 288
        %s495 = scalar_lea.vmem [#allocation2], %s494
        %p496 = pneg %p49
        %p497 = pneg %p46
        %p498 = pneg %p70
        %p499 = pneg %p67
        %p500 = pneg %p91
        %p501 = pneg %p88
        %p502 = pneg %p119
        %p503 = pneg %p116
        %p504 = scmp.lt.s32.totalorder %s18, 1
        %s505 = scalar_select %p504, %s18, 1
        %p506 = scmp.lt.s32.totalorder %s19, 0
        %s507 = scalar_select %p506, %s19, 0
        %s508 = smul.addr %s505, 4
        %s509 = sadd.s32 %s507, %s508
        %s510 = smul.addr %s509, 4
        %s511 = scalar_lea.vmem %s3, %s510
        %p512 = scmp.lt.s32.totalorder %s18, 1
        %s513 = scalar_select %p512, %s18, 1
        %p514 = scmp.lt.s32.totalorder %s19, 0
        %s515 = scalar_select %p514, %s19, 0
        %s516 = smul.addr %s513, 4
        %s517 = sadd.s32 %s515, %s516
        %s518 = smul.addr %s517, 4
        %s519 = scalar_lea.vmem %s3, %s518
        %v521 = vld [vmem:[%s1] sm:$0xff]
        %v522 = vld [vmem:[%s1 + $0x8] sm:$0xff]
        %v523 = vld [vmem:[%s1 + $0x10] sm:$0xff]
        %v524 = vld [vmem:[%s1 + $0x18] sm:$0xff]
        %v525 = vld [vmem:[%s488] sm:$0xf]
        %v526 = vld [vmem:[%s488 + $0x4] sm:$0xf]
        %v527 = vld [vmem:[%s488 + $0x8] sm:$0xf]
        %v528 = vld [vmem:[%s488 + $0xc] sm:$0xf]
        %v529 = vld [vmem:[%s488 + $0x10] sm:$0xf]
        %v530 = vld [vmem:[%s488 + $0x14] sm:$0xf]
        %v531 = vld [vmem:[%s488 + $0x18] sm:$0xf]
        %v532 = vld [vmem:[%s488 + $0x1c] sm:$0xf]
        %v533 = vld [vmem:[%s488 + $0x20] sm:$0xf]
        %v534 = vld [vmem:[%s488 + $0x24] sm:$0xf]
        %v535 = vld [vmem:[%s488 + $0x28] sm:$0xf]
        %v536 = vld [vmem:[%s488 + $0x2c] sm:$0xf]
        %v537 = vld [vmem:[%s488 + $0x30] sm:$0xf]
        %v538 = vld [vmem:[%s488 + $0x34] sm:$0xf]
        %v539 = vld [vmem:[%s488 + $0x38] sm:$0xf]
        %v540 = vld [vmem:[%s488 + $0x3c] sm:$0xf]
        %v541 = vld [vmem:[%s488 + $0x40] sm:$0xf]
        %v542 = vld [vmem:[%s488 + $0x44] sm:$0xf]
        %v547 = vunpack.c.l.b16 %v521
        %v548 = vunpack.c.h.b16 %v521
        %v549 = vunpack.c.l.b16 %v522
        %v550 = vunpack.c.h.b16 %v522
        %v551 = vunpack.c.l.b16 %v523
        %v552 = vunpack.c.h.b16 %v523
        %v553 = vunpack.c.l.b16 %v524
        %v554 = vunpack.c.h.b16 %v524
        %v555 = vpack.c.b16 %v549, %v547
        %v556 = vpack.c.b16 %v550, %v548
        %v557 = vpack.c.b16 %v553, %v551
        %v558 = vpack.c.b16 %v554, %v552
        %v579 = vunpack.c.l.b16 %v525
        %v580 = vunpack.c.l.b16 %v526
        %v581 = vunpack.c.l.b16 %v527
        %v582 = vunpack.c.l.b16 %v528
        %v583 = vunpack.c.l.b16 %v529
        %v584 = vunpack.c.l.b16 %v530
        %v585 = vunpack.c.l.b16 %v531
        %v586 = vunpack.c.l.b16 %v532
        %v587 = vunpack.c.l.b16 %v533
        %v588 = vunpack.c.l.b16 %v534
        %v589 = vunpack.c.l.b16 %v535
        %v590 = vunpack.c.l.b16 %v536
        %v591 = vunpack.c.l.b16 %v537
        %v592 = vunpack.c.l.b16 %v538
        %v593 = vunpack.c.l.b16 %v539
        %v594 = vunpack.c.l.b16 %v540
        %v595 = vunpack.c.l.b16 %v541
        %v596 = vunpack.c.l.b16 %v542
        %v597 = vpack.c.b16 %v580, %v579
        %v598 = vpack.c.b16 %v582, %v581
        %v599 = vpack.c.b16 %v584, %v583
        %v600 = vpack.c.b16 %v586, %v585
        %v601 = vpack.c.b16 %v588, %v587
        %v602 = vpack.c.b16 %v590, %v589
        %v603 = vpack.c.b16 %v592, %v591
        %v604 = vpack.c.b16 %v594, %v593
        %v605 = vpack.c.b16 %v596, %v595
        %vm615 = vcmask 130048
        %v617 = vsel %vm615, %v556, 0
        %v620 = vsel %vm615, %v558, 0
        %622 = vmatprep.subr.bf16.mxu0 0
        %623 = vmatpush1.bf16.msra.mxu0 %v597
        %624 = vmatprep.subr.bf16.mxu0 0
        %625 = vmatpush1.bf16.msra.mxu0 %v598
        %626 = vmatprep.subr.bf16.mxu0 0
        %627 = vmatpush1.bf16.msra.mxu0 %v599
        %628 = vmatprep.subr.bf16.mxu0 0
        %629 = vmatpush1.bf16.msra.mxu0 %v600
        %630 = vmatprep.subr.bf16.mxu0 0
        %631 = vmatpush1.bf16.msra.mxu0 %v601
        %632 = vmatprep.subr.bf16.mxu0 0
        %633 = vmatpush1.bf16.msra.mxu0 %v602
        %634 = vmatprep.subr.bf16.mxu0 0
        %635 = vmatpush1.bf16.msra.mxu0 %v603
        %636 = vmatprep.subr.bf16.mxu0 0
        %637 = vmatpush1.bf16.msra.mxu0 %v604
        %638 = vmatprep.subr.bf16.mxu0 0
        %639 = vmatpush1.bf16.msra.mxu0 %v605
        %640 = vmatprep.subr.bf16.mxu0 0
        %641 = vmatpush1.bf16.msra.mxu0 0
        %642 = vmatprep.subr.bf16.mxu0 0
        %643 = vmatpush1.bf16.msra.mxu0 0
        %644 = vmatprep.subr.bf16.mxu0 0
        %645 = vmatpush1.bf16.msra.mxu0 0
        %646 = vmatprep.subr.bf16.mxu0 0
        %647 = vmatpush1.bf16.msra.mxu0 0
        %648 = vmatprep.subr.bf16.mxu0 0
        %649 = vmatpush1.bf16.msra.mxu0 0
        %650 = vmatprep.subr.bf16.mxu0 0
        %651 = vmatpush1.bf16.msra.mxu0 0
        %652 = vmatprep.subr.bf16.mxu0 0
        %653 = vmatpush1.bf16.msra.mxu0 0
        %654 = vmatprep.mubr.bf16.mxu0 %v617
        %655 = vmatmul.mubr.bf16.gmra.mrb[0].mxu0 %v555
        %v656 = vpop.f32.mrb[0].mxu0
        %v657 = vadd.f32 0.0, %v656
        %v658 = vpop.f32.mrb[0].mxu0
        %v659 = vpop.f32.mrb[0].mxu0
        %v660 = vadd.f32 0.0, %v659
        %v661 = vpop.f32.mrb[0].mxu0
        %662 = vmatprep.mubr.bf16.mxu0 %v620
        %663 = vmatmul.mubr.bf16.gmra.mrb[0].mxu0 %v557
        %v664 = vpop.f32.mrb[0].mxu0
        %v665 = vadd.f32 0.0, %v664
        %v666 = vpop.f32.mrb[0].mxu0
        %v667 = vpop.f32.mrb[0].mxu0
        %v668 = vadd.f32 0.0, %v667
        %v669 = vpop.f32.mrb[0].mxu0
        %670 = vdwg.mxu0
        %s671 = scalar_lea.vmem %s488, 72 [#allocation2]
        %v672 = vld [vmem:[%s671] sm:$0xf]
        %v673 = vld [vmem:[%s671 + $0x4] sm:$0xf]
        %v674 = vld [vmem:[%s671 + $0x8] sm:$0xf]
        %v675 = vld [vmem:[%s671 + $0xc] sm:$0xf]
        %v676 = vld [vmem:[%s671 + $0x10] sm:$0xf]
        %v677 = vld [vmem:[%s671 + $0x14] sm:$0xf]
        %v678 = vld [vmem:[%s671 + $0x18] sm:$0xf]
        %v679 = vld [vmem:[%s671 + $0x1c] sm:$0xf]
        %v680 = vld [vmem:[%s671 + $0x20] sm:$0xf]
        %v681 = vld [vmem:[%s671 + $0x24] sm:$0xf]
        %v682 = vld [vmem:[%s671 + $0x28] sm:$0xf]
        %v683 = vld [vmem:[%s671 + $0x2c] sm:$0xf]
        %v684 = vld [vmem:[%s671 + $0x30] sm:$0xf]
        %v685 = vld [vmem:[%s671 + $0x34] sm:$0xf]
        %v686 = vld [vmem:[%s671 + $0x38] sm:$0xf]
        %v687 = vld [vmem:[%s671 + $0x3c] sm:$0xf]
        %v688 = vld [vmem:[%s671 + $0x40] sm:$0xf]
        %v689 = vld [vmem:[%s671 + $0x44] sm:$0xf]
        %v708 = vunpack.c.l.b16 %v672
        %v709 = vunpack.c.l.b16 %v673
        %v710 = vunpack.c.l.b16 %v674
        %v711 = vunpack.c.l.b16 %v675
        %v712 = vunpack.c.l.b16 %v676
        %v713 = vunpack.c.l.b16 %v677
        %v714 = vunpack.c.l.b16 %v678
        %v715 = vunpack.c.l.b16 %v679
        %v716 = vunpack.c.l.b16 %v680
        %v717 = vunpack.c.l.b16 %v681
        %v718 = vunpack.c.l.b16 %v682
        %v719 = vunpack.c.l.b16 %v683
        %v720 = vunpack.c.l.b16 %v684
        %v721 = vunpack.c.l.b16 %v685
        %v722 = vunpack.c.l.b16 %v686
        %v723 = vunpack.c.l.b16 %v687
        %v724 = vunpack.c.l.b16 %v688
        %v725 = vunpack.c.l.b16 %v689
        %v726 = vpack.c.b16 %v709, %v708
        %v727 = vpack.c.b16 %v711, %v710
        %v728 = vpack.c.b16 %v713, %v712
        %v729 = vpack.c.b16 %v715, %v714
        %v730 = vpack.c.b16 %v717, %v716
        %v731 = vpack.c.b16 %v719, %v718
        %v732 = vpack.c.b16 %v721, %v720
        %v733 = vpack.c.b16 %v723, %v722
        %v734 = vpack.c.b16 %v725, %v724
        %744 = vmatprep.subr.bf16.mxu0 0
        %745 = vmatpush1.bf16.msra.mxu0 %v726
        %746 = vmatprep.subr.bf16.mxu0 0
        %747 = vmatpush1.bf16.msra.mxu0 %v727
        %748 = vmatprep.subr.bf16.mxu0 0
        %749 = vmatpush1.bf16.msra.mxu0 %v728
        %750 = vmatprep.subr.bf16.mxu0 0
        %751 = vmatpush1.bf16.msra.mxu0 %v729
        %752 = vmatprep.subr.bf16.mxu0 0
        %753 = vmatpush1.bf16.msra.mxu0 %v730
        %754 = vmatprep.subr.bf16.mxu0 0
        %755 = vmatpush1.bf16.msra.mxu0 %v731
        %756 = vmatprep.subr.bf16.mxu0 0
        %757 = vmatpush1.bf16.msra.mxu0 %v732
        %758 = vmatprep.subr.bf16.mxu0 0
        %759 = vmatpush1.bf16.msra.mxu0 %v733
        %760 = vmatprep.subr.bf16.mxu0 0
        %761 = vmatpush1.bf16.msra.mxu0 %v734
        %762 = vmatprep.subr.bf16.mxu0 0
        %763 = vmatpush1.bf16.msra.mxu0 0
        %764 = vmatprep.subr.bf16.mxu0 0
        %765 = vmatpush1.bf16.msra.mxu0 0
        %766 = vmatprep.subr.bf16.mxu0 0
        %767 = vmatpush1.bf16.msra.mxu0 0
        %768 = vmatprep.subr.bf16.mxu0 0
        %769 = vmatpush1.bf16.msra.mxu0 0
        %770 = vmatprep.subr.bf16.mxu0 0
        %771 = vmatpush1.bf16.msra.mxu0 0
        %772 = vmatprep.subr.bf16.mxu0 0
        %773 = vmatpush1.bf16.msra.mxu0 0
        %774 = vmatprep.subr.bf16.mxu0 0
        %775 = vmatpush1.bf16.msra.mxu0 0
        %776 = vmatprep.mubr.bf16.mxu0 %v617
        %777 = vmatmul.mubr.bf16.gmra.mrb[0].mxu0 %v555
        %v778 = vpop.f32.mrb[0].mxu0
        %v779 = vadd.f32 0.0, %v778
        %v780 = vpop.f32.mrb[0].mxu0
        %v781 = vpop.f32.mrb[0].mxu0
        %v782 = vadd.f32 0.0, %v781
        %v783 = vpop.f32.mrb[0].mxu0
        %784 = vmatprep.mubr.bf16.mxu0 %v620
        %785 = vmatmul.mubr.bf16.gmra.mrb[0].mxu0 %v557
        %v786 = vpop.f32.mrb[0].mxu0
        %v787 = vadd.f32 0.0, %v786
        %v788 = vpop.f32.mrb[0].mxu0
        %v789 = vpop.f32.mrb[0].mxu0
        %v790 = vadd.f32 0.0, %v789
        %v791 = vpop.f32.mrb[0].mxu0
        %792 = vdwg.mxu0
        %v793 = vmax.f32 %v657, %v779
        %v794 = vmax.f32 %v660, %v782
        %v795 = vmax.f32 %v665, %v787
        %v796 = vmax.f32 %v668, %v790
        %s797 = scalar_lea.vmem %s488, 144 [#allocation2]
        %v798 = vld [vmem:[%s797] sm:$0xf]
        %v799 = vld [vmem:[%s797 + $0x4] sm:$0xf]
        %v800 = vld [vmem:[%s797 + $0x8] sm:$0xf]
        %v801 = vld [vmem:[%s797 + $0xc] sm:$0xf]
        %v802 = vld [vmem:[%s797 + $0x10] sm:$0xf]
        %v803 = vld [vmem:[%s797 + $0x14] sm:$0xf]
        %v804 = vld [vmem:[%s797 + $0x18] sm:$0xf]
        %v805 = vld [vmem:[%s797 + $0x1c] sm:$0xf]
        %v806 = vld [vmem:[%s797 + $0x20] sm:$0xf]
        %v807 = vld [vmem:[%s797 + $0x24] sm:$0xf]
        %v808 = vld [vmem:[%s797 + $0x28] sm:$0xf]
        %v809 = vld [vmem:[%s797 + $0x2c] sm:$0xf]
        %v810 = vld [vmem:[%s797 + $0x30] sm:$0xf]
        %v811 = vld [vmem:[%s797 + $0x34] sm:$0xf]
        %v812 = vld [vmem:[%s797 + $0x38] sm:$0xf]
        %v813 = vld [vmem:[%s797 + $0x3c] sm:$0xf]
        %v814 = vld [vmem:[%s797 + $0x40] sm:$0xf]
        %v815 = vld [vmem:[%s797 + $0x44] sm:$0xf]
        %v834 = vunpack.c.l.b16 %v798
        %v835 = vunpack.c.l.b16 %v799
        %v836 = vunpack.c.l.b16 %v800
        %v837 = vunpack.c.l.b16 %v801
        %v838 = vunpack.c.l.b16 %v802
        %v839 = vunpack.c.l.b16 %v803
        %v840 = vunpack.c.l.b16 %v804
        %v841 = vunpack.c.l.b16 %v805
        %v842 = vunpack.c.l.b16 %v806
        %v843 = vunpack.c.l.b16 %v807
        %v844 = vunpack.c.l.b16 %v808
        %v845 = vunpack.c.l.b16 %v809
        %v846 = vunpack.c.l.b16 %v810
        %v847 = vunpack.c.l.b16 %v811
        %v848 = vunpack.c.l.b16 %v812
        %v849 = vunpack.c.l.b16 %v813
        %v850 = vunpack.c.l.b16 %v814
        %v851 = vunpack.c.l.b16 %v815
        %v852 = vpack.c.b16 %v835, %v834
        %v853 = vpack.c.b16 %v837, %v836
        %v854 = vpack.c.b16 %v839, %v838
        %v855 = vpack.c.b16 %v841, %v840
        %v856 = vpack.c.b16 %v843, %v842
        %v857 = vpack.c.b16 %v845, %v844
        %v858 = vpack.c.b16 %v847, %v846
        %v859 = vpack.c.b16 %v849, %v848
        %v860 = vpack.c.b16 %v851, %v850
        %870 = vmatprep.subr.bf16.mxu0 0
        %871 = vmatpush1.bf16.msra.mxu0 %v852
        %872 = vmatprep.subr.bf16.mxu0 0
        %873 = vmatpush1.bf16.msra.mxu0 %v853
        %874 = vmatprep.subr.bf16.mxu0 0
        %875 = vmatpush1.bf16.msra.mxu0 %v854
        %876 = vmatprep.subr.bf16.mxu0 0
        %877 = vmatpush1.bf16.msra.mxu0 %v855
        %878 = vmatprep.subr.bf16.mxu0 0
        %879 = vmatpush1.bf16.msra.mxu0 %v856
        %880 = vmatprep.subr.bf16.mxu0 0
        %881 = vmatpush1.bf16.msra.mxu0 %v857
        %882 = vmatprep.subr.bf16.mxu0 0
        %883 = vmatpush1.bf16.msra.mxu0 %v858
        %884 = vmatprep.subr.bf16.mxu0 0
        %885 = vmatpush1.bf16.msra.mxu0 %v859
        %886 = vmatprep.subr.bf16.mxu0 0
        %887 = vmatpush1.bf16.msra.mxu0 %v860
        %888 = vmatprep.subr.bf16.mxu0 0
        %889 = vmatpush1.bf16.msra.mxu0 0
        %890 = vmatprep.subr.bf16.mxu0 0
        %891 = vmatpush1.bf16.msra.mxu0 0
        %892 = vmatprep.subr.bf16.mxu0 0
        %893 = vmatpush1.bf16.msra.mxu0 0
        %894 = vmatprep.subr.bf16.mxu0 0
        %895 = vmatpush1.bf16.msra.mxu0 0
        %896 = vmatprep.subr.bf16.mxu0 0
        %897 = vmatpush1.bf16.msra.mxu0 0
        %898 = vmatprep.subr.bf16.mxu0 0
        %899 = vmatpush1.bf16.msra.mxu0 0
        %900 = vmatprep.subr.bf16.mxu0 0
        %901 = vmatpush1.bf16.msra.mxu0 0
        %902 = vmatprep.mubr.bf16.mxu0 %v617
        %903 = vmatmul.mubr.bf16.gmra.mrb[0].mxu0 %v555
        %v904 = vpop.f32.mrb[0].mxu0
        %v905 = vadd.f32 0.0, %v904
        %v906 = vpop.f32.mrb[0].mxu0
        %v907 = vpop.f32.mrb[0].mxu0
        %v908 = vadd.f32 0.0, %v907
        %v909 = vpop.f32.mrb[0].mxu0
        %910 = vmatprep.mubr.bf16.mxu0 %v620
        %911 = vmatmul.mubr.bf16.gmra.mrb[0].mxu0 %v557
        %v912 = vpop.f32.mrb[0].mxu0
        %v913 = vadd.f32 0.0, %v912
        %v914 = vpop.f32.mrb[0].mxu0
        %v915 = vpop.f32.mrb[0].mxu0
        %v916 = vadd.f32 0.0, %v915
        %v917 = vpop.f32.mrb[0].mxu0
        %918 = vdwg.mxu0
        %v919 = vmax.f32 %v793, %v905
        %v920 = vmax.f32 %v794, %v908
        %v921 = vmax.f32 %v795, %v913
        %v922 = vmax.f32 %v796, %v916
        %s923 = scalar_lea.vmem %s488, 216 [#allocation2]
        %v924 = vld [vmem:[%s923] sm:$0xf]
        %v925 = vld [vmem:[%s923 + $0x4] sm:$0xf]
        %v926 = vld [vmem:[%s923 + $0x8] sm:$0xf]
        %v927 = vld [vmem:[%s923 + $0xc] sm:$0xf]
        %v928 = vld [vmem:[%s923 + $0x10] sm:$0xf]
        %v929 = vld [vmem:[%s923 + $0x14] sm:$0xf]
        %v930 = vld [vmem:[%s923 + $0x18] sm:$0xf]
        %v931 = vld [vmem:[%s923 + $0x1c] sm:$0xf]
        %v932 = vld [vmem:[%s923 + $0x20] sm:$0xf]
        %v933 = vld [vmem:[%s923 + $0x24] sm:$0xf]
        %v934 = vld [vmem:[%s923 + $0x28] sm:$0xf]
        %v935 = vld [vmem:[%s923 + $0x2c] sm:$0xf]
        %v936 = vld [vmem:[%s923 + $0x30] sm:$0xf]
        %v937 = vld [vmem:[%s923 + $0x34] sm:$0xf]
        %v938 = vld [vmem:[%s923 + $0x38] sm:$0xf]
        %v939 = vld [vmem:[%s923 + $0x3c] sm:$0xf]
        %v940 = vld [vmem:[%s923 + $0x40] sm:$0xf]
        %v941 = vld [vmem:[%s923 + $0x44] sm:$0xf]
        %v960 = vunpack.c.l.b16 %v924
        %v961 = vunpack.c.l.b16 %v925
        %v962 = vunpack.c.l.b16 %v926
        %v963 = vunpack.c.l.b16 %v927
        %v964 = vunpack.c.l.b16 %v928
        %v965 = vunpack.c.l.b16 %v929
        %v966 = vunpack.c.l.b16 %v930
        %v967 = vunpack.c.l.b16 %v931
        %v968 = vunpack.c.l.b16 %v932
        %v969 = vunpack.c.l.b16 %v933
        %v970 = vunpack.c.l.b16 %v934
        %v971 = vunpack.c.l.b16 %v935
        %v972 = vunpack.c.l.b16 %v936
        %v973 = vunpack.c.l.b16 %v937
        %v974 = vunpack.c.l.b16 %v938
        %v975 = vunpack.c.l.b16 %v939
        %v976 = vunpack.c.l.b16 %v940
        %v977 = vunpack.c.l.b16 %v941
        %v978 = vpack.c.b16 %v961, %v960
        %v979 = vpack.c.b16 %v963, %v962
        %v980 = vpack.c.b16 %v965, %v964
        %v981 = vpack.c.b16 %v967, %v966
        %v982 = vpack.c.b16 %v969, %v968
        %v983 = vpack.c.b16 %v971, %v970
        %v984 = vpack.c.b16 %v973, %v972
        %v985 = vpack.c.b16 %v975, %v974
        %v986 = vpack.c.b16 %v977, %v976
        %996 = vmatprep.subr.bf16.mxu0 0
        %997 = vmatpush1.bf16.msra.mxu0 %v978
        %998 = vmatprep.subr.bf16.mxu0 0
        %999 = vmatpush1.bf16.msra.mxu0 %v979
        %1000 = vmatprep.subr.bf16.mxu0 0
        %1001 = vmatpush1.bf16.msra.mxu0 %v980
        %1002 = vmatprep.subr.bf16.mxu0 0
        %1003 = vmatpush1.bf16.msra.mxu0 %v981
        %1004 = vmatprep.subr.bf16.mxu0 0
        %1005 = vmatpush1.bf16.msra.mxu0 %v982
        %1006 = vmatprep.subr.bf16.mxu0 0
        %1007 = vmatpush1.bf16.msra.mxu0 %v983
        %1008 = vmatprep.subr.bf16.mxu0 0
        %1009 = vmatpush1.bf16.msra.mxu0 %v984
        %1010 = vmatprep.subr.bf16.mxu0 0
        %1011 = vmatpush1.bf16.msra.mxu0 %v985
        %1012 = vmatprep.subr.bf16.mxu0 0
        %1013 = vmatpush1.bf16.msra.mxu0 %v986
        %1014 = vmatprep.subr.bf16.mxu0 0
        %1015 = vmatpush1.bf16.msra.mxu0 0
        %1016 = vmatprep.subr.bf16.mxu0 0
        %1017 = vmatpush1.bf16.msra.mxu0 0
        %1018 = vmatprep.subr.bf16.mxu0 0
        %1019 = vmatpush1.bf16.msra.mxu0 0
        %1020 = vmatprep.subr.bf16.mxu0 0
        %1021 = vmatpush1.bf16.msra.mxu0 0
        %1022 = vmatprep.subr.bf16.mxu0 0
        %1023 = vmatpush1.bf16.msra.mxu0 0
        %1024 = vmatprep.subr.bf16.mxu0 0
        %1025 = vmatpush1.bf16.msra.mxu0 0
        %1026 = vmatprep.subr.bf16.mxu0 0
        %1027 = vmatpush1.bf16.msra.mxu0 0
        %1028 = vmatprep.mubr.bf16.mxu0 %v617
        %1029 = vmatmul.mubr.bf16.gmra.mrb[0].mxu0 %v555
        %v1030 = vpop.f32.mrb[0].mxu0
        %v1031 = vadd.f32 0.0, %v1030
        %v1032 = vpop.f32.mrb[0].mxu0
        %v1033 = vpop.f32.mrb[0].mxu0
        %v1034 = vadd.f32 0.0, %v1033
        %v1035 = vpop.f32.mrb[0].mxu0
        %1036 = vmatprep.mubr.bf16.mxu0 %v620
        %1037 = vmatmul.mubr.bf16.gmra.mrb[0].mxu0 %v557
        %v1038 = vpop.f32.mrb[0].mxu0
        %v1039 = vadd.f32 0.0, %v1038
        %v1040 = vpop.f32.mrb[0].mxu0
        %v1041 = vpop.f32.mrb[0].mxu0
        %v1042 = vadd.f32 0.0, %v1041
        %v1043 = vpop.f32.mrb[0].mxu0
        %1044 = vdwg.mxu0
        %v1045 = vmax.f32 %v919, %v1031
        %v1046 = vmax.f32 %v920, %v1034
        %v1047 = vmax.f32 %v921, %v1039
        %v1048 = vmax.f32 %v922, %v1042
        %v1049 = vld [vmem:[%s2] sm:$0xff]
        %v1050 = vld [vmem:[%s2 + $0x8] sm:$0xff]
        %v1051 = vld [vmem:[%s2 + $0x10] sm:$0xff]
        %v1052 = vld [vmem:[%s2 + $0x18] sm:$0xff]
        %1054 = vset.pattern.permute.xlu0 0
        %1055 = vperm.xlu0 %1054, %v1049
        %v1056 = vpop.permute.xlu0 %1055
        %1059 = vset.pattern.permute.xlu0 0
        %1060 = vperm.xlu0 %1059, %v1050
        %v1061 = vpop.permute.xlu0 %1060
        %1064 = vset.pattern.permute.xlu0 0
        %1065 = vperm.xlu0 %1064, %v1051
        %v1066 = vpop.permute.xlu0 %1065
        %1069 = vset.pattern.permute.xlu0 0
        %1070 = vperm.xlu0 %1069, %v1052
        %v1071 = vpop.permute.xlu0 %1070
        %v1073 = vadd.f32 %v1045, %v1056
        %v1074 = vadd.f32 %v1046, %v1061
        %v1075 = vadd.f32 %v1047, %v1066
        %v1076 = vadd.f32 %v1048, %v1071
        %v1077 = vmax.f32 %v1073, 0.0
        %v1078 = vmax.f32 %v1074, 0.0
        %v1079 = vmax.f32 %v1075, 0.0
        %v1080 = vmax.f32 %v1076, 0.0
        %v1081 = vpack.c.bf16 %v1078, %v1077
        %v1082 = vpack.c.bf16 %v1080, %v1079
        %v1085 = vunpack.c.l.b16 %v1081
        %v1086 = vunpack.c.h.b16 %v1081
        %v1087 = vunpack.c.l.b16 %v1082
        %v1088 = vunpack.c.h.b16 %v1082
        %v1089 = vpack.c.b16 %v1085, %v1085
        %v1090 = vpack.c.b16 %v1086, %v1086
        %v1091 = vpack.c.b16 %v1087, %v1087
        %v1092 = vpack.c.b16 %v1088, %v1088
        %vm1097 = vcmask 519168
        %1098 = vst.msk [vmem:[%s519] sm:$0xf] %vm1097, %v1089
        %1099 = vst.msk [vmem:[%s519 + $0x4] sm:$0xf] %vm1097, %v1090
        %1100 = vst.msk [vmem:[%s519 + $0x8] sm:$0xf] %vm1097, %v1091
        %1101 = vst.msk [vmem:[%s519 + $0xc] sm:$0xf] %vm1097, %v1092
        %p1102 = scmp.lt.s32.totalorder %s18, 1
        %s1103 = scalar_select %p1102, %s18, 1
        %p1104 = scmp.lt.s32.totalorder %s19, 0
        %s1105 = scalar_select %p1104, %s19, 0
        %s1106 = smul.addr %s1103, 4
        %s1107 = sadd.s32 %s1105, %s1106
        %s1108 = smul.addr %s1107, 4
        %s1109 = scalar_lea.vmem %s3, %s1108
        // Predicated region
        $region74: #{end_layer_forward.4} parent=68 // pred_check
          %p1110 = pneg %p116
        $region75: #{end_layer_forward.4} parent=68 // pred_check_branch
          %1112 = sbr.rel (%p1110) target = $region77
        $region76: #{end_layer_forward.4} parent=68 // pred_region
          _
        $region77: #{end_layer_forward.4} parent=68 // pred_fallthru
          _
      $region69: #{end_layer_forward.4} parent=5 // pred_fallthru
        _
      %p1113 = scmp.le.s32.totalorder 2, %s9
      // Predicated region
      $region78: #{end_layer_forward.4} parent=5 // pred_check
        %p1114 = pneg %p1113
      $region79: #{end_layer_forward.4} parent=5 // pred_check_branch
        %1116 = sbr.rel (%p1114) target = $region81
      $region80: #{end_layer_forward.4} parent=5 // pred_region
        %s1117 = ssub.s32 %s9, 2
        // Predicated region
        $region82: #{end_layer_forward.4} parent=80 // pred_check
          %p1118 = pneg %p122
        $region83: #{end_layer_forward.4} parent=80 // pred_check_branch
          %1120 = sbr.rel (%p1118) target = $region85
        $region84: #{end_layer_forward.4} parent=80 // pred_region
          %p1121 = scmp.lt.s32.totalorder %s20, 1
          %s1122 = scalar_select %p1121, %s20, 1
          %p1123 = scmp.lt.s32.totalorder %s21, 0
          %s1124 = scalar_select %p1123, %s21, 0
          %s1125 = smul.addr %s1122, 4
          %s1126 = sadd.s32 %s1124, %s1125
          %s1127 = smul.addr %s1126, 4
          %s1128 = scalar_lea.vmem %s3, %s1127
        $region85: #{end_layer_forward.4} parent=80 // pred_fallthru
          _
      $region81: #{end_layer_forward.4} parent=5 // pred_fallthru
        _
    $region6: #{end_layer_forward.4} parent=1 // loop_footer
      %s13 = sadd.s32 1, %s9
    $region7: #{end_layer_forward.4} parent=1 // loop_footer_branch
      %8 = sbr.rel target = $region3
    $region8: #{end_layer_forward.4} parent=1 // loop_exit
      _

// kernel: tile.13
$region0: #{tile.13}
  #allocation0 [shape = 's32[1]{0}', space=sflag, size = 0x4, scoped, tag = 'scoped memory for tile.13']
  %s0 = inlined_call_operand.vmem [shape: f32[64], index: 0, kind: input, shape index: {}]
  %s1 = inlined_call_operand.vmem [shape: f32[4,64], index: 1, kind: output, shape index: {}]
  // Predicated region
  $region2: #{tile.13} parent=0 // pred_check
    _
  $region3: #{tile.13} parent=0 // pred_check_branch
    %3 = sbr.rel (0) target = $region5
  $region4: #{tile.13} parent=0 // pred_region
    _
  $region5: #{tile.13} parent=0 // pred_fallthru
    _
  %v4 = vld [vmem:[%s0] ss:$0 sm:$0xff]
  %5 = vst [vmem:[%s1] sm:$0xf] %v4

// kernel: tile.14
$region0: #{tile.14}
  %s0 = inlined_call_operand.vmem [shape: f32[4,64], index: 0, kind: input, shape index: {}]
  %s1 = inlined_call_operand.vmem [shape: f32[1,256], index: 1, kind: output, shape index: {}]
  $region1: #{tile.14} parent=0
    #allocation0 [shape = 'u8[8192]{0}', space=vmem, size = 0x2000, scoped, tag = 'scoped mem for output reshape']
    #allocation1 [shape = 'u8[4096]{0}', space=vmem, size = 0x1000, scoped, tag = 'scoped mem for input reshape']
    %s3 = sshllo.u32 0, 4
    %v4 = vld [vmem:[%s0] sm:%s3]
    %5 = vst [vmem:[#allocation1] sm:%s3] %v4
    %s6 = smov 3
    %v7 = vld [vmem:[#allocation1] ss:$2 sm:%s6]
    %vm8 = vcmask 523264
    %9 = vst.msk [vmem:[#allocation0] ss:$8 sm:$0x3] %vm8, %v7
    %s10 = scalar_lea.vmem [#allocation1], 1
    %s11 = smov 3
    %v12 = vld [vmem:[%s10] ss:$2 sm:%s11]
    %13 = vrot.lane.b32.xlu0 %v12, 64
    %v14 = vpop.permute.xlu0 %13
    %vm15 = vcmask 1048064
    %16 = vst.msk [vmem:[#allocation0] ss:$8 sm:$0x3] %vm15, %v14
    %s18 = sshllo.u32 0, 1
    %v20 = vld [vmem:[#allocation0] sm:%s18]
    %s21 = sshllo.u32 0, 1
    %22 = vst [vmem:[%s1] sm:%s21] %v20
    %s23 = scalar_lea.vmem [#allocation0], 8
    %v24 = vld [vmem:[%s23] sm:%s18]
    %s25 = sshllo.u32 0, 1
    %s26 = scalar_lea.vmem %s1, 1
    %27 = vst [vmem:[%s26] sm:%s25] %v24

// kernel: tile.18
$region0: #{tile.18}
  #allocation0 [shape = 's32[1]{0}', space=sflag, size = 0x4, scoped, tag = 'scoped memory for tile.18']
  %s0 = inlined_call_operand.vmem [shape: f32[32], index: 0, kind: input, shape index: {}]
  %s1 = inlined_call_operand.vmem [shape: f32[4,32], index: 1, kind: output, shape index: {}]
  // Predicated region
  $region2: #{tile.18} parent=0 // pred_check
    _
  $region3: #{tile.18} parent=0 // pred_check_branch
    %3 = sbr.rel (0) target = $region5
  $region4: #{tile.18} parent=0 // pred_region
    _
  $region5: #{tile.18} parent=0 // pred_fallthru
    _
  %v4 = vld [vmem:[%s0] ss:$0 sm:$0xff]
  %5 = vst [vmem:[%s1] sm:$0xf] %v4

// kernel: tile.19
$region0: #{tile.19}
  %s0 = inlined_call_operand.vmem [shape: f32[4,32], index: 0, kind: input, shape index: {}]
  %s1 = inlined_call_operand.vmem [shape: f32[1,128], index: 1, kind: output, shape index: {}]
  $region1: #{tile.19} parent=0
    #allocation0 [shape = 'u8[4096]{0}', space=vmem, size = 0x1000, scoped, tag = 'scoped mem for output reshape']
    #allocation1 [shape = 'u8[4096]{0}', space=vmem, size = 0x1000, scoped, tag = 'scoped mem for input reshape']
    %s3 = sshllo.u32 0, 4
    %v4 = vld [vmem:[%s0] sm:%s3]
    %5 = vst [vmem:[#allocation1] sm:%s3] %v4
    %v6 = vld [vmem:[#allocation1] sm:$0x1]
    %vm7 = vcmask 261120
    %8 = vst.msk [vmem:[#allocation0] sm:$0x1] %vm7, %v6
    %s9 = scalar_lea.vmem [#allocation1], 3
    %v10 = vld [vmem:[%s9] sm:$0x1]
    %11 = vrot.lane.b32.xlu0 %v10, 96
    %v12 = vpop.permute.xlu0 %11
    %vm13 = vcmask 1048320
    %14 = vst.msk [vmem:[#allocation0] sm:$0x1] %vm13, %v12
    %s15 = scalar_lea.vmem [#allocation1], 2
    %v16 = vld [vmem:[%s15] sm:$0x1]
    %17 = vrot.lane.b32.xlu0 %v16, 64
    %v18 = vpop.permute.xlu0 %17
    %vm19 = vcmask 785920
    %20 = vst.msk [vmem:[#allocation0] sm:$0x1] %vm19, %v18
    %s21 = scalar_lea.vmem [#allocation1], 1
    %v22 = vld [vmem:[%s21] sm:$0x1]
    %23 = vrot.lane.b32.xlu0 %v22, 32
    %v24 = vpop.permute.xlu0 %23
    %vm25 = vcmask 523520
    %26 = vst.msk [vmem:[#allocation0] sm:$0x1] %vm25, %v24
    %s28 = sshllo.u32 0, 1
    %v30 = vld [vmem:[#allocation0] sm:%s28]
    %s31 = sshllo.u32 0, 1
    %32 = vst [vmem:[%s1] sm:%s31] %v30

// kernel: end_layer_forward.5
$region0: #{end_layer_forward.5}
  #allocation0 [shape = 'u32[]', space=smem, size = 0x4, offset = 0x4, fixed_abs, tag = 'smem constant byte address 0x4 - core index']
  #allocation1 [shape = 'u32[144,128]{1,0:T(1,128)}', space=vmem, size = 0x12000, scoped, tag = 'internal scratch']
  %s0 = inlined_call_operand.vmem [shape: bf16[4,2,1152], index: 0, kind: input, shape index: {}]
  %s1 = inlined_call_operand.vmem [shape: bf16[1152,256], index: 1, kind: input, shape index: {}]
  %s2 = inlined_call_operand.vmem [shape: f32[1,256], index: 2, kind: input, shape index: {}]
  %s3 = inlined_call_operand.vmem [shape: f32[256,128], index: 3, kind: input, shape index: {}]
  %s4 = inlined_call_operand.vmem [shape: f32[1,128], index: 4, kind: input, shape index: {}]
  %s5 = inlined_call_operand.vmem [shape: f32[32,128], index: 5, kind: input, shape index: {}]
  %s6 = inlined_call_operand.vmem [shape: f32[1,128], index: 6, kind: input, shape index: {}]
  %s7 = inlined_call_operand.vmem [shape: f32[128,32], index: 7, kind: input, shape index: {}]
  %s8 = inlined_call_operand.vmem [shape: f32[1,32], index: 8, kind: input, shape index: {}]
  %s9 = inlined_call_operand.vmem [shape: f32[32,10], index: 9, kind: input, shape index: {}]
  %s10 = inlined_call_operand.vmem [shape: f32[1,10], index: 10, kind: input, shape index: {}]
  %s11 = inlined_call_operand.hbm [shape: f32[2,10], index: 11, kind: output, shape index: {}]
  %s12 = sld [smem:[#allocation0]]
  $region54: #{end_layer_forward.5} parent=0
    _
  %s14 = ssub.s32 1, %s12
  %s15 = scalar_select 0, %s14, %s12
  $region1: #{end_layer_forward.5} parent=0
    #allocation2 [shape = 'u8[1024]{0}', space=vmem, size = 0x400, scoped, tag = 'output window, operand 0, single buffered']
    #allocation3 [shape = 's32[1]{0}', space=sflag, size = 0x4, scoped, tag = 'scoped memory for end_layer_forward.5']
    %16 = vsyncpa [#allocation3], 0
    // Predicated region
    $region2: #{end_layer_forward.5} parent=1 // pred_check
      _
    $region3: #{end_layer_forward.5} parent=1 // pred_check_branch
      %18 = sbr.rel (0) target = $region5
    $region4: #{end_layer_forward.5} parent=1 // pred_region
      _
    $region5: #{end_layer_forward.5} parent=1 // pred_fallthru
      _
    // Predicated region
    $region6: #{end_layer_forward.5} parent=1 // pred_check
      _
    $region7: #{end_layer_forward.5} parent=1 // pred_check_branch
      %20 = sbr.rel (0) target = $region9
    $region8: #{end_layer_forward.5} parent=1 // pred_region
      _
    $region9: #{end_layer_forward.5} parent=1 // pred_fallthru
      _
    // Predicated region
    $region10: #{end_layer_forward.5} parent=1 // pred_check
      _
    $region11: #{end_layer_forward.5} parent=1 // pred_check_branch
      %22 = sbr.rel (0) target = $region13
    $region12: #{end_layer_forward.5} parent=1 // pred_region
      _
    $region13: #{end_layer_forward.5} parent=1 // pred_fallthru
      _
    // Predicated region
    $region14: #{end_layer_forward.5} parent=1 // pred_check
      _
    $region15: #{end_layer_forward.5} parent=1 // pred_check_branch
      %24 = sbr.rel (0) target = $region17
    $region16: #{end_layer_forward.5} parent=1 // pred_region
      _
    $region17: #{end_layer_forward.5} parent=1 // pred_fallthru
      _
    // Predicated region
    $region18: #{end_layer_forward.5} parent=1 // pred_check
      _
    $region19: #{end_layer_forward.5} parent=1 // pred_check_branch
      %26 = sbr.rel (0) target = $region21
    $region20: #{end_layer_forward.5} parent=1 // pred_region
      _
    $region21: #{end_layer_forward.5} parent=1 // pred_fallthru
      _
    // Predicated region
    $region22: #{end_layer_forward.5} parent=1 // pred_check
      _
    $region23: #{end_layer_forward.5} parent=1 // pred_check_branch
      %28 = sbr.rel (0) target = $region25
    $region24: #{end_layer_forward.5} parent=1 // pred_region
      _
    $region25: #{end_layer_forward.5} parent=1 // pred_fallthru
      _
    // Predicated region
    $region26: #{end_layer_forward.5} parent=1 // pred_check
      _
    $region27: #{end_layer_forward.5} parent=1 // pred_check_branch
      %30 = sbr.rel (0) target = $region29
    $region28: #{end_layer_forward.5} parent=1 // pred_region
      _
    $region29: #{end_layer_forward.5} parent=1 // pred_fallthru
      _
    // Predicated region
    $region30: #{end_layer_forward.5} parent=1 // pred_check
      _
    $region31: #{end_layer_forward.5} parent=1 // pred_check_branch
      %32 = sbr.rel (0) target = $region33
    $region32: #{end_layer_forward.5} parent=1 // pred_region
      _
    $region33: #{end_layer_forward.5} parent=1 // pred_fallthru
      _
    // Predicated region
    $region34: #{end_layer_forward.5} parent=1 // pred_check
      _
    $region35: #{end_layer_forward.5} parent=1 // pred_check_branch
      %34 = sbr.rel (0) target = $region37
    $region36: #{end_layer_forward.5} parent=1 // pred_region
      _
    $region37: #{end_layer_forward.5} parent=1 // pred_fallthru
      _
    // Predicated region
    $region38: #{end_layer_forward.5} parent=1 // pred_check
      _
    $region39: #{end_layer_forward.5} parent=1 // pred_check_branch
      %36 = sbr.rel (0) target = $region41
    $region40: #{end_layer_forward.5} parent=1 // pred_region
      _
    $region41: #{end_layer_forward.5} parent=1 // pred_fallthru
      _
    // Predicated region
    $region42: #{end_layer_forward.5} parent=1 // pred_check
      _
    $region43: #{end_layer_forward.5} parent=1 // pred_check_branch
      %38 = sbr.rel (0) target = $region45
    $region44: #{end_layer_forward.5} parent=1 // pred_region
      _
    $region45: #{end_layer_forward.5} parent=1 // pred_fallthru
      _
    %v40 = vld [vmem:[%s1] sm:$0xff]
    %v41 = vld [vmem:[%s1 + $0x8] sm:$0xff]
    %v42 = vld [vmem:[%s1 + $0x10] sm:$0xff]
    %v43 = vld [vmem:[%s1 + $0x18] sm:$0xff]
    %v44 = vld [vmem:[%s1 + $0x20] sm:$0xff]
    %v45 = vld [vmem:[%s1 + $0x28] sm:$0xff]
    %v46 = vld [vmem:[%s1 + $0x30] sm:$0xff]
    %v47 = vld [vmem:[%s1 + $0x38] sm:$0xff]
    %v48 = vld [vmem:[%s1 + $0x40] sm:$0xff]
    %v49 = vld [vmem:[%s1 + $0x48] sm:$0xff]
    %v50 = vld [vmem:[%s1 + $0x50] sm:$0xff]
    %v51 = vld [vmem:[%s1 + $0x58] sm:$0xff]
    %v52 = vld [vmem:[%s1 + $0x60] sm:$0xff]
    %v53 = vld [vmem:[%s1 + $0x68] sm:$0xff]
    %v54 = vld [vmem:[%s1 + $0x70] sm:$0xff]
    %v55 = vld [vmem:[%s1 + $0x78] sm:$0xff]
    %v56 = vld [vmem:[%s1 + $0x80] sm:$0xff]
    %v57 = vld [vmem:[%s1 + $0x88] sm:$0xff]
    %v58 = vld [vmem:[%s1 + $0x90] sm:$0xff]
    %v59 = vld [vmem:[%s1 + $0x98] sm:$0xff]
    %v60 = vld [vmem:[%s1 + $0xa0] sm:$0xff]
    %v61 = vld [vmem:[%s1 + $0xa8] sm:$0xff]
    %v62 = vld [vmem:[%s1 + $0xb0] sm:$0xff]
    %v63 = vld [vmem:[%s1 + $0xb8] sm:$0xff]
    %v64 = vld [vmem:[%s1 + $0xc0] sm:$0xff]
    %v65 = vld [vmem:[%s1 + $0xc8] sm:$0xff]
    %v66 = vld [vmem:[%s1 + $0xd0] sm:$0xff]
    %v67 = vld [vmem:[%s1 + $0xd8] sm:$0xff]
    %v68 = vld [vmem:[%s1 + $0xe0] sm:$0xff]
    %v69 = vld [vmem:[%s1 + $0xe8] sm:$0xff]
    %v70 = vld [vmem:[%s1 + $0xf0] sm:$0xff]
    %v71 = vld [vmem:[%s1 + $0xf8] sm:$0xff]
    %v72 = vld [vmem:[%s1 + $0x100] sm:$0xff]
    %v73 = vld [vmem:[%s1 + $0x108] sm:$0xff]
    %v74 = vld [vmem:[%s1 + $0x110] sm:$0xff]
    %v75 = vld [vmem:[%s1 + $0x118] sm:$0xff]
    %v76 = vld [vmem:[%s1 + $0x120] sm:$0xff]
    %v77 = vld [vmem:[%s1 + $0x128] sm:$0xff]
    %v78 = vld [vmem:[%s1 + $0x130] sm:$0xff]
    %v79 = vld [vmem:[%s1 + $0x138] sm:$0xff]
    %v80 = vld [vmem:[%s1 + $0x140] sm:$0xff]
    %v81 = vld [vmem:[%s1 + $0x148] sm:$0xff]
    %v82 = vld [vmem:[%s1 + $0x150] sm:$0xff]
    %v83 = vld [vmem:[%s1 + $0x158] sm:$0xff]
    %v84 = vld [vmem:[%s1 + $0x160] sm:$0xff]
    %v85 = vld [vmem:[%s1 + $0x168] sm:$0xff]
    %v86 = vld [vmem:[%s1 + $0x170] sm:$0xff]
    %v87 = vld [vmem:[%s1 + $0x178] sm:$0xff]
    %v88 = vld [vmem:[%s1 + $0x180] sm:$0xff]
    %v89 = vld [vmem:[%s1 + $0x188] sm:$0xff]
    %v90 = vld [vmem:[%s1 + $0x190] sm:$0xff]
    %v91 = vld [vmem:[%s1 + $0x198] sm:$0xff]
    %v92 = vld [vmem:[%s1 + $0x1a0] sm:$0xff]
    %v93 = vld [vmem:[%s1 + $0x1a8] sm:$0xff]
    %v94 = vld [vmem:[%s1 + $0x1b0] sm:$0xff]
    %v95 = vld [vmem:[%s1 + $0x1b8] sm:$0xff]
    %v96 = vld [vmem:[%s1 + $0x1c0] sm:$0xff]
    %v97 = vld [vmem:[%s1 + $0x1c8] sm:$0xff]
    %v98 = vld [vmem:[%s1 + $0x1d0] sm:$0xff]
    %v99 = vld [vmem:[%s1 + $0x1d8] sm:$0xff]
    %v100 = vld [vmem:[%s1 + $0x1e0] sm:$0xff]
    %v101 = vld [vmem:[%s1 + $0x1e8] sm:$0xff]
    %v102 = vld [vmem:[%s1 + $0x1f0] sm:$0xff]
    %v103 = vld [vmem:[%s1 + $0x1f8] sm:$0xff]
    %v104 = vld [vmem:[%s1 + $0x200] sm:$0xff]
    %v105 = vld [vmem:[%s1 + $0x208] sm:$0xff]
    %v106 = vld [vmem:[%s1 + $0x210] sm:$0xff]
    %v107 = vld [vmem:[%s1 + $0x218] sm:$0xff]
    %v108 = vld [vmem:[%s1 + $0x220] sm:$0xff]
    %v109 = vld [vmem:[%s1 + $0x228] sm:$0xff]
    %v110 = vld [vmem:[%s1 + $0x230] sm:$0xff]
    %v111 = vld [vmem:[%s1 + $0x238] sm:$0xff]
    %v112 = vld [vmem:[%s1 + $0x240] sm:$0xff]
    %v113 = vld [vmem:[%s1 + $0x248] sm:$0xff]
    %v114 = vld [vmem:[%s1 + $0x250] sm:$0xff]
    %v115 = vld [vmem:[%s1 + $0x258] sm:$0xff]
    %v116 = vld [vmem:[%s1 + $0x260] sm:$0xff]
    %v117 = vld [vmem:[%s1 + $0x268] sm:$0xff]
    %v118 = vld [vmem:[%s1 + $0x270] sm:$0xff]
    %v119 = vld [vmem:[%s1 + $0x278] sm:$0xff]
    %v120 = vld [vmem:[%s1 + $0x280] sm:$0xff]
    %v121 = vld [vmem:[%s1 + $0x288] sm:$0xff]
    %v122 = vld [vmem:[%s1 + $0x290] sm:$0xff]
    %v123 = vld [vmem:[%s1 + $0x298] sm:$0xff]
    %v124 = vld [vmem:[%s1 + $0x2a0] sm:$0xff]
    %v125 = vld [vmem:[%s1 + $0x2a8] sm:$0xff]
    %v126 = vld [vmem:[%s1 + $0x2b0] sm:$0xff]
    %v127 = vld [vmem:[%s1 + $0x2b8] sm:$0xff]
    %v128 = vld [vmem:[%s1 + $0x2c0] sm:$0xff]
    %v129 = vld [vmem:[%s1 + $0x2c8] sm:$0xff]
    %v130 = vld [vmem:[%s1 + $0x2d0] sm:$0xff]
    %v131 = vld [vmem:[%s1 + $0x2d8] sm:$0xff]
    %v132 = vld [vmem:[%s1 + $0x2e0] sm:$0xff]
    %v133 = vld [vmem:[%s1 + $0x2e8] sm:$0xff]
    %v134 = vld [vmem:[%s1 + $0x2f0] sm:$0xff]
    %v135 = vld [vmem:[%s1 + $0x2f8] sm:$0xff]
    %v136 = vld [vmem:[%s1 + $0x300] sm:$0xff]
    %v137 = vld [vmem:[%s1 + $0x308] sm:$0xff]
    %v138 = vld [vmem:[%s1 + $0x310] sm:$0xff]
    %v139 = vld [vmem:[%s1 + $0x318] sm:$0xff]
    %v140 = vld [vmem:[%s1 + $0x320] sm:$0xff]
    %v141 = vld [vmem:[%s1 + $0x328] sm:$0xff]
    %v142 = vld [vmem:[%s1 + $0x330] sm:$0xff]
    %v143 = vld [vmem:[%s1 + $0x338] sm:$0xff]
    %v144 = vld [vmem:[%s1 + $0x340] sm:$0xff]
    %v145 = vld [vmem:[%s1 + $0x348] sm:$0xff]
    %v146 = vld [vmem:[%s1 + $0x350] sm:$0xff]
    %v147 = vld [vmem:[%s1 + $0x358] sm:$0xff]
    %v148 = vld [vmem:[%s1 + $0x360] sm:$0xff]
    %v149 = vld [vmem:[%s1 + $0x368] sm:$0xff]
    %v150 = vld [vmem:[%s1 + $0x370] sm:$0xff]
    %v151 = vld [vmem:[%s1 + $0x378] sm:$0xff]
    %v152 = vld [vmem:[%s1 + $0x380] sm:$0xff]
    %v153 = vld [vmem:[%s1 + $0x388] sm:$0xff]
    %v154 = vld [vmem:[%s1 + $0x390] sm:$0xff]
    %v155 = vld [vmem:[%s1 + $0x398] sm:$0xff]
    %v156 = vld [vmem:[%s1 + $0x3a0] sm:$0xff]
    %v157 = vld [vmem:[%s1 + $0x3a8] sm:$0xff]
    %v158 = vld [vmem:[%s1 + $0x3b0] sm:$0xff]
    %v159 = vld [vmem:[%s1 + $0x3b8] sm:$0xff]
    %v160 = vld [vmem:[%s1 + $0x3c0] sm:$0xff]
    %v161 = vld [vmem:[%s1 + $0x3c8] sm:$0xff]
    %v162 = vld [vmem:[%s1 + $0x3d0] sm:$0xff]
    %v163 = vld [vmem:[%s1 + $0x3d8] sm:$0xff]
    %v164 = vld [vmem:[%s1 + $0x3e0] sm:$0xff]
    %v165 = vld [vmem:[%s1 + $0x3e8] sm:$0xff]
    %v166 = vld [vmem:[%s1 + $0x3f0] sm:$0xff]
    %v167 = vld [vmem:[%s1 + $0x3f8] sm:$0xff]
    %v168 = vld [vmem:[%s1 + $0x400] sm:$0xff]
    %v169 = vld [vmem:[%s1 + $0x408] sm:$0xff]
    %v170 = vld [vmem:[%s1 + $0x410] sm:$0xff]
    %v171 = vld [vmem:[%s1 + $0x418] sm:$0xff]
    %v172 = vld [vmem:[%s1 + $0x420] sm:$0xff]
    %v173 = vld [vmem:[%s1 + $0x428] sm:$0xff]
    %v174 = vld [vmem:[%s1 + $0x430] sm:$0xff]
    %v175 = vld [vmem:[%s1 + $0x438] sm:$0xff]
    %v176 = vld [vmem:[%s1 + $0x440] sm:$0xff]
    %v177 = vld [vmem:[%s1 + $0x448] sm:$0xff]
    %v178 = vld [vmem:[%s1 + $0x450] sm:$0xff]
    %v179 = vld [vmem:[%s1 + $0x458] sm:$0xff]
    %v180 = vld [vmem:[%s1 + $0x460] sm:$0xff]
    %v181 = vld [vmem:[%s1 + $0x468] sm:$0xff]
    %v182 = vld [vmem:[%s1 + $0x470] sm:$0xff]
    %v183 = vld [vmem:[%s1 + $0x478] sm:$0xff]
    %v184 = vld [vmem:[%s0] sm:$0xff]
    %v185 = vld [vmem:[%s0 + $0x8] sm:$0x1]
    %v188 = vcombine.high %v184, %v184
    %v190 = vunpack.c.l.s4 1966171168
    %v191 = vunpack.c.0.s8 %v190
    %v192 = vlaneseq
    %v193 = vshrl.u32 %v192, 7
    %v194 = vsub.s32 %v191, %v193
    %v195 = vrot.slane %v184, %v194
    %v197 = vunpack.c.l.s4 1966171168
    %v198 = vunpack.c.0.s8 %v197
    %v199 = vlaneseq
    %v200 = vshrl.u32 %v199, 7
    %v201 = vsub.s32 %v198, %v200
    %v202 = vrot.slane %v188, %v201
    %v203 = vcombine.high %v195, %v195
    %v204 = vcombine.high %v202, %v202
    %v206 = vunpack.c.l.s4 1966171168
    %v207 = vunpack.c.0.s8 %v206
    %v208 = vlaneseq
    %v209 = vshrl.u32 %v208, 7
    %v210 = vsub.s32 %v207, %v209
    %v211 = vrot.slane %v195, %v210
    %v213 = vunpack.c.l.s4 1966171168
    %v214 = vunpack.c.0.s8 %v213
    %v215 = vlaneseq
    %v216 = vshrl.u32 %v215, 7
    %v217 = vsub.s32 %v214, %v216
    %v218 = vrot.slane %v202, %v217
    %v220 = vunpack.c.l.s4 1966171168
    %v221 = vunpack.c.0.s8 %v220
    %v222 = vlaneseq
    %v223 = vshrl.u32 %v222, 7
    %v224 = vsub.s32 %v221, %v223
    %v225 = vrot.slane %v203, %v224
    %v227 = vunpack.c.l.s4 1966171168
    %v228 = vunpack.c.0.s8 %v227
    %v229 = vlaneseq
    %v230 = vshrl.u32 %v229, 7
    %v231 = vsub.s32 %v228, %v230
    %v232 = vrot.slane %v204, %v231
    %v233 = vcombine.high %v211, %v211
    %v234 = vcombine.high %v218, %v218
    %v235 = vcombine.high %v225, %v225
    %v236 = vcombine.high %v232, %v232
    %v238 = vunpack.c.l.s4 1966171168
    %v239 = vunpack.c.0.s8 %v238
    %v240 = vlaneseq
    %v241 = vshrl.u32 %v240, 7
    %v242 = vsub.s32 %v239, %v241
    %v243 = vrot.slane %v185, %v242
    %v245 = vunpack.c.l.s4 1966171168
    %v246 = vunpack.c.0.s8 %v245
    %v247 = vlaneseq
    %v248 = vshrl.u32 %v247, 7
    %v249 = vsub.s32 %v246, %v248
    %v250 = vrot.slane %v243, %v249
    %v404 = vunpack.c.l.b16 %v40
    %v405 = vunpack.c.h.b16 %v40
    %v406 = vunpack.c.l.b16 %v41
    %v407 = vunpack.c.h.b16 %v41
    %v408 = vunpack.c.l.b16 %v42
    %v409 = vunpack.c.h.b16 %v42
    %v410 = vunpack.c.l.b16 %v43
    %v411 = vunpack.c.h.b16 %v43
    %v412 = vunpack.c.l.b16 %v44
    %v413 = vunpack.c.h.b16 %v44
    %v414 = vunpack.c.l.b16 %v45
    %v415 = vunpack.c.h.b16 %v45
    %v416 = vunpack.c.l.b16 %v46
    %v417 = vunpack.c.h.b16 %v46
    %v418 = vunpack.c.l.b16 %v47
    %v419 = vunpack.c.h.b16 %v47
    %v420 = vunpack.c.l.b16 %v48
    %v421 = vunpack.c.h.b16 %v48
    %v422 = vunpack.c.l.b16 %v49
    %v423 = vunpack.c.h.b16 %v49
    %v424 = vunpack.c.l.b16 %v50
    %v425 = vunpack.c.h.b16 %v50
    %v426 = vunpack.c.l.b16 %v51
    %v427 = vunpack.c.h.b16 %v51
    %v428 = vunpack.c.l.b16 %v52
    %v429 = vunpack.c.h.b16 %v52
    %v430 = vunpack.c.l.b16 %v53
    %v431 = vunpack.c.h.b16 %v53
    %v432 = vunpack.c.l.b16 %v54
    %v433 = vunpack.c.h.b16 %v54
    %v434 = vunpack.c.l.b16 %v55
    %v435 = vunpack.c.h.b16 %v55
    %v436 = vunpack.c.l.b16 %v56
    %v437 = vunpack.c.h.b16 %v56
    %v438 = vunpack.c.l.b16 %v57
    %v439 = vunpack.c.h.b16 %v57
    %v440 = vunpack.c.l.b16 %v58
    %v441 = vunpack.c.h.b16 %v58
    %v442 = vunpack.c.l.b16 %v59
    %v443 = vunpack.c.h.b16 %v59
    %v444 = vunpack.c.l.b16 %v60
    %v445 = vunpack.c.h.b16 %v60
    %v446 = vunpack.c.l.b16 %v61
    %v447 = vunpack.c.h.b16 %v61
    %v448 = vunpack.c.l.b16 %v62
    %v449 = vunpack.c.h.b16 %v62
    %v450 = vunpack.c.l.b16 %v63
    %v451 = vunpack.c.h.b16 %v63
    %v452 = vunpack.c.l.b16 %v64
    %v453 = vunpack.c.h.b16 %v64
    %v454 = vunpack.c.l.b16 %v65
    %v455 = vunpack.c.h.b16 %v65
    %v456 = vunpack.c.l.b16 %v66
    %v457 = vunpack.c.h.b16 %v66
    %v458 = vunpack.c.l.b16 %v67
    %v459 = vunpack.c.h.b16 %v67
    %v460 = vunpack.c.l.b16 %v68
    %v461 = vunpack.c.h.b16 %v68
    %v462 = vunpack.c.l.b16 %v69
    %v463 = vunpack.c.h.b16 %v69
    %v464 = vunpack.c.l.b16 %v70
    %v465 = vunpack.c.h.b16 %v70
    %v466 = vunpack.c.l.b16 %v71
    %v467 = vunpack.c.h.b16 %v71
    %v468 = vunpack.c.l.b16 %v72
    %v469 = vunpack.c.h.b16 %v72
    %v470 = vunpack.c.l.b16 %v73
    %v471 = vunpack.c.h.b16 %v73
    %v472 = vunpack.c.l.b16 %v74
    %v473 = vunpack.c.h.b16 %v74
    %v474 = vunpack.c.l.b16 %v75
    %v475 = vunpack.c.h.b16 %v75
    %v476 = vunpack.c.l.b16 %v76
    %v477 = vunpack.c.h.b16 %v76
    %v478 = vunpack.c.l.b16 %v77
    %v479 = vunpack.c.h.b16 %v77
    %v480 = vunpack.c.l.b16 %v78
    %v481 = vunpack.c.h.b16 %v78
    %v482 = vunpack.c.l.b16 %v79
    %v483 = vunpack.c.h.b16 %v79
    %v484 = vunpack.c.l.b16 %v80
    %v485 = vunpack.c.h.b16 %v80
    %v486 = vunpack.c.l.b16 %v81
    %v487 = vunpack.c.h.b16 %v81
    %v488 = vunpack.c.l.b16 %v82
    %v489 = vunpack.c.h.b16 %v82
    %v490 = vunpack.c.l.b16 %v83
    %v491 = vunpack.c.h.b16 %v83
    %v492 = vunpack.c.l.b16 %v84
    %v493 = vunpack.c.h.b16 %v84
    %v494 = vunpack.c.l.b16 %v85
    %v495 = vunpack.c.h.b16 %v85
    %v496 = vunpack.c.l.b16 %v86
    %v497 = vunpack.c.h.b16 %v86
    %v498 = vunpack.c.l.b16 %v87
    %v499 = vunpack.c.h.b16 %v87
    %v500 = vunpack.c.l.b16 %v88
    %v501 = vunpack.c.h.b16 %v88
    %v502 = vunpack.c.l.b16 %v89
    %v503 = vunpack.c.h.b16 %v89
    %v504 = vunpack.c.l.b16 %v90
    %v505 = vunpack.c.h.b16 %v90
    %v506 = vunpack.c.l.b16 %v91
    %v507 = vunpack.c.h.b16 %v91
    %v508 = vunpack.c.l.b16 %v92
    %v509 = vunpack.c.h.b16 %v92
    %v510 = vunpack.c.l.b16 %v93
    %v511 = vunpack.c.h.b16 %v93
    %v512 = vunpack.c.l.b16 %v94
    %v513 = vunpack.c.h.b16 %v94
    %v514 = vunpack.c.l.b16 %v95
    %v515 = vunpack.c.h.b16 %v95
    %v516 = vunpack.c.l.b16 %v96
    %v517 = vunpack.c.h.b16 %v96
    %v518 = vunpack.c.l.b16 %v97
    %v519 = vunpack.c.h.b16 %v97
    %v520 = vunpack.c.l.b16 %v98
    %v521 = vunpack.c.h.b16 %v98
    %v522 = vunpack.c.l.b16 %v99
    %v523 = vunpack.c.h.b16 %v99
    %v524 = vunpack.c.l.b16 %v100
    %v525 = vunpack.c.h.b16 %v100
    %v526 = vunpack.c.l.b16 %v101
    %v527 = vunpack.c.h.b16 %v101
    %v528 = vunpack.c.l.b16 %v102
    %v529 = vunpack.c.h.b16 %v102
    %v530 = vunpack.c.l.b16 %v103
    %v531 = vunpack.c.h.b16 %v103
    %v532 = vunpack.c.l.b16 %v104
    %v533 = vunpack.c.h.b16 %v104
    %v534 = vunpack.c.l.b16 %v105
    %v535 = vunpack.c.h.b16 %v105
    %v536 = vunpack.c.l.b16 %v106
    %v537 = vunpack.c.h.b16 %v106
    %v538 = vunpack.c.l.b16 %v107
    %v539 = vunpack.c.h.b16 %v107
    %v540 = vunpack.c.l.b16 %v108
    %v541 = vunpack.c.h.b16 %v108
    %v542 = vunpack.c.l.b16 %v109
    %v543 = vunpack.c.h.b16 %v109
    %v544 = vunpack.c.l.b16 %v110
    %v545 = vunpack.c.h.b16 %v110
    %v546 = vunpack.c.l.b16 %v111
    %v547 = vunpack.c.h.b16 %v111
    %v548 = vunpack.c.l.b16 %v112
    %v549 = vunpack.c.h.b16 %v112
    %v550 = vunpack.c.l.b16 %v113
    %v551 = vunpack.c.h.b16 %v113
    %v552 = vunpack.c.l.b16 %v114
    %v553 = vunpack.c.h.b16 %v114
    %v554 = vunpack.c.l.b16 %v115
    %v555 = vunpack.c.h.b16 %v115
    %v556 = vunpack.c.l.b16 %v116
    %v557 = vunpack.c.h.b16 %v116
    %v558 = vunpack.c.l.b16 %v117
    %v559 = vunpack.c.h.b16 %v117
    %v560 = vunpack.c.l.b16 %v118
    %v561 = vunpack.c.h.b16 %v118
    %v562 = vunpack.c.l.b16 %v119
    %v563 = vunpack.c.h.b16 %v119
    %v564 = vunpack.c.l.b16 %v120
    %v565 = vunpack.c.h.b16 %v120
    %v566 = vunpack.c.l.b16 %v121
    %v567 = vunpack.c.h.b16 %v121
    %v568 = vunpack.c.l.b16 %v122
    %v569 = vunpack.c.h.b16 %v122
    %v570 = vunpack.c.l.b16 %v123
    %v571 = vunpack.c.h.b16 %v123
    %v572 = vunpack.c.l.b16 %v124
    %v573 = vunpack.c.h.b16 %v124
    %v574 = vunpack.c.l.b16 %v125
    %v575 = vunpack.c.h.b16 %v125
    %v576 = vunpack.c.l.b16 %v126
    %v577 = vunpack.c.h.b16 %v126
    %v578 = vunpack.c.l.b16 %v127
    %v579 = vunpack.c.h.b16 %v127
    %v580 = vunpack.c.l.b16 %v128
    %v581 = vunpack.c.h.b16 %v128
    %v582 = vunpack.c.l.b16 %v129
    %v583 = vunpack.c.h.b16 %v129
    %v584 = vunpack.c.l.b16 %v130
    %v585 = vunpack.c.h.b16 %v130
    %v586 = vunpack.c.l.b16 %v131
    %v587 = vunpack.c.h.b16 %v131
    %v588 = vunpack.c.l.b16 %v132
    %v589 = vunpack.c.h.b16 %v132
    %v590 = vunpack.c.l.b16 %v133
    %v591 = vunpack.c.h.b16 %v133
    %v592 = vunpack.c.l.b16 %v134
    %v593 = vunpack.c.h.b16 %v134
    %v594 = vunpack.c.l.b16 %v135
    %v595 = vunpack.c.h.b16 %v135
    %v596 = vunpack.c.l.b16 %v136
    %v597 = vunpack.c.h.b16 %v136
    %v598 = vunpack.c.l.b16 %v137
    %v599 = vunpack.c.h.b16 %v137
    %v600 = vunpack.c.l.b16 %v138
    %v601 = vunpack.c.h.b16 %v138
    %v602 = vunpack.c.l.b16 %v139
    %v603 = vunpack.c.h.b16 %v139
    %v604 = vunpack.c.l.b16 %v140
    %v605 = vunpack.c.h.b16 %v140
    %v606 = vunpack.c.l.b16 %v141
    %v607 = vunpack.c.h.b16 %v141
    %v608 = vunpack.c.l.b16 %v142
    %v609 = vunpack.c.h.b16 %v142
    %v610 = vunpack.c.l.b16 %v143
    %v611 = vunpack.c.h.b16 %v143
    %v612 = vunpack.c.l.b16 %v144
    %v613 = vunpack.c.h.b16 %v144
    %v614 = vunpack.c.l.b16 %v145
    %v615 = vunpack.c.h.b16 %v145
    %v616 = vunpack.c.l.b16 %v146
    %v617 = vunpack.c.h.b16 %v146
    %v618 = vunpack.c.l.b16 %v147
    %v619 = vunpack.c.h.b16 %v147
    %v620 = vunpack.c.l.b16 %v148
    %v621 = vunpack.c.h.b16 %v148
    %v622 = vunpack.c.l.b16 %v149
    %v623 = vunpack.c.h.b16 %v149
    %v624 = vunpack.c.l.b16 %v150
    %v625 = vunpack.c.h.b16 %v150
    %v626 = vunpack.c.l.b16 %v151
    %v627 = vunpack.c.h.b16 %v151
    %v628 = vunpack.c.l.b16 %v152
    %v629 = vunpack.c.h.b16 %v152
    %v630 = vunpack.c.l.b16 %v153
    %v631 = vunpack.c.h.b16 %v153
    %v632 = vunpack.c.l.b16 %v154
    %v633 = vunpack.c.h.b16 %v154
    %v634 = vunpack.c.l.b16 %v155
    %v635 = vunpack.c.h.b16 %v155
    %v636 = vunpack.c.l.b16 %v156
    %v637 = vunpack.c.h.b16 %v156
    %v638 = vunpack.c.l.b16 %v157
    %v639 = vunpack.c.h.b16 %v157
    %v640 = vunpack.c.l.b16 %v158
    %v641 = vunpack.c.h.b16 %v158
    %v642 = vunpack.c.l.b16 %v159
    %v643 = vunpack.c.h.b16 %v159
    %v644 = vunpack.c.l.b16 %v160
    %v645 = vunpack.c.h.b16 %v160
    %v646 = vunpack.c.l.b16 %v161
    %v647 = vunpack.c.h.b16 %v161
    %v648 = vunpack.c.l.b16 %v162
    %v649 = vunpack.c.h.b16 %v162
    %v650 = vunpack.c.l.b16 %v163
    %v651 = vunpack.c.h.b16 %v163
    %v652 = vunpack.c.l.b16 %v164
    %v653 = vunpack.c.h.b16 %v164
    %v654 = vunpack.c.l.b16 %v165
    %v655 = vunpack.c.h.b16 %v165
    %v656 = vunpack.c.l.b16 %v166
    %v657 = vunpack.c.h.b16 %v166
    %v658 = vunpack.c.l.b16 %v167
    %v659 = vunpack.c.h.b16 %v167
    %v660 = vunpack.c.l.b16 %v168
    %v661 = vunpack.c.h.b16 %v168
    %v662 = vunpack.c.l.b16 %v169
    %v663 = vunpack.c.h.b16 %v169
    %v664 = vunpack.c.l.b16 %v170
    %v665 = vunpack.c.h.b16 %v170
    %v666 = vunpack.c.l.b16 %v171
    %v667 = vunpack.c.h.b16 %v171
    %v668 = vunpack.c.l.b16 %v172
    %v669 = vunpack.c.h.b16 %v172
    %v670 = vunpack.c.l.b16 %v173
    %v671 = vunpack.c.h.b16 %v173
    %v672 = vunpack.c.l.b16 %v174
    %v673 = vunpack.c.h.b16 %v174
    %v674 = vunpack.c.l.b16 %v175
    %v675 = vunpack.c.h.b16 %v175
    %v676 = vunpack.c.l.b16 %v176
    %v677 = vunpack.c.h.b16 %v176
    %v678 = vunpack.c.l.b16 %v177
    %v679 = vunpack.c.h.b16 %v177
    %v680 = vunpack.c.l.b16 %v178
    %v681 = vunpack.c.h.b16 %v178
    %v682 = vunpack.c.l.b16 %v179
    %v683 = vunpack.c.h.b16 %v179
    %v684 = vunpack.c.l.b16 %v180
    %v685 = vunpack.c.h.b16 %v180
    %v686 = vunpack.c.l.b16 %v181
    %v687 = vunpack.c.h.b16 %v181
    %v688 = vunpack.c.l.b16 %v182
    %v689 = vunpack.c.h.b16 %v182
    %v690 = vunpack.c.l.b16 %v183
    %v691 = vunpack.c.h.b16 %v183
    %v692 = vpack.c.b16 %v406, %v404
    %v693 = vpack.c.b16 %v407, %v405
    %v694 = vpack.c.b16 %v410, %v408
    %v695 = vpack.c.b16 %v411, %v409
    %v696 = vpack.c.b16 %v414, %v412
    %v697 = vpack.c.b16 %v415, %v413
    %v698 = vpack.c.b16 %v418, %v416
    %v699 = vpack.c.b16 %v419, %v417
    %v700 = vpack.c.b16 %v422, %v420
    %v701 = vpack.c.b16 %v423, %v421
    %v702 = vpack.c.b16 %v426, %v424
    %v703 = vpack.c.b16 %v427, %v425
    %v704 = vpack.c.b16 %v430, %v428
    %v705 = vpack.c.b16 %v431, %v429
    %v706 = vpack.c.b16 %v434, %v432
    %v707 = vpack.c.b16 %v435, %v433
    %v708 = vpack.c.b16 %v438, %v436
    %v709 = vpack.c.b16 %v439, %v437
    %v710 = vpack.c.b16 %v442, %v440
    %v711 = vpack.c.b16 %v443, %v441
    %v712 = vpack.c.b16 %v446, %v444
    %v713 = vpack.c.b16 %v447, %v445
    %v714 = vpack.c.b16 %v450, %v448
    %v715 = vpack.c.b16 %v451, %v449
    %v716 = vpack.c.b16 %v454, %v452
    %v717 = vpack.c.b16 %v455, %v453
    %v718 = vpack.c.b16 %v458, %v456
    %v719 = vpack.c.b16 %v459, %v457
    %v720 = vpack.c.b16 %v462, %v460
    %v721 = vpack.c.b16 %v463, %v461
    %v722 = vpack.c.b16 %v466, %v464
    %v723 = vpack.c.b16 %v467, %v465
    %v724 = vpack.c.b16 %v470, %v468
    %v725 = vpack.c.b16 %v471, %v469
    %v726 = vpack.c.b16 %v474, %v472
    %v727 = vpack.c.b16 %v475, %v473
    %v728 = vpack.c.b16 %v478, %v476
    %v729 = vpack.c.b16 %v479, %v477
    %v730 = vpack.c.b16 %v482, %v480
    %v731 = vpack.c.b16 %v483, %v481
    %v732 = vpack.c.b16 %v486, %v484
    %v733 = vpack.c.b16 %v487, %v485
    %v734 = vpack.c.b16 %v490, %v488
    %v735 = vpack.c.b16 %v491, %v489
    %v736 = vpack.c.b16 %v494, %v492
    %v737 = vpack.c.b16 %v495, %v493
    %v738 = vpack.c.b16 %v498, %v496
    %v739 = vpack.c.b16 %v499, %v497
    %v740 = vpack.c.b16 %v502, %v500
    %v741 = vpack.c.b16 %v503, %v501
    %v742 = vpack.c.b16 %v506, %v504
    %v743 = vpack.c.b16 %v507, %v505
    %v744 = vpack.c.b16 %v510, %v508
    %v745 = vpack.c.b16 %v511, %v509
    %v746 = vpack.c.b16 %v514, %v512
    %v747 = vpack.c.b16 %v515, %v513
    %v748 = vpack.c.b16 %v518, %v516
    %v749 = vpack.c.b16 %v519, %v517
    %v750 = vpack.c.b16 %v522, %v520
    %v751 = vpack.c.b16 %v523, %v521
    %v752 = vpack.c.b16 %v526, %v524
    %v753 = vpack.c.b16 %v527, %v525
    %v754 = vpack.c.b16 %v530, %v528
    %v755 = vpack.c.b16 %v531, %v529
    %v756 = vpack.c.b16 %v534, %v532
    %v757 = vpack.c.b16 %v535, %v533
    %v758 = vpack.c.b16 %v538, %v536
    %v759 = vpack.c.b16 %v539, %v537
    %v760 = vpack.c.b16 %v542, %v540
    %v761 = vpack.c.b16 %v543, %v541
    %v762 = vpack.c.b16 %v546, %v544
    %v763 = vpack.c.b16 %v547, %v545
    %v764 = vpack.c.b16 %v550, %v548
    %v765 = vpack.c.b16 %v551, %v549
    %v766 = vpack.c.b16 %v554, %v552
    %v767 = vpack.c.b16 %v555, %v553
    %v768 = vpack.c.b16 %v558, %v556
    %v769 = vpack.c.b16 %v559, %v557
    %v770 = vpack.c.b16 %v562, %v560
    %v771 = vpack.c.b16 %v563, %v561
    %v772 = vpack.c.b16 %v566, %v564
    %v773 = vpack.c.b16 %v567, %v565
    %v774 = vpack.c.b16 %v570, %v568
    %v775 = vpack.c.b16 %v571, %v569
    %v776 = vpack.c.b16 %v574, %v572
    %v777 = vpack.c.b16 %v575, %v573
    %v778 = vpack.c.b16 %v578, %v576
    %v779 = vpack.c.b16 %v579, %v577
    %v780 = vpack.c.b16 %v582, %v580
    %v781 = vpack.c.b16 %v583, %v581
    %v782 = vpack.c.b16 %v586, %v584
    %v783 = vpack.c.b16 %v587, %v585
    %v784 = vpack.c.b16 %v590, %v588
    %v785 = vpack.c.b16 %v591, %v589
    %v786 = vpack.c.b16 %v594, %v592
    %v787 = vpack.c.b16 %v595, %v593
    %v788 = vpack.c.b16 %v598, %v596
    %v789 = vpack.c.b16 %v599, %v597
    %v790 = vpack.c.b16 %v602, %v600
    %v791 = vpack.c.b16 %v603, %v601
    %v792 = vpack.c.b16 %v606, %v604
    %v793 = vpack.c.b16 %v607, %v605
    %v794 = vpack.c.b16 %v610, %v608
    %v795 = vpack.c.b16 %v611, %v609
    %v796 = vpack.c.b16 %v614, %v612
    %v797 = vpack.c.b16 %v615, %v613
    %v798 = vpack.c.b16 %v618, %v616
    %v799 = vpack.c.b16 %v619, %v617
    %v800 = vpack.c.b16 %v622, %v620
    %v801 = vpack.c.b16 %v623, %v621
    %v802 = vpack.c.b16 %v626, %v624
    %v803 = vpack.c.b16 %v627, %v625
    %v804 = vpack.c.b16 %v630, %v628
    %v805 = vpack.c.b16 %v631, %v629
    %v806 = vpack.c.b16 %v634, %v632
    %v807 = vpack.c.b16 %v635, %v633
    %v808 = vpack.c.b16 %v638, %v636
    %v809 = vpack.c.b16 %v639, %v637
    %v810 = vpack.c.b16 %v642, %v640
    %v811 = vpack.c.b16 %v643, %v641
    %v812 = vpack.c.b16 %v646, %v644
    %v813 = vpack.c.b16 %v647, %v645
    %v814 = vpack.c.b16 %v650, %v648
    %v815 = vpack.c.b16 %v651, %v649
    %v816 = vpack.c.b16 %v654, %v652
    %v817 = vpack.c.b16 %v655, %v653
    %v818 = vpack.c.b16 %v658, %v656
    %v819 = vpack.c.b16 %v659, %v657
    %v820 = vpack.c.b16 %v662, %v660
    %v821 = vpack.c.b16 %v663, %v661
    %v822 = vpack.c.b16 %v666, %v664
    %v823 = vpack.c.b16 %v667, %v665
    %v824 = vpack.c.b16 %v670, %v668
    %v825 = vpack.c.b16 %v671, %v669
    %v826 = vpack.c.b16 %v674, %v672
    %v827 = vpack.c.b16 %v675, %v673
    %v828 = vpack.c.b16 %v678, %v676
    %v829 = vpack.c.b16 %v679, %v677
    %v830 = vpack.c.b16 %v682, %v680
    %v831 = vpack.c.b16 %v683, %v681
    %v832 = vpack.c.b16 %v686, %v684
    %v833 = vpack.c.b16 %v687, %v685
    %v834 = vpack.c.b16 %v690, %v688
    %v835 = vpack.c.b16 %v691, %v689
    %980 = vmatprep.subr.bf16.mxu0 %v693
    %981 = vmatpush1.bf16.msra.mxu0 %v692
    %982 = vmatprep.subr.bf16.mxu0 %v695
    %983 = vmatpush1.bf16.msra.mxu0 %v694
    %984 = vmatprep.subr.bf16.mxu0 %v697
    %985 = vmatpush1.bf16.msra.mxu0 %v696
    %986 = vmatprep.subr.bf16.mxu0 %v699
    %987 = vmatpush1.bf16.msra.mxu0 %v698
    %988 = vmatprep.subr.bf16.mxu0 %v701
    %989 = vmatpush1.bf16.msra.mxu0 %v700
    %990 = vmatprep.subr.bf16.mxu0 %v703
    %991 = vmatpush1.bf16.msra.mxu0 %v702
    %992 = vmatprep.subr.bf16.mxu0 %v705
    %993 = vmatpush1.bf16.msra.mxu0 %v704
    %994 = vmatprep.subr.bf16.mxu0 %v707
    %995 = vmatpush1.bf16.msra.mxu0 %v706
    %996 = vmatprep.subr.bf16.mxu0 %v709
    %997 = vmatpush1.bf16.msra.mxu0 %v708
    %998 = vmatprep.subr.bf16.mxu0 %v711
    %999 = vmatpush1.bf16.msra.mxu0 %v710
    %1000 = vmatprep.subr.bf16.mxu0 %v713
    %1001 = vmatpush1.bf16.msra.mxu0 %v712
    %1002 = vmatprep.subr.bf16.mxu0 %v715
    %1003 = vmatpush1.bf16.msra.mxu0 %v714
    %1004 = vmatprep.subr.bf16.mxu0 %v717
    %1005 = vmatpush1.bf16.msra.mxu0 %v716
    %1006 = vmatprep.subr.bf16.mxu0 %v719
    %1007 = vmatpush1.bf16.msra.mxu0 %v718
    %1008 = vmatprep.subr.bf16.mxu0 %v721
    %1009 = vmatpush1.bf16.msra.mxu0 %v720
    %1010 = vmatprep.subr.bf16.mxu0 %v723
    %1011 = vmatpush1.bf16.msra.mxu0 %v722
    %1012 = vmatprep.mubr.bf16.mxu0 %v225
    %1013 = vmatmul.mubr.bf16.gmra.mrb[0].mxu0 %v211
    %v1014 = vpop.f32.mrb[0].mxu0
    %v1015 = vadd.f32 0.0, %v1014
    %v1016 = vpop.f32.mrb[0].mxu0
    %v1017 = vadd.f32 0.0, %v1016
    %v1018 = vpop.f32.mrb[0].mxu0
    %v1019 = vpop.f32.mrb[0].mxu0
    %1020 = vdwg.mxu0
    %1021 = vmatprep.subr.bf16.mxu0 %v725
    %1022 = vmatpush1.bf16.msra.mxu0 %v724
    %1023 = vmatprep.subr.bf16.mxu0 %v727
    %1024 = vmatpush1.bf16.msra.mxu0 %v726
    %1025 = vmatprep.subr.bf16.mxu0 %v729
    %1026 = vmatpush1.bf16.msra.mxu0 %v728
    %1027 = vmatprep.subr.bf16.mxu0 %v731
    %1028 = vmatpush1.bf16.msra.mxu0 %v730
    %1029 = vmatprep.subr.bf16.mxu0 %v733
    %1030 = vmatpush1.bf16.msra.mxu0 %v732
    %1031 = vmatprep.subr.bf16.mxu0 %v735
    %1032 = vmatpush1.bf16.msra.mxu0 %v734
    %1033 = vmatprep.subr.bf16.mxu0 %v737
    %1034 = vmatpush1.bf16.msra.mxu0 %v736
    %1035 = vmatprep.subr.bf16.mxu0 %v739
    %1036 = vmatpush1.bf16.msra.mxu0 %v738
    %1037 = vmatprep.subr.bf16.mxu0 %v741
    %1038 = vmatpush1.bf16.msra.mxu0 %v740
    %1039 = vmatprep.subr.bf16.mxu0 %v743
    %1040 = vmatpush1.bf16.msra.mxu0 %v742
    %1041 = vmatprep.subr.bf16.mxu0 %v745
    %1042 = vmatpush1.bf16.msra.mxu0 %v744
    %1043 = vmatprep.subr.bf16.mxu0 %v747
    %1044 = vmatpush1.bf16.msra.mxu0 %v746
    %1045 = vmatprep.subr.bf16.mxu0 %v749
    %1046 = vmatpush1.bf16.msra.mxu0 %v748
    %1047 = vmatprep.subr.bf16.mxu0 %v751
    %1048 = vmatpush1.bf16.msra.mxu0 %v750
    %1049 = vmatprep.subr.bf16.mxu0 %v753
    %1050 = vmatpush1.bf16.msra.mxu0 %v752
    %1051 = vmatprep.subr.bf16.mxu0 %v755
    %1052 = vmatpush1.bf16.msra.mxu0 %v754
    %1053 = vmatprep.mubr.bf16.mxu0 %v235
    %1054 = vmatmul.mubr.bf16.gmra.mrb[0].mxu0 %v233
    %v1055 = vpop.f32.mrb[0].mxu0
    %v1056 = vadd.f32 %v1015, %v1055
    %v1057 = vpop.f32.mrb[0].mxu0
    %v1058 = vadd.f32 %v1017, %v1057
    %v1059 = vpop.f32.mrb[0].mxu0
    %v1060 = vpop.f32.mrb[0].mxu0
    %1061 = vdwg.mxu0
    %1062 = vmatprep.subr.bf16.mxu0 %v757
    %1063 = vmatpush1.bf16.msra.mxu0 %v756
    %1064 = vmatprep.subr.bf16.mxu0 %v759
    %1065 = vmatpush1.bf16.msra.mxu0 %v758
    %1066 = vmatprep.subr.bf16.mxu0 %v761
    %1067 = vmatpush1.bf16.msra.mxu0 %v760
    %1068 = vmatprep.subr.bf16.mxu0 %v763
    %1069 = vmatpush1.bf16.msra.mxu0 %v762
    %1070 = vmatprep.subr.bf16.mxu0 %v765
    %1071 = vmatpush1.bf16.msra.mxu0 %v764
    %1072 = vmatprep.subr.bf16.mxu0 %v767
    %1073 = vmatpush1.bf16.msra.mxu0 %v766
    %1074 = vmatprep.subr.bf16.mxu0 %v769
    %1075 = vmatpush1.bf16.msra.mxu0 %v768
    %1076 = vmatprep.subr.bf16.mxu0 %v771
    %1077 = vmatpush1.bf16.msra.mxu0 %v770
    %1078 = vmatprep.subr.bf16.mxu0 %v773
    %1079 = vmatpush1.bf16.msra.mxu0 %v772
    %1080 = vmatprep.subr.bf16.mxu0 %v775
    %1081 = vmatpush1.bf16.msra.mxu0 %v774
    %1082 = vmatprep.subr.bf16.mxu0 %v777
    %1083 = vmatpush1.bf16.msra.mxu0 %v776
    %1084 = vmatprep.subr.bf16.mxu0 %v779
    %1085 = vmatpush1.bf16.msra.mxu0 %v778
    %1086 = vmatprep.subr.bf16.mxu0 %v781
    %1087 = vmatpush1.bf16.msra.mxu0 %v780
    %1088 = vmatprep.subr.bf16.mxu0 %v783
    %1089 = vmatpush1.bf16.msra.mxu0 %v782
    %1090 = vmatprep.subr.bf16.mxu0 %v785
    %1091 = vmatpush1.bf16.msra.mxu0 %v784
    %1092 = vmatprep.subr.bf16.mxu0 %v787
    %1093 = vmatpush1.bf16.msra.mxu0 %v786
    %1094 = vmatprep.mubr.bf16.mxu0 %v232
    %1095 = vmatmul.mubr.bf16.gmra.mrb[0].mxu0 %v218
    %v1096 = vpop.f32.mrb[0].mxu0
    %v1097 = vadd.f32 %v1056, %v1096
    %v1098 = vpop.f32.mrb[0].mxu0
    %v1099 = vadd.f32 %v1058, %v1098
    %v1100 = vpop.f32.mrb[0].mxu0
    %v1101 = vpop.f32.mrb[0].mxu0
    %1102 = vdwg.mxu0
    %1103 = vmatprep.subr.bf16.mxu0 %v789
    %1104 = vmatpush1.bf16.msra.mxu0 %v788
    %1105 = vmatprep.subr.bf16.mxu0 %v791
    %1106 = vmatpush1.bf16.msra.mxu0 %v790
    %1107 = vmatprep.subr.bf16.mxu0 %v793
    %1108 = vmatpush1.bf16.msra.mxu0 %v792
    %1109 = vmatprep.subr.bf16.mxu0 %v795
    %1110 = vmatpush1.bf16.msra.mxu0 %v794
    %1111 = vmatprep.subr.bf16.mxu0 %v797
    %1112 = vmatpush1.bf16.msra.mxu0 %v796
    %1113 = vmatprep.subr.bf16.mxu0 %v799
    %1114 = vmatpush1.bf16.msra.mxu0 %v798
    %1115 = vmatprep.subr.bf16.mxu0 %v801
    %1116 = vmatpush1.bf16.msra.mxu0 %v800
    %1117 = vmatprep.subr.bf16.mxu0 %v803
    %1118 = vmatpush1.bf16.msra.mxu0 %v802
    %1119 = vmatprep.subr.bf16.mxu0 %v805
    %1120 = vmatpush1.bf16.msra.mxu0 %v804
    %1121 = vmatprep.subr.bf16.mxu0 %v807
    %1122 = vmatpush1.bf16.msra.mxu0 %v806
    %1123 = vmatprep.subr.bf16.mxu0 %v809
    %1124 = vmatpush1.bf16.msra.mxu0 %v808
    %1125 = vmatprep.subr.bf16.mxu0 %v811
    %1126 = vmatpush1.bf16.msra.mxu0 %v810
    %1127 = vmatprep.subr.bf16.mxu0 %v813
    %1128 = vmatpush1.bf16.msra.mxu0 %v812
    %1129 = vmatprep.subr.bf16.mxu0 %v815
    %1130 = vmatpush1.bf16.msra.mxu0 %v814
    %1131 = vmatprep.subr.bf16.mxu0 %v817
    %1132 = vmatpush1.bf16.msra.mxu0 %v816
    %1133 = vmatprep.subr.bf16.mxu0 %v819
    %1134 = vmatpush1.bf16.msra.mxu0 %v818
    %1135 = vmatprep.mubr.bf16.mxu0 %v236
    %1136 = vmatmul.mubr.bf16.gmra.mrb[0].mxu0 %v234
    %v1137 = vpop.f32.mrb[0].mxu0
    %v1138 = vadd.f32 %v1097, %v1137
    %v1139 = vpop.f32.mrb[0].mxu0
    %v1140 = vadd.f32 %v1099, %v1139
    %v1141 = vpop.f32.mrb[0].mxu0
    %v1142 = vpop.f32.mrb[0].mxu0
    %1143 = vdwg.mxu0
    %1144 = vmatprep.subr.bf16.mxu0 %v821
    %1145 = vmatpush1.bf16.msra.mxu0 %v820
    %1146 = vmatprep.subr.bf16.mxu0 %v823
    %1147 = vmatpush1.bf16.msra.mxu0 %v822
    %1148 = vmatprep.subr.bf16.mxu0 %v825
    %1149 = vmatpush1.bf16.msra.mxu0 %v824
    %1150 = vmatprep.subr.bf16.mxu0 %v827
    %1151 = vmatpush1.bf16.msra.mxu0 %v826
    %1152 = vmatprep.subr.bf16.mxu0 %v829
    %1153 = vmatpush1.bf16.msra.mxu0 %v828
    %1154 = vmatprep.subr.bf16.mxu0 %v831
    %1155 = vmatpush1.bf16.msra.mxu0 %v830
    %1156 = vmatprep.subr.bf16.mxu0 %v833
    %1157 = vmatpush1.bf16.msra.mxu0 %v832
    %1158 = vmatprep.subr.bf16.mxu0 %v835
    %1159 = vmatpush1.bf16.msra.mxu0 %v834
    %1160 = vmatprep.subr.bf16.mxu0 0
    %1161 = vmatpush1.bf16.msra.mxu0 0
    %1162 = vmatprep.subr.bf16.mxu0 0
    %1163 = vmatpush1.bf16.msra.mxu0 0
    %1164 = vmatprep.subr.bf16.mxu0 0
    %1165 = vmatpush1.bf16.msra.mxu0 0
    %1166 = vmatprep.subr.bf16.mxu0 0
    %1167 = vmatpush1.bf16.msra.mxu0 0
    %1168 = vmatprep.subr.bf16.mxu0 0
    %1169 = vmatpush1.bf16.msra.mxu0 0
    %1170 = vmatprep.subr.bf16.mxu0 0
    %1171 = vmatpush1.bf16.msra.mxu0 0
    %1172 = vmatprep.subr.bf16.mxu0 0
    %1173 = vmatpush1.bf16.msra.mxu0 0
    %1174 = vmatprep.subr.bf16.mxu0 0
    %1175 = vmatpush1.bf16.msra.mxu0 0
    %1176 = vmatprep.mubr.bf16.mxu0 0
    %1177 = vmatmul.mubr.bf16.gmra.mrb[0].mxu0 %v250
    %v1178 = vpop.f32.mrb[0].mxu0
    %v1179 = vadd.f32 %v1138, %v1178
    %v1180 = vpop.f32.mrb[0].mxu0
    %v1181 = vadd.f32 %v1140, %v1180
    %v1182 = vpop.f32.mrb[0].mxu0
    %v1183 = vpop.f32.mrb[0].mxu0
    %1184 = vdwg.mxu0
    %s1185 = scalar_lea.vmem %s0, 9
    %v1186 = vld [vmem:[%s1185] sm:$0xff]
    %v1187 = vld [vmem:[%s1185 + $0x8] sm:$0x1]
    %v1190 = vcombine.high %v1186, %v1186
    %v1192 = vunpack.c.l.s4 1966171168
    %v1193 = vunpack.c.0.s8 %v1192
    %v1194 = vlaneseq
    %v1195 = vshrl.u32 %v1194, 7
    %v1196 = vsub.s32 %v1193, %v1195
    %v1197 = vrot.slane %v1186, %v1196
    %v1199 = vunpack.c.l.s4 1966171168
    %v1200 = vunpack.c.0.s8 %v1199
    %v1201 = vlaneseq
    %v1202 = vshrl.u32 %v1201, 7
    %v1203 = vsub.s32 %v1200, %v1202
    %v1204 = vrot.slane %v1190, %v1203
    %v1205 = vcombine.high %v1197, %v1197
    %v1206 = vcombine.high %v1204, %v1204
    %v1208 = vunpack.c.l.s4 1966171168
    %v1209 = vunpack.c.0.s8 %v1208
    %v1210 = vlaneseq
    %v1211 = vshrl.u32 %v1210, 7
    %v1212 = vsub.s32 %v1209, %v1211
    %v1213 = vrot.slane %v1197, %v1212
    %v1215 = vunpack.c.l.s4 1966171168
    %v1216 = vunpack.c.0.s8 %v1215
    %v1217 = vlaneseq
    %v1218 = vshrl.u32 %v1217, 7
    %v1219 = vsub.s32 %v1216, %v1218
    %v1220 = vrot.slane %v1204, %v1219
    %v1222 = vunpack.c.l.s4 1966171168
    %v1223 = vunpack.c.0.s8 %v1222
    %v1224 = vlaneseq
    %v1225 = vshrl.u32 %v1224, 7
    %v1226 = vsub.s32 %v1223, %v1225
    %v1227 = vrot.slane %v1205, %v1226
    %v1229 = vunpack.c.l.s4 1966171168
    %v1230 = vunpack.c.0.s8 %v1229
    %v1231 = vlaneseq
    %v1232 = vshrl.u32 %v1231, 7
    %v1233 = vsub.s32 %v1230, %v1232
    %v1234 = vrot.slane %v1206, %v1233
    %v1235 = vcombine.high %v1213, %v1213
    %v1236 = vcombine.high %v1220, %v1220
    %v1237 = vcombine.high %v1227, %v1227
    %v1238 = vcombine.high %v1234, %v1234
    %v1240 = vunpack.c.l.s4 1966171168
    %v1241 = vunpack.c.0.s8 %v1240
    %v1242 = vlaneseq
    %v1243 = vshrl.u32 %v1242, 7
    %v1244 = vsub.s32 %v1241, %v1243
    %v1245 = vrot.slane %v1187, %v1244
    %v1247 = vunpack.c.l.s4 1966171168
    %v1248 = vunpack.c.0.s8 %v1247
    %v1249 = vlaneseq
    %v1250 = vshrl.u32 %v1249, 7
    %v1251 = vsub.s32 %v1248, %v1250
    %v1252 = vrot.slane %v1245, %v1251
    %1262 = vmatprep.subr.bf16.mxu0 %v693
    %1263 = vmatpush1.bf16.msra.mxu0 %v692
    %1264 = vmatprep.subr.bf16.mxu0 %v695
    %1265 = vmatpush1.bf16.msra.mxu0 %v694
    %1266 = vmatprep.subr.bf16.mxu0 %v697
    %1267 = vmatpush1.bf16.msra.mxu0 %v696
    %1268 = vmatprep.subr.bf16.mxu0 %v699
    %1269 = vmatpush1.bf16.msra.mxu0 %v698
    %1270 = vmatprep.subr.bf16.mxu0 %v701
    %1271 = vmatpush1.bf16.msra.mxu0 %v700
    %1272 = vmatprep.subr.bf16.mxu0 %v703
    %1273 = vmatpush1.bf16.msra.mxu0 %v702
    %1274 = vmatprep.subr.bf16.mxu0 %v705
    %1275 = vmatpush1.bf16.msra.mxu0 %v704
    %1276 = vmatprep.subr.bf16.mxu0 %v707
    %1277 = vmatpush1.bf16.msra.mxu0 %v706
    %1278 = vmatprep.subr.bf16.mxu0 %v709
    %1279 = vmatpush1.bf16.msra.mxu0 %v708
    %1280 = vmatprep.subr.bf16.mxu0 %v711
    %1281 = vmatpush1.bf16.msra.mxu0 %v710
    %1282 = vmatprep.subr.bf16.mxu0 %v713
    %1283 = vmatpush1.bf16.msra.mxu0 %v712
    %1284 = vmatprep.subr.bf16.mxu0 %v715
    %1285 = vmatpush1.bf16.msra.mxu0 %v714
    %1286 = vmatprep.subr.bf16.mxu0 %v717
    %1287 = vmatpush1.bf16.msra.mxu0 %v716
    %1288 = vmatprep.subr.bf16.mxu0 %v719
    %1289 = vmatpush1.bf16.msra.mxu0 %v718
    %1290 = vmatprep.subr.bf16.mxu0 %v721
    %1291 = vmatpush1.bf16.msra.mxu0 %v720
    %1292 = vmatprep.subr.bf16.mxu0 %v723
    %1293 = vmatpush1.bf16.msra.mxu0 %v722
    %1294 = vmatprep.mubr.bf16.mxu0 %v1227
    %1295 = vmatmul.mubr.bf16.gmra.mrb[0].mxu0 %v1213
    %v1296 = vpop.f32.mrb[0].mxu0
    %v1297 = vadd.f32 0.0, %v1296
    %v1298 = vpop.f32.mrb[0].mxu0
    %v1299 = vadd.f32 0.0, %v1298
    %v1300 = vpop.f32.mrb[0].mxu0
    %v1301 = vpop.f32.mrb[0].mxu0
    %1302 = vdwg.mxu0
    %1303 = vmatprep.subr.bf16.mxu0 %v725
    %1304 = vmatpush1.bf16.msra.mxu0 %v724
    %1305 = vmatprep.subr.bf16.mxu0 %v727
    %1306 = vmatpush1.bf16.msra.mxu0 %v726
    %1307 = vmatprep.subr.bf16.mxu0 %v729
    %1308 = vmatpush1.bf16.msra.mxu0 %v728
    %1309 = vmatprep.subr.bf16.mxu0 %v731
    %1310 = vmatpush1.bf16.msra.mxu0 %v730
    %1311 = vmatprep.subr.bf16.mxu0 %v733
    %1312 = vmatpush1.bf16.msra.mxu0 %v732
    %1313 = vmatprep.subr.bf16.mxu0 %v735
    %1314 = vmatpush1.bf16.msra.mxu0 %v734
    %1315 = vmatprep.subr.bf16.mxu0 %v737
    %1316 = vmatpush1.bf16.msra.mxu0 %v736
    %1317 = vmatprep.subr.bf16.mxu0 %v739
    %1318 = vmatpush1.bf16.msra.mxu0 %v738
    %1319 = vmatprep.subr.bf16.mxu0 %v741
    %1320 = vmatpush1.bf16.msra.mxu0 %v740
    %1321 = vmatprep.subr.bf16.mxu0 %v743
    %1322 = vmatpush1.bf16.msra.mxu0 %v742
    %1323 = vmatprep.subr.bf16.mxu0 %v745
    %1324 = vmatpush1.bf16.msra.mxu0 %v744
    %1325 = vmatprep.subr.bf16.mxu0 %v747
    %1326 = vmatpush1.bf16.msra.mxu0 %v746
    %1327 = vmatprep.subr.bf16.mxu0 %v749
    %1328 = vmatpush1.bf16.msra.mxu0 %v748
    %1329 = vmatprep.subr.bf16.mxu0 %v751
    %1330 = vmatpush1.bf16.msra.mxu0 %v750
    %1331 = vmatprep.subr.bf16.mxu0 %v753
    %1332 = vmatpush1.bf16.msra.mxu0 %v752
    %1333 = vmatprep.subr.bf16.mxu0 %v755
    %1334 = vmatpush1.bf16.msra.mxu0 %v754
    %1335 = vmatprep.mubr.bf16.mxu0 %v1237
    %1336 = vmatmul.mubr.bf16.gmra.mrb[0].mxu0 %v1235
    %v1337 = vpop.f32.mrb[0].mxu0
    %v1338 = vadd.f32 %v1297, %v1337
    %v1339 = vpop.f32.mrb[0].mxu0
    %v1340 = vadd.f32 %v1299, %v1339
    %v1341 = vpop.f32.mrb[0].mxu0
    %v1342 = vpop.f32.mrb[0].mxu0
    %1343 = vdwg.mxu0
    %1344 = vmatprep.subr.bf16.mxu0 %v757
    %1345 = vmatpush1.bf16.msra.mxu0 %v756
    %1346 = vmatprep.subr.bf16.mxu0 %v759
    %1347 = vmatpush1.bf16.msra.mxu0 %v758
    %1348 = vmatprep.subr.bf16.mxu0 %v761
    %1349 = vmatpush1.bf16.msra.mxu0 %v760
    %1350 = vmatprep.subr.bf16.mxu0 %v763
    %1351 = vmatpush1.bf16.msra.mxu0 %v762
    %1352 = vmatprep.subr.bf16.mxu0 %v765
    %1353 = vmatpush1.bf16.msra.mxu0 %v764
    %1354 = vmatprep.subr.bf16.mxu0 %v767
    %1355 = vmatpush1.bf16.msra.mxu0 %v766
    %1356 = vmatprep.subr.bf16.mxu0 %v769
    %1357 = vmatpush1.bf16.msra.mxu0 %v768
    %1358 = vmatprep.subr.bf16.mxu0 %v771
    %1359 = vmatpush1.bf16.msra.mxu0 %v770
    %1360 = vmatprep.subr.bf16.mxu0 %v773
    %1361 = vmatpush1.bf16.msra.mxu0 %v772
    %1362 = vmatprep.subr.bf16.mxu0 %v775
    %1363 = vmatpush1.bf16.msra.mxu0 %v774
    %1364 = vmatprep.subr.bf16.mxu0 %v777
    %1365 = vmatpush1.bf16.msra.mxu0 %v776
    %1366 = vmatprep.subr.bf16.mxu0 %v779
    %1367 = vmatpush1.bf16.msra.mxu0 %v778
    %1368 = vmatprep.subr.bf16.mxu0 %v781
    %1369 = vmatpush1.bf16.msra.mxu0 %v780
    %1370 = vmatprep.subr.bf16.mxu0 %v783
    %1371 = vmatpush1.bf16.msra.mxu0 %v782
    %1372 = vmatprep.subr.bf16.mxu0 %v785
    %1373 = vmatpush1.bf16.msra.mxu0 %v784
    %1374 = vmatprep.subr.bf16.mxu0 %v787
    %1375 = vmatpush1.bf16.msra.mxu0 %v786
    %1376 = vmatprep.mubr.bf16.mxu0 %v1234
    %1377 = vmatmul.mubr.bf16.gmra.mrb[0].mxu0 %v1220
    %v1378 = vpop.f32.mrb[0].mxu0
    %v1379 = vadd.f32 %v1338, %v1378
    %v1380 = vpop.f32.mrb[0].mxu0
    %v1381 = vadd.f32 %v1340, %v1380
    %v1382 = vpop.f32.mrb[0].mxu0
    %v1383 = vpop.f32.mrb[0].mxu0
    %1384 = vdwg.mxu0
    %1385 = vmatprep.subr.bf16.mxu0 %v789
    %1386 = vmatpush1.bf16.msra.mxu0 %v788
    %1387 = vmatprep.subr.bf16.mxu0 %v791
    %1388 = vmatpush1.bf16.msra.mxu0 %v790
    %1389 = vmatprep.subr.bf16.mxu0 %v793
    %1390 = vmatpush1.bf16.msra.mxu0 %v792
    %1391 = vmatprep.subr.bf16.mxu0 %v795
    %1392 = vmatpush1.bf16.msra.mxu0 %v794
    %1393 = vmatprep.subr.bf16.mxu0 %v797
    %1394 = vmatpush1.bf16.msra.mxu0 %v796
    %1395 = vmatprep.subr.bf16.mxu0 %v799
    %1396 = vmatpush1.bf16.msra.mxu0 %v798
    %1397 = vmatprep.subr.bf16.mxu0 %v801
    %1398 = vmatpush1.bf16.msra.mxu0 %v800
    %1399 = vmatprep.subr.bf16.mxu0 %v803
    %1400 = vmatpush1.bf16.msra.mxu0 %v802
    %1401 = vmatprep.subr.bf16.mxu0 %v805
    %1402 = vmatpush1.bf16.msra.mxu0 %v804
    %1403 = vmatprep.subr.bf16.mxu0 %v807
    %1404 = vmatpush1.bf16.msra.mxu0 %v806
    %1405 = vmatprep.subr.bf16.mxu0 %v809
    %1406 = vmatpush1.bf16.msra.mxu0 %v808
    %1407 = vmatprep.subr.bf16.mxu0 %v811
    %1408 = vmatpush1.bf16.msra.mxu0 %v810
    %1409 = vmatprep.subr.bf16.mxu0 %v813
    %1410 = vmatpush1.bf16.msra.mxu0 %v812
    %1411 = vmatprep.subr.bf16.mxu0 %v815
    %1412 = vmatpush1.bf16.msra.mxu0 %v814
    %1413 = vmatprep.subr.bf16.mxu0 %v817
    %1414 = vmatpush1.bf16.msra.mxu0 %v816
    %1415 = vmatprep.subr.bf16.mxu0 %v819
    %1416 = vmatpush1.bf16.msra.mxu0 %v818
    %1417 = vmatprep.mubr.bf16.mxu0 %v1238
    %1418 = vmatmul.mubr.bf16.gmra.mrb[0].mxu0 %v1236
    %v1419 = vpop.f32.mrb[0].mxu0
    %v1420 = vadd.f32 %v1379, %v1419
    %v1421 = vpop.f32.mrb[0].mxu0
    %v1422 = vadd.f32 %v1381, %v1421
    %v1423 = vpop.f32.mrb[0].mxu0
    %v1424 = vpop.f32.mrb[0].mxu0
    %1425 = vdwg.mxu0
    %1426 = vmatprep.subr.bf16.mxu0 %v821
    %1427 = vmatpush1.bf16.msra.mxu0 %v820
    %1428 = vmatprep.subr.bf16.mxu0 %v823
    %1429 = vmatpush1.bf16.msra.mxu0 %v822
    %1430 = vmatprep.subr.bf16.mxu0 %v825
    %1431 = vmatpush1.bf16.msra.mxu0 %v824
    %1432 = vmatprep.subr.bf16.mxu0 %v827
    %1433 = vmatpush1.bf16.msra.mxu0 %v826
    %1434 = vmatprep.subr.bf16.mxu0 %v829
    %1435 = vmatpush1.bf16.msra.mxu0 %v828
    %1436 = vmatprep.subr.bf16.mxu0 %v831
    %1437 = vmatpush1.bf16.msra.mxu0 %v830
    %1438 = vmatprep.subr.bf16.mxu0 %v833
    %1439 = vmatpush1.bf16.msra.mxu0 %v832
    %1440 = vmatprep.subr.bf16.mxu0 %v835
    %1441 = vmatpush1.bf16.msra.mxu0 %v834
    %1442 = vmatprep.subr.bf16.mxu0 0
    %1443 = vmatpush1.bf16.msra.mxu0 0
    %1444 = vmatprep.subr.bf16.mxu0 0
    %1445 = vmatpush1.bf16.msra.mxu0 0
    %1446 = vmatprep.subr.bf16.mxu0 0
    %1447 = vmatpush1.bf16.msra.mxu0 0
    %1448 = vmatprep.subr.bf16.mxu0 0
    %1449 = vmatpush1.bf16.msra.mxu0 0
    %1450 = vmatprep.subr.bf16.mxu0 0
    %1451 = vmatpush1.bf16.msra.mxu0 0
    %1452 = vmatprep.subr.bf16.mxu0 0
    %1453 = vmatpush1.bf16.msra.mxu0 0
    %1454 = vmatprep.subr.bf16.mxu0 0
    %1455 = vmatpush1.bf16.msra.mxu0 0
    %1456 = vmatprep.subr.bf16.mxu0 0
    %1457 = vmatpush1.bf16.msra.mxu0 0
    %1458 = vmatprep.mubr.bf16.mxu0 0
    %1459 = vmatmul.mubr.bf16.gmra.mrb[0].mxu0 %v1252
    %v1460 = vpop.f32.mrb[0].mxu0
    %v1461 = vadd.f32 %v1420, %v1460
    %v1462 = vpop.f32.mrb[0].mxu0
    %v1463 = vadd.f32 %v1422, %v1462
    %v1464 = vpop.f32.mrb[0].mxu0
    %v1465 = vpop.f32.mrb[0].mxu0
    %1466 = vdwg.mxu0
    %v1467 = vmax.f32 %v1179, %v1461
    %v1468 = vmax.f32 %v1181, %v1463
    %s1469 = scalar_lea.vmem %s0, 18
    %v1470 = vld [vmem:[%s1469] sm:$0xff]
    %v1471 = vld [vmem:[%s1469 + $0x8] sm:$0x1]
    %v1474 = vcombine.high %v1470, %v1470
    %v1476 = vunpack.c.l.s4 1966171168
    %v1477 = vunpack.c.0.s8 %v1476
    %v1478 = vlaneseq
    %v1479 = vshrl.u32 %v1478, 7
    %v1480 = vsub.s32 %v1477, %v1479
    %v1481 = vrot.slane %v1470, %v1480
    %v1483 = vunpack.c.l.s4 1966171168
    %v1484 = vunpack.c.0.s8 %v1483
    %v1485 = vlaneseq
    %v1486 = vshrl.u32 %v1485, 7
    %v1487 = vsub.s32 %v1484, %v1486
    %v1488 = vrot.slane %v1474, %v1487
    %v1489 = vcombine.high %v1481, %v1481
    %v1490 = vcombine.high %v1488, %v1488
    %v1492 = vunpack.c.l.s4 1966171168
    %v1493 = vunpack.c.0.s8 %v1492
    %v1494 = vlaneseq
    %v1495 = vshrl.u32 %v1494, 7
    %v1496 = vsub.s32 %v1493, %v1495
    %v1497 = vrot.slane %v1481, %v1496
    %v1499 = vunpack.c.l.s4 1966171168
    %v1500 = vunpack.c.0.s8 %v1499
    %v1501 = vlaneseq
    %v1502 = vshrl.u32 %v1501, 7
    %v1503 = vsub.s32 %v1500, %v1502
    %v1504 = vrot.slane %v1488, %v1503
    %v1506 = vunpack.c.l.s4 1966171168
    %v1507 = vunpack.c.0.s8 %v1506
    %v1508 = vlaneseq
    %v1509 = vshrl.u32 %v1508, 7
    %v1510 = vsub.s32 %v1507, %v1509
    %v1511 = vrot.slane %v1489, %v1510
    %v1513 = vunpack.c.l.s4 1966171168
    %v1514 = vunpack.c.0.s8 %v1513
    %v1515 = vlaneseq
    %v1516 = vshrl.u32 %v1515, 7
    %v1517 = vsub.s32 %v1514, %v1516
    %v1518 = vrot.slane %v1490, %v1517
    %v1519 = vcombine.high %v1497, %v1497
    %v1520 = vcombine.high %v1504, %v1504
    %v1521 = vcombine.high %v1511, %v1511
    %v1522 = vcombine.high %v1518, %v1518
    %v1524 = vunpack.c.l.s4 1966171168
    %v1525 = vunpack.c.0.s8 %v1524
    %v1526 = vlaneseq
    %v1527 = vshrl.u32 %v1526, 7
    %v1528 = vsub.s32 %v1525, %v1527
    %v1529 = vrot.slane %v1471, %v1528
    %v1531 = vunpack.c.l.s4 1966171168
    %v1532 = vunpack.c.0.s8 %v1531
    %v1533 = vlaneseq
    %v1534 = vshrl.u32 %v1533, 7
    %v1535 = vsub.s32 %v1532, %v1534
    %v1536 = vrot.slane %v1529, %v1535
    %1546 = vmatprep.subr.bf16.mxu0 %v693
    %1547 = vmatpush1.bf16.msra.mxu0 %v692
    %1548 = vmatprep.subr.bf16.mxu0 %v695
    %1549 = vmatpush1.bf16.msra.mxu0 %v694
    %1550 = vmatprep.subr.bf16.mxu0 %v697
    %1551 = vmatpush1.bf16.msra.mxu0 %v696
    %1552 = vmatprep.subr.bf16.mxu0 %v699
    %1553 = vmatpush1.bf16.msra.mxu0 %v698
    %1554 = vmatprep.subr.bf16.mxu0 %v701
    %1555 = vmatpush1.bf16.msra.mxu0 %v700
    %1556 = vmatprep.subr.bf16.mxu0 %v703
    %1557 = vmatpush1.bf16.msra.mxu0 %v702
    %1558 = vmatprep.subr.bf16.mxu0 %v705
    %1559 = vmatpush1.bf16.msra.mxu0 %v704
    %1560 = vmatprep.subr.bf16.mxu0 %v707
    %1561 = vmatpush1.bf16.msra.mxu0 %v706
    %1562 = vmatprep.subr.bf16.mxu0 %v709
    %1563 = vmatpush1.bf16.msra.mxu0 %v708
    %1564 = vmatprep.subr.bf16.mxu0 %v711
    %1565 = vmatpush1.bf16.msra.mxu0 %v710
    %1566 = vmatprep.subr.bf16.mxu0 %v713
    %1567 = vmatpush1.bf16.msra.mxu0 %v712
    %1568 = vmatprep.subr.bf16.mxu0 %v715
    %1569 = vmatpush1.bf16.msra.mxu0 %v714
    %1570 = vmatprep.subr.bf16.mxu0 %v717
    %1571 = vmatpush1.bf16.msra.mxu0 %v716
    %1572 = vmatprep.subr.bf16.mxu0 %v719
    %1573 = vmatpush1.bf16.msra.mxu0 %v718
    %1574 = vmatprep.subr.bf16.mxu0 %v721
    %1575 = vmatpush1.bf16.msra.mxu0 %v720
    %1576 = vmatprep.subr.bf16.mxu0 %v723
    %1577 = vmatpush1.bf16.msra.mxu0 %v722
    %1578 = vmatprep.mubr.bf16.mxu0 %v1511
    %1579 = vmatmul.mubr.bf16.gmra.mrb[0].mxu0 %v1497
    %v1580 = vpop.f32.mrb[0].mxu0
    %v1581 = vadd.f32 0.0, %v1580
    %v1582 = vpop.f32.mrb[0].mxu0
    %v1583 = vadd.f32 0.0, %v1582
    %v1584 = vpop.f32.mrb[0].mxu0
    %v1585 = vpop.f32.mrb[0].mxu0
    %1586 = vdwg.mxu0
    %1587 = vmatprep.subr.bf16.mxu0 %v725
    %1588 = vmatpush1.bf16.msra.mxu0 %v724
    %1589 = vmatprep.subr.bf16.mxu0 %v727
    %1590 = vmatpush1.bf16.msra.mxu0 %v726
    %1591 = vmatprep.subr.bf16.mxu0 %v729
    %1592 = vmatpush1.bf16.msra.mxu0 %v728
    %1593 = vmatprep.subr.bf16.mxu0 %v731
    %1594 = vmatpush1.bf16.msra.mxu0 %v730
    %1595 = vmatprep.subr.bf16.mxu0 %v733
    %1596 = vmatpush1.bf16.msra.mxu0 %v732
    %1597 = vmatprep.subr.bf16.mxu0 %v735
    %1598 = vmatpush1.bf16.msra.mxu0 %v734
    %1599 = vmatprep.subr.bf16.mxu0 %v737
    %1600 = vmatpush1.bf16.msra.mxu0 %v736
    %1601 = vmatprep.subr.bf16.mxu0 %v739
    %1602 = vmatpush1.bf16.msra.mxu0 %v738
    %1603 = vmatprep.subr.bf16.mxu0 %v741
    %1604 = vmatpush1.bf16.msra.mxu0 %v740
    %1605 = vmatprep.subr.bf16.mxu0 %v743
    %1606 = vmatpush1.bf16.msra.mxu0 %v742
    %1607 = vmatprep.subr.bf16.mxu0 %v745
    %1608 = vmatpush1.bf16.msra.mxu0 %v744
    %1609 = vmatprep.subr.bf16.mxu0 %v747
    %1610 = vmatpush1.bf16.msra.mxu0 %v746
    %1611 = vmatprep.subr.bf16.mxu0 %v749
    %1612 = vmatpush1.bf16.msra.mxu0 %v748
    %1613 = vmatprep.subr.bf16.mxu0 %v751
    %1614 = vmatpush1.bf16.msra.mxu0 %v750
    %1615 = vmatprep.subr.bf16.mxu0 %v753
    %1616 = vmatpush1.bf16.msra.mxu0 %v752
    %1617 = vmatprep.subr.bf16.mxu0 %v755
    %1618 = vmatpush1.bf16.msra.mxu0 %v754
    %1619 = vmatprep.mubr.bf16.mxu0 %v1521
    %1620 = vmatmul.mubr.bf16.gmra.mrb[0].mxu0 %v1519
    %v1621 = vpop.f32.mrb[0].mxu0
    %v1622 = vadd.f32 %v1581, %v1621
    %v1623 = vpop.f32.mrb[0].mxu0
    %v1624 = vadd.f32 %v1583, %v1623
    %v1625 = vpop.f32.mrb[0].mxu0
    %v1626 = vpop.f32.mrb[0].mxu0
    %1627 = vdwg.mxu0
    %1628 = vmatprep.subr.bf16.mxu0 %v757
    %1629 = vmatpush1.bf16.msra.mxu0 %v756
    %1630 = vmatprep.subr.bf16.mxu0 %v759
    %1631 = vmatpush1.bf16.msra.mxu0 %v758
    %1632 = vmatprep.subr.bf16.mxu0 %v761
    %1633 = vmatpush1.bf16.msra.mxu0 %v760
    %1634 = vmatprep.subr.bf16.mxu0 %v763
    %1635 = vmatpush1.bf16.msra.mxu0 %v762
    %1636 = vmatprep.subr.bf16.mxu0 %v765
    %1637 = vmatpush1.bf16.msra.mxu0 %v764
    %1638 = vmatprep.subr.bf16.mxu0 %v767
    %1639 = vmatpush1.bf16.msra.mxu0 %v766
    %1640 = vmatprep.subr.bf16.mxu0 %v769
    %1641 = vmatpush1.bf16.msra.mxu0 %v768
    %1642 = vmatprep.subr.bf16.mxu0 %v771
    %1643 = vmatpush1.bf16.msra.mxu0 %v770
    %1644 = vmatprep.subr.bf16.mxu0 %v773
    %1645 = vmatpush1.bf16.msra.mxu0 %v772
    %1646 = vmatprep.subr.bf16.mxu0 %v775
    %1647 = vmatpush1.bf16.msra.mxu0 %v774
    %1648 = vmatprep.subr.bf16.mxu0 %v777
    %1649 = vmatpush1.bf16.msra.mxu0 %v776
    %1650 = vmatprep.subr.bf16.mxu0 %v779
    %1651 = vmatpush1.bf16.msra.mxu0 %v778
    %1652 = vmatprep.subr.bf16.mxu0 %v781
    %1653 = vmatpush1.bf16.msra.mxu0 %v780
    %1654 = vmatprep.subr.bf16.mxu0 %v783
    %1655 = vmatpush1.bf16.msra.mxu0 %v782
    %1656 = vmatprep.subr.bf16.mxu0 %v785
    %1657 = vmatpush1.bf16.msra.mxu0 %v784
    %1658 = vmatprep.subr.bf16.mxu0 %v787
    %1659 = vmatpush1.bf16.msra.mxu0 %v786
    %1660 = vmatprep.mubr.bf16.mxu0 %v1518
    %1661 = vmatmul.mubr.bf16.gmra.mrb[0].mxu0 %v1504
    %v1662 = vpop.f32.mrb[0].mxu0
    %v1663 = vadd.f32 %v1622, %v1662
    %v1664 = vpop.f32.mrb[0].mxu0
    %v1665 = vadd.f32 %v1624, %v1664
    %v1666 = vpop.f32.mrb[0].mxu0
    %v1667 = vpop.f32.mrb[0].mxu0
    %1668 = vdwg.mxu0
    %1669 = vmatprep.subr.bf16.mxu0 %v789
    %1670 = vmatpush1.bf16.msra.mxu0 %v788
    %1671 = vmatprep.subr.bf16.mxu0 %v791
    %1672 = vmatpush1.bf16.msra.mxu0 %v790
    %1673 = vmatprep.subr.bf16.mxu0 %v793
    %1674 = vmatpush1.bf16.msra.mxu0 %v792
    %1675 = vmatprep.subr.bf16.mxu0 %v795
    %1676 = vmatpush1.bf16.msra.mxu0 %v794
    %1677 = vmatprep.subr.bf16.mxu0 %v797
    %1678 = vmatpush1.bf16.msra.mxu0 %v796
    %1679 = vmatprep.subr.bf16.mxu0 %v799
    %1680 = vmatpush1.bf16.msra.mxu0 %v798
    %1681 = vmatprep.subr.bf16.mxu0 %v801
    %1682 = vmatpush1.bf16.msra.mxu0 %v800
    %1683 = vmatprep.subr.bf16.mxu0 %v803
    %1684 = vmatpush1.bf16.msra.mxu0 %v802
    %1685 = vmatprep.subr.bf16.mxu0 %v805
    %1686 = vmatpush1.bf16.msra.mxu0 %v804
    %1687 = vmatprep.subr.bf16.mxu0 %v807
    %1688 = vmatpush1.bf16.msra.mxu0 %v806
    %1689 = vmatprep.subr.bf16.mxu0 %v809
    %1690 = vmatpush1.bf16.msra.mxu0 %v808
    %1691 = vmatprep.subr.bf16.mxu0 %v811
    %1692 = vmatpush1.bf16.msra.mxu0 %v810
    %1693 = vmatprep.subr.bf16.mxu0 %v813
    %1694 = vmatpush1.bf16.msra.mxu0 %v812
    %1695 = vmatprep.subr.bf16.mxu0 %v815
    %1696 = vmatpush1.bf16.msra.mxu0 %v814
    %1697 = vmatprep.subr.bf16.mxu0 %v817
    %1698 = vmatpush1.bf16.msra.mxu0 %v816
    %1699 = vmatprep.subr.bf16.mxu0 %v819
    %1700 = vmatpush1.bf16.msra.mxu0 %v818
    %1701 = vmatprep.mubr.bf16.mxu0 %v1522
    %1702 = vmatmul.mubr.bf16.gmra.mrb[0].mxu0 %v1520
    %v1703 = vpop.f32.mrb[0].mxu0
    %v1704 = vadd.f32 %v1663, %v1703
    %v1705 = vpop.f32.mrb[0].mxu0
    %v1706 = vadd.f32 %v1665, %v1705
    %v1707 = vpop.f32.mrb[0].mxu0
    %v1708 = vpop.f32.mrb[0].mxu0
    %1709 = vdwg.mxu0
    %1710 = vmatprep.subr.bf16.mxu0 %v821
    %1711 = vmatpush1.bf16.msra.mxu0 %v820
    %1712 = vmatprep.subr.bf16.mxu0 %v823
    %1713 = vmatpush1.bf16.msra.mxu0 %v822
    %1714 = vmatprep.subr.bf16.mxu0 %v825
    %1715 = vmatpush1.bf16.msra.mxu0 %v824
    %1716 = vmatprep.subr.bf16.mxu0 %v827
    %1717 = vmatpush1.bf16.msra.mxu0 %v826
    %1718 = vmatprep.subr.bf16.mxu0 %v829
    %1719 = vmatpush1.bf16.msra.mxu0 %v828
    %1720 = vmatprep.subr.bf16.mxu0 %v831
    %1721 = vmatpush1.bf16.msra.mxu0 %v830
    %1722 = vmatprep.subr.bf16.mxu0 %v833
    %1723 = vmatpush1.bf16.msra.mxu0 %v832
    %1724 = vmatprep.subr.bf16.mxu0 %v835
    %1725 = vmatpush1.bf16.msra.mxu0 %v834
    %1726 = vmatprep.subr.bf16.mxu0 0
    %1727 = vmatpush1.bf16.msra.mxu0 0
    %1728 = vmatprep.subr.bf16.mxu0 0
    %1729 = vmatpush1.bf16.msra.mxu0 0
    %1730 = vmatprep.subr.bf16.mxu0 0
    %1731 = vmatpush1.bf16.msra.mxu0 0
    %1732 = vmatprep.subr.bf16.mxu0 0
    %1733 = vmatpush1.bf16.msra.mxu0 0
    %1734 = vmatprep.subr.bf16.mxu0 0
    %1735 = vmatpush1.bf16.msra.mxu0 0
    %1736 = vmatprep.subr.bf16.mxu0 0
    %1737 = vmatpush1.bf16.msra.mxu0 0
    %1738 = vmatprep.subr.bf16.mxu0 0
    %1739 = vmatpush1.bf16.msra.mxu0 0
    %1740 = vmatprep.subr.bf16.mxu0 0
    %1741 = vmatpush1.bf16.msra.mxu0 0
    %1742 = vmatprep.mubr.bf16.mxu0 0
    %1743 = vmatmul.mubr.bf16.gmra.mrb[0].mxu0 %v1536
    %v1744 = vpop.f32.mrb[0].mxu0
    %v1745 = vadd.f32 %v1704, %v1744
    %v1746 = vpop.f32.mrb[0].mxu0
    %v1747 = vadd.f32 %v1706, %v1746
    %v1748 = vpop.f32.mrb[0].mxu0
    %v1749 = vpop.f32.mrb[0].mxu0
    %1750 = vdwg.mxu0
    %v1751 = vmax.f32 %v1467, %v1745
    %v1752 = vmax.f32 %v1468, %v1747
    %s1753 = scalar_lea.vmem %s0, 27
    %v1754 = vld [vmem:[%s1753] sm:$0xff]
    %v1755 = vld [vmem:[%s1753 + $0x8] sm:$0x1]
    %v1758 = vcombine.high %v1754, %v1754
    %v1760 = vunpack.c.l.s4 1966171168
    %v1761 = vunpack.c.0.s8 %v1760
    %v1762 = vlaneseq
    %v1763 = vshrl.u32 %v1762, 7
    %v1764 = vsub.s32 %v1761, %v1763
    %v1765 = vrot.slane %v1754, %v1764
    %v1767 = vunpack.c.l.s4 1966171168
    %v1768 = vunpack.c.0.s8 %v1767
    %v1769 = vlaneseq
    %v1770 = vshrl.u32 %v1769, 7
    %v1771 = vsub.s32 %v1768, %v1770
    %v1772 = vrot.slane %v1758, %v1771
    %v1773 = vcombine.high %v1765, %v1765
    %v1774 = vcombine.high %v1772, %v1772
    %v1776 = vunpack.c.l.s4 1966171168
    %v1777 = vunpack.c.0.s8 %v1776
    %v1778 = vlaneseq
    %v1779 = vshrl.u32 %v1778, 7
    %v1780 = vsub.s32 %v1777, %v1779
    %v1781 = vrot.slane %v1765, %v1780
    %v1783 = vunpack.c.l.s4 1966171168
    %v1784 = vunpack.c.0.s8 %v1783
    %v1785 = vlaneseq
    %v1786 = vshrl.u32 %v1785, 7
    %v1787 = vsub.s32 %v1784, %v1786
    %v1788 = vrot.slane %v1772, %v1787
    %v1790 = vunpack.c.l.s4 1966171168
    %v1791 = vunpack.c.0.s8 %v1790
    %v1792 = vlaneseq
    %v1793 = vshrl.u32 %v1792, 7
    %v1794 = vsub.s32 %v1791, %v1793
    %v1795 = vrot.slane %v1773, %v1794
    %v1797 = vunpack.c.l.s4 1966171168
    %v1798 = vunpack.c.0.s8 %v1797
    %v1799 = vlaneseq
    %v1800 = vshrl.u32 %v1799, 7
    %v1801 = vsub.s32 %v1798, %v1800
    %v1802 = vrot.slane %v1774, %v1801
    %v1803 = vcombine.high %v1781, %v1781
    %v1804 = vcombine.high %v1788, %v1788
    %v1805 = vcombine.high %v1795, %v1795
    %v1806 = vcombine.high %v1802, %v1802
    %v1808 = vunpack.c.l.s4 1966171168
    %v1809 = vunpack.c.0.s8 %v1808
    %v1810 = vlaneseq
    %v1811 = vshrl.u32 %v1810, 7
    %v1812 = vsub.s32 %v1809, %v1811
    %v1813 = vrot.slane %v1755, %v1812
    %v1815 = vunpack.c.l.s4 1966171168
    %v1816 = vunpack.c.0.s8 %v1815
    %v1817 = vlaneseq
    %v1818 = vshrl.u32 %v1817, 7
    %v1819 = vsub.s32 %v1816, %v1818
    %v1820 = vrot.slane %v1813, %v1819
    %1830 = vmatprep.subr.bf16.mxu0 %v693
    %1831 = vmatpush1.bf16.msra.mxu0 %v692
    %1832 = vmatprep.subr.bf16.mxu0 %v695
    %1833 = vmatpush1.bf16.msra.mxu0 %v694
    %1834 = vmatprep.subr.bf16.mxu0 %v697
    %1835 = vmatpush1.bf16.msra.mxu0 %v696
    %1836 = vmatprep.subr.bf16.mxu0 %v699
    %1837 = vmatpush1.bf16.msra.mxu0 %v698
    %1838 = vmatprep.subr.bf16.mxu0 %v701
    %1839 = vmatpush1.bf16.msra.mxu0 %v700
    %1840 = vmatprep.subr.bf16.mxu0 %v703
    %1841 = vmatpush1.bf16.msra.mxu0 %v702
    %1842 = vmatprep.subr.bf16.mxu0 %v705
    %1843 = vmatpush1.bf16.msra.mxu0 %v704
    %1844 = vmatprep.subr.bf16.mxu0 %v707
    %1845 = vmatpush1.bf16.msra.mxu0 %v706
    %1846 = vmatprep.subr.bf16.mxu0 %v709
    %1847 = vmatpush1.bf16.msra.mxu0 %v708
    %1848 = vmatprep.subr.bf16.mxu0 %v711
    %1849 = vmatpush1.bf16.msra.mxu0 %v710
    %1850 = vmatprep.subr.bf16.mxu0 %v713
    %1851 = vmatpush1.bf16.msra.mxu0 %v712
    %1852 = vmatprep.subr.bf16.mxu0 %v715
    %1853 = vmatpush1.bf16.msra.mxu0 %v714
    %1854 = vmatprep.subr.bf16.mxu0 %v717
    %1855 = vmatpush1.bf16.msra.mxu0 %v716
    %1856 = vmatprep.subr.bf16.mxu0 %v719
    %1857 = vmatpush1.bf16.msra.mxu0 %v718
    %1858 = vmatprep.subr.bf16.mxu0 %v721
    %1859 = vmatpush1.bf16.msra.mxu0 %v720
    %1860 = vmatprep.subr.bf16.mxu0 %v723
    %1861 = vmatpush1.bf16.msra.mxu0 %v722
    %1862 = vmatprep.mubr.bf16.mxu0 %v1795
    %1863 = vmatmul.mubr.bf16.gmra.mrb[0].mxu0 %v1781
    %v1864 = vpop.f32.mrb[0].mxu0
    %v1865 = vadd.f32 0.0, %v1864
    %v1866 = vpop.f32.mrb[0].mxu0
    %v1867 = vadd.f32 0.0, %v1866
    %v1868 = vpop.f32.mrb[0].mxu0
    %v1869 = vpop.f32.mrb[0].mxu0
    %1870 = vdwg.mxu0
    %1871 = vmatprep.subr.bf16.mxu0 %v725
    %1872 = vmatpush1.bf16.msra.mxu0 %v724
    %1873 = vmatprep.subr.bf16.mxu0 %v727
    %1874 = vmatpush1.bf16.msra.mxu0 %v726
    %1875 = vmatprep.subr.bf16.mxu0 %v729
    %1876 = vmatpush1.bf16.msra.mxu0 %v728
    %1877 = vmatprep.subr.bf16.mxu0 %v731
    %1878 = vmatpush1.bf16.msra.mxu0 %v730
    %1879 = vmatprep.subr.bf16.mxu0 %v733
    %1880 = vmatpush1.bf16.msra.mxu0 %v732
    %1881 = vmatprep.subr.bf16.mxu0 %v735
    %1882 = vmatpush1.bf16.msra.mxu0 %v734
    %1883 = vmatprep.subr.bf16.mxu0 %v737
    %1884 = vmatpush1.bf16.msra.mxu0 %v736
    %1885 = vmatprep.subr.bf16.mxu0 %v739
    %1886 = vmatpush1.bf16.msra.mxu0 %v738
    %1887 = vmatprep.subr.bf16.mxu0 %v741
    %1888 = vmatpush1.bf16.msra.mxu0 %v740
    %1889 = vmatprep.subr.bf16.mxu0 %v743
    %1890 = vmatpush1.bf16.msra.mxu0 %v742
    %1891 = vmatprep.subr.bf16.mxu0 %v745
    %1892 = vmatpush1.bf16.msra.mxu0 %v744
    %1893 = vmatprep.subr.bf16.mxu0 %v747
    %1894 = vmatpush1.bf16.msra.mxu0 %v746
    %1895 = vmatprep.subr.bf16.mxu0 %v749
    %1896 = vmatpush1.bf16.msra.mxu0 %v748
    %1897 = vmatprep.subr.bf16.mxu0 %v751
    %1898 = vmatpush1.bf16.msra.mxu0 %v750
    %1899 = vmatprep.subr.bf16.mxu0 %v753
    %1900 = vmatpush1.bf16.msra.mxu0 %v752
    %1901 = vmatprep.subr.bf16.mxu0 %v755
    %1902 = vmatpush1.bf16.msra.mxu0 %v754
    %1903 = vmatprep.mubr.bf16.mxu0 %v1805
    %1904 = vmatmul.mubr.bf16.gmra.mrb[0].mxu0 %v1803
    %v1905 = vpop.f32.mrb[0].mxu0
    %v1906 = vadd.f32 %v1865, %v1905
    %v1907 = vpop.f32.mrb[0].mxu0
    %v1908 = vadd.f32 %v1867, %v1907
    %v1909 = vpop.f32.mrb[0].mxu0
    %v1910 = vpop.f32.mrb[0].mxu0
    %1911 = vdwg.mxu0
    %1912 = vmatprep.subr.bf16.mxu0 %v757
    %1913 = vmatpush1.bf16.msra.mxu0 %v756
    %1914 = vmatprep.subr.bf16.mxu0 %v759
    %1915 = vmatpush1.bf16.msra.mxu0 %v758
    %1916 = vmatprep.subr.bf16.mxu0 %v761
    %1917 = vmatpush1.bf16.msra.mxu0 %v760
    %1918 = vmatprep.subr.bf16.mxu0 %v763
    %1919 = vmatpush1.bf16.msra.mxu0 %v762
    %1920 = vmatprep.subr.bf16.mxu0 %v765
    %1921 = vmatpush1.bf16.msra.mxu0 %v764
    %1922 = vmatprep.subr.bf16.mxu0 %v767
    %1923 = vmatpush1.bf16.msra.mxu0 %v766
    %1924 = vmatprep.subr.bf16.mxu0 %v769
    %1925 = vmatpush1.bf16.msra.mxu0 %v768
    %1926 = vmatprep.subr.bf16.mxu0 %v771
    %1927 = vmatpush1.bf16.msra.mxu0 %v770
    %1928 = vmatprep.subr.bf16.mxu0 %v773
    %1929 = vmatpush1.bf16.msra.mxu0 %v772
    %1930 = vmatprep.subr.bf16.mxu0 %v775
    %1931 = vmatpush1.bf16.msra.mxu0 %v774
    %1932 = vmatprep.subr.bf16.mxu0 %v777
    %1933 = vmatpush1.bf16.msra.mxu0 %v776
    %1934 = vmatprep.subr.bf16.mxu0 %v779
    %1935 = vmatpush1.bf16.msra.mxu0 %v778
    %1936 = vmatprep.subr.bf16.mxu0 %v781
    %1937 = vmatpush1.bf16.msra.mxu0 %v780
    %1938 = vmatprep.subr.bf16.mxu0 %v783
    %1939 = vmatpush1.bf16.msra.mxu0 %v782
    %1940 = vmatprep.subr.bf16.mxu0 %v785
    %1941 = vmatpush1.bf16.msra.mxu0 %v784
    %1942 = vmatprep.subr.bf16.mxu0 %v787
    %1943 = vmatpush1.bf16.msra.mxu0 %v786
    %1944 = vmatprep.mubr.bf16.mxu0 %v1802
    %1945 = vmatmul.mubr.bf16.gmra.mrb[0].mxu0 %v1788
    %v1946 = vpop.f32.mrb[0].mxu0
    %v1947 = vadd.f32 %v1906, %v1946
    %v1948 = vpop.f32.mrb[0].mxu0
    %v1949 = vadd.f32 %v1908, %v1948
    %v1950 = vpop.f32.mrb[0].mxu0
    %v1951 = vpop.f32.mrb[0].mxu0
    %1952 = vdwg.mxu0
    %1953 = vmatprep.subr.bf16.mxu0 %v789
    %1954 = vmatpush1.bf16.msra.mxu0 %v788
    %1955 = vmatprep.subr.bf16.mxu0 %v791
    %1956 = vmatpush1.bf16.msra.mxu0 %v790
    %1957 = vmatprep.subr.bf16.mxu0 %v793
    %1958 = vmatpush1.bf16.msra.mxu0 %v792
    %1959 = vmatprep.subr.bf16.mxu0 %v795
    %1960 = vmatpush1.bf16.msra.mxu0 %v794
    %1961 = vmatprep.subr.bf16.mxu0 %v797
    %1962 = vmatpush1.bf16.msra.mxu0 %v796
    %1963 = vmatprep.subr.bf16.mxu0 %v799
    %1964 = vmatpush1.bf16.msra.mxu0 %v798
    %1965 = vmatprep.subr.bf16.mxu0 %v801
    %1966 = vmatpush1.bf16.msra.mxu0 %v800
    %1967 = vmatprep.subr.bf16.mxu0 %v803
    %1968 = vmatpush1.bf16.msra.mxu0 %v802
    %1969 = vmatprep.subr.bf16.mxu0 %v805
    %1970 = vmatpush1.bf16.msra.mxu0 %v804
    %1971 = vmatprep.subr.bf16.mxu0 %v807
    %1972 = vmatpush1.bf16.msra.mxu0 %v806
    %1973 = vmatprep.subr.bf16.mxu0 %v809
    %1974 = vmatpush1.bf16.msra.mxu0 %v808
    %1975 = vmatprep.subr.bf16.mxu0 %v811
    %1976 = vmatpush1.bf16.msra.mxu0 %v810
    %1977 = vmatprep.subr.bf16.mxu0 %v813
    %1978 = vmatpush1.bf16.msra.mxu0 %v812
    %1979 = vmatprep.subr.bf16.mxu0 %v815
    %1980 = vmatpush1.bf16.msra.mxu0 %v814
    %1981 = vmatprep.subr.bf16.mxu0 %v817
    %1982 = vmatpush1.bf16.msra.mxu0 %v816
    %1983 = vmatprep.subr.bf16.mxu0 %v819
    %1984 = vmatpush1.bf16.msra.mxu0 %v818
    %1985 = vmatprep.mubr.bf16.mxu0 %v1806
    %1986 = vmatmul.mubr.bf16.gmra.mrb[0].mxu0 %v1804
    %v1987 = vpop.f32.mrb[0].mxu0
    %v1988 = vadd.f32 %v1947, %v1987
    %v1989 = vpop.f32.mrb[0].mxu0
    %v1990 = vadd.f32 %v1949, %v1989
    %v1991 = vpop.f32.mrb[0].mxu0
    %v1992 = vpop.f32.mrb[0].mxu0
    %1993 = vdwg.mxu0
    %1994 = vmatprep.subr.bf16.mxu0 %v821
    %1995 = vmatpush1.bf16.msra.mxu0 %v820
    %1996 = vmatprep.subr.bf16.mxu0 %v823
    %1997 = vmatpush1.bf16.msra.mxu0 %v822
    %1998 = vmatprep.subr.bf16.mxu0 %v825
    %1999 = vmatpush1.bf16.msra.mxu0 %v824
    %2000 = vmatprep.subr.bf16.mxu0 %v827
    %2001 = vmatpush1.bf16.msra.mxu0 %v826
    %2002 = vmatprep.subr.bf16.mxu0 %v829
    %2003 = vmatpush1.bf16.msra.mxu0 %v828
    %2004 = vmatprep.subr.bf16.mxu0 %v831
    %2005 = vmatpush1.bf16.msra.mxu0 %v830
    %2006 = vmatprep.subr.bf16.mxu0 %v833
    %2007 = vmatpush1.bf16.msra.mxu0 %v832
    %2008 = vmatprep.subr.bf16.mxu0 %v835
    %2009 = vmatpush1.bf16.msra.mxu0 %v834
    %2010 = vmatprep.subr.bf16.mxu0 0
    %2011 = vmatpush1.bf16.msra.mxu0 0
    %2012 = vmatprep.subr.bf16.mxu0 0
    %2013 = vmatpush1.bf16.msra.mxu0 0
    %2014 = vmatprep.subr.bf16.mxu0 0
    %2015 = vmatpush1.bf16.msra.mxu0 0
    %2016 = vmatprep.subr.bf16.mxu0 0
    %2017 = vmatpush1.bf16.msra.mxu0 0
    %2018 = vmatprep.subr.bf16.mxu0 0
    %2019 = vmatpush1.bf16.msra.mxu0 0
    %2020 = vmatprep.subr.bf16.mxu0 0
    %2021 = vmatpush1.bf16.msra.mxu0 0
    %2022 = vmatprep.subr.bf16.mxu0 0
    %2023 = vmatpush1.bf16.msra.mxu0 0
    %2024 = vmatprep.subr.bf16.mxu0 0
    %2025 = vmatpush1.bf16.msra.mxu0 0
    %2026 = vmatprep.mubr.bf16.mxu0 0
    %2027 = vmatmul.mubr.bf16.gmra.mrb[0].mxu0 %v1820
    %v2028 = vpop.f32.mrb[0].mxu0
    %v2029 = vadd.f32 %v1988, %v2028
    %v2030 = vpop.f32.mrb[0].mxu0
    %v2031 = vadd.f32 %v1990, %v2030
    %v2032 = vpop.f32.mrb[0].mxu0
    %v2033 = vpop.f32.mrb[0].mxu0
    %2034 = vdwg.mxu0
    %v2035 = vmax.f32 %v1751, %v2029
    %v2036 = vmax.f32 %v1752, %v2031
    %v2037 = vld [vmem:[%s2] sm:$0x3]
    %v2039 = vlaneseq
    %v2040 = vshrl.u32 %v2039, 7
    %v2041 = vsub.s32 0, %v2040
    %v2042 = vrot.slane %v2037, %v2041
    %v2043 = vlaneseq
    %v2044 = vshrl.u32 %v2043, 7
    %v2045 = vsub.s32 1, %v2044
    %v2046 = vrot.slane %v2037, %v2045
    %v2049 = vadd.f32 %v2035, %v2042
    %v2050 = vadd.f32 %v2036, %v2046
    %v2051 = vmax.f32 %v2049, 0.0
    %v2052 = vmax.f32 %v2050, 0.0
    %v2053 = vld [vmem:[%s3] sm:$0xff]
    %v2054 = vld [vmem:[%s3 + $0x8] sm:$0xff]
    %v2055 = vld [vmem:[%s3 + $0x10] sm:$0xff]
    %v2056 = vld [vmem:[%s3 + $0x18] sm:$0xff]
    %v2057 = vld [vmem:[%s3 + $0x20] sm:$0xff]
    %v2058 = vld [vmem:[%s3 + $0x28] sm:$0xff]
    %v2059 = vld [vmem:[%s3 + $0x30] sm:$0xff]
    %v2060 = vld [vmem:[%s3 + $0x38] sm:$0xff]
    %v2061 = vld [vmem:[%s3 + $0x40] sm:$0xff]
    %v2062 = vld [vmem:[%s3 + $0x48] sm:$0xff]
    %v2063 = vld [vmem:[%s3 + $0x50] sm:$0xff]
    %v2064 = vld [vmem:[%s3 + $0x58] sm:$0xff]
    %v2065 = vld [vmem:[%s3 + $0x60] sm:$0xff]
    %v2066 = vld [vmem:[%s3 + $0x68] sm:$0xff]
    %v2067 = vld [vmem:[%s3 + $0x70] sm:$0xff]
    %v2068 = vld [vmem:[%s3 + $0x78] sm:$0xff]
    %v2069 = vld [vmem:[%s3 + $0x80] sm:$0xff]
    %v2070 = vld [vmem:[%s3 + $0x88] sm:$0xff]
    %v2071 = vld [vmem:[%s3 + $0x90] sm:$0xff]
    %v2072 = vld [vmem:[%s3 + $0x98] sm:$0xff]
    %v2073 = vld [vmem:[%s3 + $0xa0] sm:$0xff]
    %v2074 = vld [vmem:[%s3 + $0xa8] sm:$0xff]
    %v2075 = vld [vmem:[%s3 + $0xb0] sm:$0xff]
    %v2076 = vld [vmem:[%s3 + $0xb8] sm:$0xff]
    %v2077 = vld [vmem:[%s3 + $0xc0] sm:$0xff]
    %v2078 = vld [vmem:[%s3 + $0xc8] sm:$0xff]
    %v2079 = vld [vmem:[%s3 + $0xd0] sm:$0xff]
    %v2080 = vld [vmem:[%s3 + $0xd8] sm:$0xff]
    %v2081 = vld [vmem:[%s3 + $0xe0] sm:$0xff]
    %v2082 = vld [vmem:[%s3 + $0xe8] sm:$0xff]
    %v2083 = vld [vmem:[%s3 + $0xf0] sm:$0xff]
    %v2084 = vld [vmem:[%s3 + $0xf8] sm:$0xff]
    %v2085 = vld [vmem:[%s4] sm:$0x1]
    %v2087 = vlaneseq
    %v2088 = vshrl.u32 %v2087, 7
    %v2089 = vsub.s32 0, %v2088
    %v2090 = vrot.slane %v2085, %v2089
    %2092 = vmatprep.subr.mxu0 0.0
    %2093 = vmatpush1.msra.mxu0 %v2053
    %2094 = vmatprep.subr.mxu0 0.0
    %2095 = vmatpush1.msra.mxu0 %v2054
    %2096 = vmatprep.subr.mxu0 0.0
    %2097 = vmatpush1.msra.mxu0 %v2055
    %2098 = vmatprep.subr.mxu0 0.0
    %2099 = vmatpush1.msra.mxu0 %v2056
    %2100 = vmatprep.subr.mxu0 0.0
    %2101 = vmatpush1.msra.mxu0 %v2057
    %2102 = vmatprep.subr.mxu0 0.0
    %2103 = vmatpush1.msra.mxu0 %v2058
    %2104 = vmatprep.subr.mxu0 0.0
    %2105 = vmatpush1.msra.mxu0 %v2059
    %2106 = vmatprep.subr.mxu0 0.0
    %2107 = vmatpush1.msra.mxu0 %v2060
    %2108 = vmatprep.subr.mxu0 0.0
    %2109 = vmatpush1.msra.mxu0 %v2061
    %2110 = vmatprep.subr.mxu0 0.0
    %2111 = vmatpush1.msra.mxu0 %v2062
    %2112 = vmatprep.subr.mxu0 0.0
    %2113 = vmatpush1.msra.mxu0 %v2063
    %2114 = vmatprep.subr.mxu0 0.0
    %2115 = vmatpush1.msra.mxu0 %v2064
    %2116 = vmatprep.subr.mxu0 0.0
    %2117 = vmatpush1.msra.mxu0 %v2065
    %2118 = vmatprep.subr.mxu0 0.0
    %2119 = vmatpush1.msra.mxu0 %v2066
    %2120 = vmatprep.subr.mxu0 0.0
    %2121 = vmatpush1.msra.mxu0 %v2067
    %2122 = vmatprep.subr.mxu0 0.0
    %2123 = vmatpush1.msra.mxu0 %v2068
    %2124 = vmatprep.subr.mxu0 0.0
    %2125 = vmatpush1.msra.mxu0 %v2069
    %2126 = vmatprep.subr.mxu0 0.0
    %2127 = vmatpush1.msra.mxu0 %v2070
    %2128 = vmatprep.subr.mxu0 0.0
    %2129 = vmatpush1.msra.mxu0 %v2071
    %2130 = vmatprep.subr.mxu0 0.0
    %2131 = vmatpush1.msra.mxu0 %v2072
    %2132 = vmatprep.subr.mxu0 0.0
    %2133 = vmatpush1.msra.mxu0 %v2073
    %2134 = vmatprep.subr.mxu0 0.0
    %2135 = vmatpush1.msra.mxu0 %v2074
    %2136 = vmatprep.subr.mxu0 0.0
    %2137 = vmatpush1.msra.mxu0 %v2075
    %2138 = vmatprep.subr.mxu0 0.0
    %2139 = vmatpush1.msra.mxu0 %v2076
    %2140 = vmatprep.subr.mxu0 0.0
    %2141 = vmatpush1.msra.mxu0 %v2077
    %2142 = vmatprep.subr.mxu0 0.0
    %2143 = vmatpush1.msra.mxu0 %v2078
    %2144 = vmatprep.subr.mxu0 0.0
    %2145 = vmatpush1.msra.mxu0 %v2079
    %2146 = vmatprep.subr.mxu0 0.0
    %2147 = vmatpush1.msra.mxu0 %v2080
    %2148 = vmatprep.subr.mxu0 0.0
    %2149 = vmatpush1.msra.mxu0 %v2081
    %2150 = vmatprep.subr.mxu0 0.0
    %2151 = vmatpush1.msra.mxu0 %v2082
    %2152 = vmatprep.subr.mxu0 0.0
    %2153 = vmatpush1.msra.mxu0 %v2083
    %2154 = vmatprep.subr.mxu0 0.0
    %2155 = vmatpush1.msra.mxu0 %v2084
    %2156 = vmatprep.mubr.f32.mxu0 %v2052
    %2157 = vmatmul.mubr.f32.gmra.mrb[0].mxu0 %v2051
    %v2158 = vpop.f32.mrb[0].mxu0
    %v2159 = vadd.f32 %v2090, %v2158
    %v2160 = vpop.f32.mrb[0].mxu0
    %2161 = vdwg.mxu0
    %2163 = vrot.lane.b32.xlu0 %v2159, 96
    %v2164 = vpop.permute.xlu0 %2163
    %v2166 = vmax.f32 %v2159, %v2164
    %2168 = vrot.lane.b32.xlu0 %v2166, 64
    %v2169 = vpop.permute.xlu0 %2168
    %v2171 = vmax.f32 %v2166, %v2169
    %v2172 = vmax.f32 %v2171, 0.0
    %v2173 = vld [vmem:[%s5] sm:$0xff]
    %v2174 = vld [vmem:[%s5 + $0x8] sm:$0xff]
    %v2175 = vld [vmem:[%s5 + $0x10] sm:$0xff]
    %v2176 = vld [vmem:[%s5 + $0x18] sm:$0xff]
    %v2177 = vld [vmem:[%s6] sm:$0x1]
    %v2179 = vlaneseq
    %v2180 = vshrl.u32 %v2179, 7
    %v2181 = vsub.s32 0, %v2180
    %v2182 = vrot.slane %v2177, %v2181
    %vm2184 = vcmask 261120
    %v2186 = vsel %vm2184, %v2172, 0
    %2188 = vmatprep.subr.mxu0 0.0
    %2189 = vmatpush1.msra.mxu0 %v2173
    %2190 = vmatprep.subr.mxu0 0.0
    %2191 = vmatpush1.msra.mxu0 %v2174
    %2192 = vmatprep.subr.mxu0 0.0
    %2193 = vmatpush1.msra.mxu0 %v2175
    %2194 = vmatprep.subr.mxu0 0.0
    %2195 = vmatpush1.msra.mxu0 %v2176
    %2196 = vmatprep.subr.mxu0 0.0
    %2197 = vmatpush1.msra.mxu0 0.0
    %2198 = vmatprep.subr.mxu0 0.0
    %2199 = vmatpush1.msra.mxu0 0.0
    %2200 = vmatprep.subr.mxu0 0.0
    %2201 = vmatpush1.msra.mxu0 0.0
    %2202 = vmatprep.subr.mxu0 0.0
    %2203 = vmatpush1.msra.mxu0 0.0
    %2204 = vmatprep.subr.mxu0 0.0
    %2205 = vmatpush1.msra.mxu0 0.0
    %2206 = vmatprep.subr.mxu0 0.0
    %2207 = vmatpush1.msra.mxu0 0.0
    %2208 = vmatprep.subr.mxu0 0.0
    %2209 = vmatpush1.msra.mxu0 0.0
    %2210 = vmatprep.subr.mxu0 0.0
    %2211 = vmatpush1.msra.mxu0 0.0
    %2212 = vmatprep.subr.mxu0 0.0
    %2213 = vmatpush1.msra.mxu0 0.0
    %2214 = vmatprep.subr.mxu0 0.0
    %2215 = vmatpush1.msra.mxu0 0.0
    %2216 = vmatprep.subr.mxu0 0.0
    %2217 = vmatpush1.msra.mxu0 0.0
    %2218 = vmatprep.subr.mxu0 0.0
    %2219 = vmatpush1.msra.mxu0 0.0
    %2220 = vmatprep.subr.mxu0 0.0
    %2221 = vmatpush1.msra.mxu0 0.0
    %2222 = vmatprep.subr.mxu0 0.0
    %2223 = vmatpush1.msra.mxu0 0.0
    %2224 = vmatprep.subr.mxu0 0.0
    %2225 = vmatpush1.msra.mxu0 0.0
    %2226 = vmatprep.subr.mxu0 0.0
    %2227 = vmatpush1.msra.mxu0 0.0
    %2228 = vmatprep.subr.mxu0 0.0
    %2229 = vmatpush1.msra.mxu0 0.0
    %2230 = vmatprep.subr.mxu0 0.0
    %2231 = vmatpush1.msra.mxu0 0.0
    %2232 = vmatprep.subr.mxu0 0.0
    %2233 = vmatpush1.msra.mxu0 0.0
    %2234 = vmatprep.subr.mxu0 0.0
    %2235 = vmatpush1.msra.mxu0 0.0
    %2236 = vmatprep.subr.mxu0 0.0
    %2237 = vmatpush1.msra.mxu0 0.0
    %2238 = vmatprep.subr.mxu0 0.0
    %2239 = vmatpush1.msra.mxu0 0.0
    %2240 = vmatprep.subr.mxu0 0.0
    %2241 = vmatpush1.msra.mxu0 0.0
    %2242 = vmatprep.subr.mxu0 0.0
    %2243 = vmatpush1.msra.mxu0 0.0
    %2244 = vmatprep.subr.mxu0 0.0
    %2245 = vmatpush1.msra.mxu0 0.0
    %2246 = vmatprep.subr.mxu0 0.0
    %2247 = vmatpush1.msra.mxu0 0.0
    %2248 = vmatprep.subr.mxu0 0.0
    %2249 = vmatpush1.msra.mxu0 0.0
    %2250 = vmatprep.subr.mxu0 0.0
    %2251 = vmatpush1.msra.mxu0 0.0
    %2252 = vmatprep.mubr.f32.mxu0 0.0
    %2253 = vmatmul.mubr.f32.gmra.mrb[0].mxu0 %v2186
    %v2254 = vpop.f32.mrb[0].mxu0
    %v2255 = vadd.f32 %v2182, %v2254
    %v2256 = vpop.f32.mrb[0].mxu0
    %2257 = vdwg.mxu0
    %v2258 = vmax.f32 %v2255, 0.0
    %v2259 = vld [vmem:[%s7] sm:$0xff]
    %v2260 = vld [vmem:[%s7 + $0x8] sm:$0xff]
    %v2261 = vld [vmem:[%s7 + $0x10] sm:$0xff]
    %v2262 = vld [vmem:[%s7 + $0x18] sm:$0xff]
    %v2263 = vld [vmem:[%s7 + $0x20] sm:$0xff]
    %v2264 = vld [vmem:[%s7 + $0x28] sm:$0xff]
    %v2265 = vld [vmem:[%s7 + $0x30] sm:$0xff]
    %v2266 = vld [vmem:[%s7 + $0x38] sm:$0xff]
    %v2267 = vld [vmem:[%s7 + $0x40] sm:$0xff]
    %v2268 = vld [vmem:[%s7 + $0x48] sm:$0xff]
    %v2269 = vld [vmem:[%s7 + $0x50] sm:$0xff]
    %v2270 = vld [vmem:[%s7 + $0x58] sm:$0xff]
    %v2271 = vld [vmem:[%s7 + $0x60] sm:$0xff]
    %v2272 = vld [vmem:[%s7 + $0x68] sm:$0xff]
    %v2273 = vld [vmem:[%s7 + $0x70] sm:$0xff]
    %v2274 = vld [vmem:[%s7 + $0x78] sm:$0xff]
    %v2275 = vld [vmem:[%s8] sm:$0x1]
    %v2277 = vlaneseq
    %v2278 = vshrl.u32 %v2277, 7
    %v2279 = vsub.s32 0, %v2278
    %v2280 = vrot.slane %v2275, %v2279
    %2282 = vmatprep.subr.mxu0 0.0
    %2283 = vmatpush1.msra.mxu0 %v2259
    %2284 = vmatprep.subr.mxu0 0.0
    %2285 = vmatpush1.msra.mxu0 %v2260
    %2286 = vmatprep.subr.mxu0 0.0
    %2287 = vmatpush1.msra.mxu0 %v2261
    %2288 = vmatprep.subr.mxu0 0.0
    %2289 = vmatpush1.msra.mxu0 %v2262
    %2290 = vmatprep.subr.mxu0 0.0
    %2291 = vmatpush1.msra.mxu0 %v2263
    %2292 = vmatprep.subr.mxu0 0.0
    %2293 = vmatpush1.msra.mxu0 %v2264
    %2294 = vmatprep.subr.mxu0 0.0
    %2295 = vmatpush1.msra.mxu0 %v2265
    %2296 = vmatprep.subr.mxu0 0.0
    %2297 = vmatpush1.msra.mxu0 %v2266
    %2298 = vmatprep.subr.mxu0 0.0
    %2299 = vmatpush1.msra.mxu0 %v2267
    %2300 = vmatprep.subr.mxu0 0.0
    %2301 = vmatpush1.msra.mxu0 %v2268
    %2302 = vmatprep.subr.mxu0 0.0
    %2303 = vmatpush1.msra.mxu0 %v2269
    %2304 = vmatprep.subr.mxu0 0.0
    %2305 = vmatpush1.msra.mxu0 %v2270
    %2306 = vmatprep.subr.mxu0 0.0
    %2307 = vmatpush1.msra.mxu0 %v2271
    %2308 = vmatprep.subr.mxu0 0.0
    %2309 = vmatpush1.msra.mxu0 %v2272
    %2310 = vmatprep.subr.mxu0 0.0
    %2311 = vmatpush1.msra.mxu0 %v2273
    %2312 = vmatprep.subr.mxu0 0.0
    %2313 = vmatpush1.msra.mxu0 %v2274
    %2314 = vmatprep.subr.mxu0 0.0
    %2315 = vmatpush1.msra.mxu0 0.0
    %2316 = vmatprep.subr.mxu0 0.0
    %2317 = vmatpush1.msra.mxu0 0.0
    %2318 = vmatprep.subr.mxu0 0.0
    %2319 = vmatpush1.msra.mxu0 0.0
    %2320 = vmatprep.subr.mxu0 0.0
    %2321 = vmatpush1.msra.mxu0 0.0
    %2322 = vmatprep.subr.mxu0 0.0
    %2323 = vmatpush1.msra.mxu0 0.0
    %2324 = vmatprep.subr.mxu0 0.0
    %2325 = vmatpush1.msra.mxu0 0.0
    %2326 = vmatprep.subr.mxu0 0.0
    %2327 = vmatpush1.msra.mxu0 0.0
    %2328 = vmatprep.subr.mxu0 0.0
    %2329 = vmatpush1.msra.mxu0 0.0
    %2330 = vmatprep.subr.mxu0 0.0
    %2331 = vmatpush1.msra.mxu0 0.0
    %2332 = vmatprep.subr.mxu0 0.0
    %2333 = vmatpush1.msra.mxu0 0.0
    %2334 = vmatprep.subr.mxu0 0.0
    %2335 = vmatpush1.msra.mxu0 0.0
    %2336 = vmatprep.subr.mxu0 0.0
    %2337 = vmatpush1.msra.mxu0 0.0
    %2338 = vmatprep.subr.mxu0 0.0
    %2339 = vmatpush1.msra.mxu0 0.0
    %2340 = vmatprep.subr.mxu0 0.0
    %2341 = vmatpush1.msra.mxu0 0.0
    %2342 = vmatprep.subr.mxu0 0.0
    %2343 = vmatpush1.msra.mxu0 0.0
    %2344 = vmatprep.subr.mxu0 0.0
    %2345 = vmatpush1.msra.mxu0 0.0
    %2346 = vmatprep.mubr.f32.mxu0 0.0
    %2347 = vmatmul.mubr.f32.gmra.mrb[0].mxu0 %v2258
    %v2348 = vpop.f32.mrb[0].mxu0
    %v2349 = vadd.f32 %v2280, %v2348
    %v2350 = vpop.f32.mrb[0].mxu0
    %2351 = vdwg.mxu0
    %v2352 = vmax.f32 %v2349, 0.0
    %v2353 = vld [vmem:[%s9] sm:$0xff]
    %v2354 = vld [vmem:[%s9 + $0x8] sm:$0xff]
    %v2355 = vld [vmem:[%s9 + $0x10] sm:$0xff]
    %v2356 = vld [vmem:[%s9 + $0x18] sm:$0xff]
    %v2357 = vld [vmem:[%s10] sm:$0x1]
    %v2359 = vlaneseq
    %v2360 = vshrl.u32 %v2359, 7
    %v2361 = vsub.s32 0, %v2360
    %v2362 = vrot.slane %v2357, %v2361
    %v2365 = vsel %vm2184, %v2352, 0
    %2367 = vmatprep.subr.mxu0 0.0
    %2368 = vmatpush1.msra.mxu0 %v2353
    %2369 = vmatprep.subr.mxu0 0.0
    %2370 = vmatpush1.msra.mxu0 %v2354
    %2371 = vmatprep.subr.mxu0 0.0
    %2372 = vmatpush1.msra.mxu0 %v2355
    %2373 = vmatprep.subr.mxu0 0.0
    %2374 = vmatpush1.msra.mxu0 %v2356
    %2375 = vmatprep.subr.mxu0 0.0
    %2376 = vmatpush1.msra.mxu0 0.0
    %2377 = vmatprep.subr.mxu0 0.0
    %2378 = vmatpush1.msra.mxu0 0.0
    %2379 = vmatprep.subr.mxu0 0.0
    %2380 = vmatpush1.msra.mxu0 0.0
    %2381 = vmatprep.subr.mxu0 0.0
    %2382 = vmatpush1.msra.mxu0 0.0
    %2383 = vmatprep.subr.mxu0 0.0
    %2384 = vmatpush1.msra.mxu0 0.0
    %2385 = vmatprep.subr.mxu0 0.0
    %2386 = vmatpush1.msra.mxu0 0.0
    %2387 = vmatprep.subr.mxu0 0.0
    %2388 = vmatpush1.msra.mxu0 0.0
    %2389 = vmatprep.subr.mxu0 0.0
    %2390 = vmatpush1.msra.mxu0 0.0
    %2391 = vmatprep.subr.mxu0 0.0
    %2392 = vmatpush1.msra.mxu0 0.0
    %2393 = vmatprep.subr.mxu0 0.0
    %2394 = vmatpush1.msra.mxu0 0.0
    %2395 = vmatprep.subr.mxu0 0.0
    %2396 = vmatpush1.msra.mxu0 0.0
    %2397 = vmatprep.subr.mxu0 0.0
    %2398 = vmatpush1.msra.mxu0 0.0
    %2399 = vmatprep.subr.mxu0 0.0
    %2400 = vmatpush1.msra.mxu0 0.0
    %2401 = vmatprep.subr.mxu0 0.0
    %2402 = vmatpush1.msra.mxu0 0.0
    %2403 = vmatprep.subr.mxu0 0.0
    %2404 = vmatpush1.msra.mxu0 0.0
    %2405 = vmatprep.subr.mxu0 0.0
    %2406 = vmatpush1.msra.mxu0 0.0
    %2407 = vmatprep.subr.mxu0 0.0
    %2408 = vmatpush1.msra.mxu0 0.0
    %2409 = vmatprep.subr.mxu0 0.0
    %2410 = vmatpush1.msra.mxu0 0.0
    %2411 = vmatprep.subr.mxu0 0.0
    %2412 = vmatpush1.msra.mxu0 0.0
    %2413 = vmatprep.subr.mxu0 0.0
    %2414 = vmatpush1.msra.mxu0 0.0
    %2415 = vmatprep.subr.mxu0 0.0
    %2416 = vmatpush1.msra.mxu0 0.0
    %2417 = vmatprep.subr.mxu0 0.0
    %2418 = vmatpush1.msra.mxu0 0.0
    %2419 = vmatprep.subr.mxu0 0.0
    %2420 = vmatpush1.msra.mxu0 0.0
    %2421 = vmatprep.subr.mxu0 0.0
    %2422 = vmatpush1.msra.mxu0 0.0
    %2423 = vmatprep.subr.mxu0 0.0
    %2424 = vmatpush1.msra.mxu0 0.0
    %2425 = vmatprep.subr.mxu0 0.0
    %2426 = vmatpush1.msra.mxu0 0.0
    %2427 = vmatprep.subr.mxu0 0.0
    %2428 = vmatpush1.msra.mxu0 0.0
    %2429 = vmatprep.subr.mxu0 0.0
    %2430 = vmatpush1.msra.mxu0 0.0
    %2431 = vmatprep.mubr.f32.mxu0 0.0
    %2432 = vmatmul.mubr.f32.gmra.mrb[0].mxu0 %v2365
    %v2433 = vpop.f32.mrb[0].mxu0
    %v2434 = vadd.f32 %v2362, %v2433
    %v2435 = vpop.f32.mrb[0].mxu0
    %2436 = vdwg.mxu0
    %vm2437 = vcmask 74752
    %2438 = vst.msk [vmem:[#allocation2] sm:$0x3] %vm2437, %v2434
    // Predicated region
    $region46: #{end_layer_forward.5} parent=1 // pred_check
      _
    $region47: #{end_layer_forward.5} parent=1 // pred_check_branch
      %2440 = sbr.rel (0) target = $region49
    $region48: #{end_layer_forward.5} parent=1 // pred_region
      %s2442 = ssub.s32 32, 32
      %2443 = vsyncadd [#allocation3], %s2442
      %s2445 = sshll.u32 [#allocation2], 4
      %s2446 = int_to_ptr.vmem [resolvable:$true] %s2445
      %2448 = dma.vmem_to_hbm [thread:$0]  %s2446, 32, %s11, [#allocation3]
    $region49: #{end_layer_forward.5} parent=1 // pred_fallthru
      _
    // Predicated region
    $region50: #{end_layer_forward.5} parent=1 // pred_check
      _
    $region51: #{end_layer_forward.5} parent=1 // pred_check_branch
      %2450 = sbr.rel (0) target = $region53
    $region52: #{end_layer_forward.5} parent=1 // pred_region
      %2451 = dma.done [#allocation3], 32
    $region53: #{end_layer_forward.5} parent=1 // pred_fallthru
      _
    %2452 = vsyncpa [#allocation3], 1

</llo_original>
